<compile_context>
chip_gen: v5e
topology: v5e:2x2
jax: 0.10.0
libtpu: 0.0.40
codegen_flags: <defaults>
</compile_context>

<pallas_src>
import jax
import jax.numpy as jnp
from jax.experimental import pallas as pl
from jax.experimental.pallas import tpu as pltpu

# ----- model hyper-parameters (small synthetic config) -----
D_MODEL = 32
D_FFN = 64
N_LEVELS = 4
N_HEADS = 4
N_POINTS = 4
HEAD_DIM = D_MODEL // N_HEADS
LN_EPS = 1e-5

LP = N_LEVELS * N_POINTS                       # 16
OFF_DIM = N_HEADS * LP * 2                     # 128 (sampling offsets / locations)
ATT_DIM = N_HEADS * LP                         # 64  (attention logits)
REF_DIM = N_LEVELS * 2                         # 8   (reference points per token)
SAMP_DIM = N_HEADS * LP * HEAD_DIM             # 512 (flattened sampled values)
TOKEN_TILE = 128                               # rows per grid step


# ============ Kernel 1: fused projections + locations + softmax ============

def _proj_kernel(q_ref, qpos_ref, ref_ref, wv_ref, bv_ref, wcat_ref, bcat_ref,
                 gsum_ref, scale_ref, rb_ref, v_ref, loc_ref, attn_ref):
    q = q_ref[...]
    qp = q + qpos_ref[...]                                   # with_pos_embed

    # value projection (from query itself, as in the PyTorch forward)
    v_ref[...] = (jnp.dot(q, wv_ref[...], preferred_element_type=jnp.float32)
                  + bv_ref[...])

    # single lane-dense matmul for [sampling_offsets | attention_logits]
    proj = (jnp.dot(qp, wcat_ref[...], preferred_element_type=jnp.float32)
            + bcat_ref[...])                                 # [TM, 192]

    # sampling locations = reference_points (broadcast over heads/points via a
    # constant 0/1 matmul) + offsets normalized by (W_l, H_l)
    loc_ref[...] = (proj[:, :OFF_DIM] * scale_ref[...]
                    + jnp.dot(ref_ref[...], rb_ref[...],
                              preferred_element_type=jnp.float32))

    # per-head softmax over the L*P logits (columns are (head, level*point));
    # row-wide max is a valid stabilizer (cancels per group), group-sum via a
    # block-diagonal ones matmul keeps everything lane-resident.
    logits = proj[:, OFF_DIM:]                               # [TM, 64]
    m = jnp.max(logits, axis=-1, keepdims=True)
    e = jnp.exp(logits - m)
    denom = jnp.dot(e, gsum_ref[...], preferred_element_type=jnp.float32)
    attn_ref[...] = e * pl.reciprocal(denom, approx=True)


def pallas_projections(q2, qp2, ref2, wv, bv, wcat, bcat, gsum, scale, rb):
    m, d = q2.shape
    row = lambda i: (i, 0)
    fix = lambda i: (0, 0)
    return pl.pallas_call(
        _proj_kernel,
        out_shape=(jax.ShapeDtypeStruct((m, d), jnp.float32),
                   jax.ShapeDtypeStruct((m, OFF_DIM), jnp.float32),
                   jax.ShapeDtypeStruct((m, ATT_DIM), jnp.float32)),
        grid=(pl.cdiv(m, TOKEN_TILE),),
        in_specs=[
            pl.BlockSpec((TOKEN_TILE, d), row),              # query
            pl.BlockSpec((TOKEN_TILE, d), row),              # query_pos
            pl.BlockSpec((TOKEN_TILE, REF_DIM), row),        # reference points
            pl.BlockSpec((d, d), fix),                       # value_proj_w
            pl.BlockSpec((1, d), fix),                       # value_proj_b
            pl.BlockSpec((d, OFF_DIM + ATT_DIM), fix),       # merged proj weight
            pl.BlockSpec((1, OFF_DIM + ATT_DIM), fix),       # merged proj bias
            pl.BlockSpec((ATT_DIM, ATT_DIM), fix),           # group-sum matrix
            pl.BlockSpec((1, OFF_DIM), fix),                 # 1/offset_normalizer
            pl.BlockSpec((REF_DIM, OFF_DIM), fix),           # ref broadcast matrix
        ],
        out_specs=(
            pl.BlockSpec((TOKEN_TILE, d), row),
            pl.BlockSpec((TOKEN_TILE, OFF_DIM), row),
            pl.BlockSpec((TOKEN_TILE, ATT_DIM), row),
        ),
        compiler_params=pltpu.CompilerParams(
            dimension_semantics=("parallel",)),
    )(q2, qp2, ref2, wv, bv, wcat, bcat, gsum, scale, rb)


# ===== Kernel 2: weighted-sum + out_proj + LN1 + FFN + LN2 (fused) =====

def _attn_ffn_kernel(samp_ref, attn_ref, bcast_ref, wo_ref, bo_ref, res_ref,
                     g1_ref, b1_ref, w1_ref, bb1_ref, w2_ref, bb2_ref,
                     g2_ref, b2_ref, o_ref):
    # broadcast attention [TM,64] -> [TM,512] via constant 0/1 matmul (no
    # materialized jnp.repeat in HBM), then lane-dense weighted reduction:
    # the (level,point) sum + output projection are folded into one matmul
    # against the row-tiled output_proj weight.
    attn_b = jnp.dot(attn_ref[...], bcast_ref[...],
                     preferred_element_type=jnp.float32)     # [TM, 512]
    weighted = samp_ref[...] * attn_b                        # [TM, 512]
    x = (jnp.dot(weighted, wo_ref[...], preferred_element_type=jnp.float32)
         + bo_ref[...]) + res_ref[...]                       # + residual (dropout1 = id)

    # LayerNorm1
    mu = jnp.mean(x, axis=-1, keepdims=True)
    var = jnp.mean((x - mu) ** 2, axis=-1, keepdims=True)
    src = (x - mu) * jax.lax.rsqrt(var + LN_EPS) * g1_ref[...] + b1_ref[...]

    # FFN: linear1 -> relu -> linear2 -> +residual -> LayerNorm2
    h = jnp.maximum(
        jnp.dot(src, w1_ref[...], preferred_element_type=jnp.float32)
        + bb1_ref[...], 0.0)
    y = jnp.dot(h, w2_ref[...], preferred_element_type=jnp.float32) + bb2_ref[...]
    z = src + y
    mu2 = jnp.mean(z, axis=-1, keepdims=True)
    var2 = jnp.mean((z - mu2) ** 2, axis=-1, keepdims=True)
    o_ref[...] = (z - mu2) * jax.lax.rsqrt(var2 + LN_EPS) * g2_ref[...] + b2_ref[...]


def pallas_attn_ffn(samp, attn, bcast, wo_big, bo, res,
                    g1, b1, w1, bb1, w2, bb2, g2, b2):
    m, d = res.shape
    dffn = w1.shape[1]
    row = lambda i: (i, 0)
    fix = lambda i: (0, 0)
    return pl.pallas_call(
        _attn_ffn_kernel,
        out_shape=jax.ShapeDtypeStruct((m, d), jnp.float32),
        grid=(pl.cdiv(m, TOKEN_TILE),),
        in_specs=[
            pl.BlockSpec((TOKEN_TILE, SAMP_DIM), row),       # sampled values
            pl.BlockSpec((TOKEN_TILE, ATT_DIM), row),        # attention weights
            pl.BlockSpec((ATT_DIM, SAMP_DIM), fix),          # broadcast matrix
            pl.BlockSpec((SAMP_DIM, d), fix),                # tiled out_proj_w
            pl.BlockSpec((1, d), fix),                       # out_proj_b
            pl.BlockSpec((TOKEN_TILE, d), row),              # residual (query)
            pl.BlockSpec((1, d), fix),                       # norm1 gamma
            pl.BlockSpec((1, d), fix),                       # norm1 beta
            pl.BlockSpec((d, dffn), fix),                    # lin1_w
            pl.BlockSpec((1, dffn), fix),                    # lin1_b
            pl.BlockSpec((dffn, d), fix),                    # lin2_w
            pl.BlockSpec((1, d), fix),                       # lin2_b
            pl.BlockSpec((1, d), fix),                       # norm2 gamma
            pl.BlockSpec((1, d), fix),                       # norm2 beta
        ],
        out_specs=pl.BlockSpec((TOKEN_TILE, d), row),
        compiler_params=pltpu.CompilerParams(
            dimension_semantics=("parallel",)),
    )(samp, attn, bcast, wo_big, bo, res, g1, b1, w1, bb1, w2, bb2, g2, b2)


# ================= JAX glue: bilinear multi-scale sampling =================
# TODO(synk): data-dependent bilinear gather (grid_sample) has no clean Pallas
# TPU equivalent without a DMA-gather / one-hot-matmul rewrite; kept in plain
# JAX but with all 4 bilinear taps stacked into ONE take_along_axis gather.

def ms_deform_sample(value, spatial_shapes, level_start_index, sampling_locations):
    """value: [bs, Len, H, hd]; sampling_locations: [bs, Lq, H, L, P, 2] in [0,1].
    Returns [bs, Lq, H, L, P, hd] matching F.grid_sample(align_corners=False,
    padding_mode='zeros')."""
    bs, Len, H, hd = value.shape
    _, Lq, _, L, P, _ = sampling_locations.shape

    val = value.transpose(0, 2, 1, 3)                          # [bs, H, Len, hd]
    Wf = spatial_shapes[:, 1].astype(jnp.float32)[None, None, None, :, None]
    Hf = spatial_shapes[:, 0].astype(jnp.float32)[None, None, None, :, None]
    Wi = spatial_shapes[:, 1].astype(jnp.int32)[None, None, None, :, None]
    starts = level_start_index.astype(jnp.int32)[None, None, None, :, None]

    loc = sampling_locations.transpose(0, 2, 1, 3, 4, 5)       # [bs, H, Lq, L, P, 2]
    ix = loc[..., 0] * Wf - 0.5
    iy = loc[..., 1] * Hf - 0.5
    ix0 = jnp.floor(ix)
    iy0 = jnp.floor(iy)
    tx = ix - ix0
    ty = iy - iy0

    # stack the four bilinear taps on a new axis -> a single gather
    ixs = jnp.stack([ix0, ix0 + 1.0, ix0, ix0 + 1.0], axis=2)  # [bs,H,4,Lq,L,P]
    iys = jnp.stack([iy0, iy0, iy0 + 1.0, iy0 + 1.0], axis=2)
    ws = jnp.stack([(1 - ty) * (1 - tx), (1 - ty) * tx,
                    ty * (1 - tx), ty * tx], axis=2)

    Wf4, Hf4 = Wf[:, :, None], Hf[:, :, None]                  # [1,1,1,1,L,1]
    Wi4, starts4 = Wi[:, :, None], starts[:, :, None]

    valid = (ixs >= 0) & (ixs <= Wf4 - 1) & (iys >= 0) & (iys <= Hf4 - 1)
    ixc = jnp.clip(ixs, 0.0, Wf4 - 1.0).astype(jnp.int32)
    iyc = jnp.clip(iys, 0.0, Hf4 - 1.0).astype(jnp.int32)
    flat = (starts4 + iyc * Wi4 + ixc).reshape(bs, H, 4 * Lq * L * P)
    idx = jnp.broadcast_to(flat[..., None], (bs, H, 4 * Lq * L * P, hd))
    g = jnp.take_along_axis(val, idx, axis=2)                  # [bs,H,4*Lq*L*P,hd]
    wgt = (ws * valid.astype(jnp.float32)).reshape(bs, H, 4 * Lq * L * P, 1)
    out = (g * wgt).reshape(bs, H, 4, Lq, L, P, hd).sum(axis=2)
    return out.transpose(0, 2, 1, 3, 4, 5)                     # [bs, Lq, H, L, P, hd]


# ================= full layer forward =================

@jax.jit
def encoder_layer_forward(params, query, key, value, query_pos, reference_points,
                          spatial_shapes, level_start_index, key_padding_mask=None):
    # NOTE: as in the PyTorch forward, `key`/`value` args are unused;
    # MSDeformAttn attends over `query` itself (input_flatten = query).
    del key, value
    bs, Lq, d = query.shape
    H, L, P, hd = N_HEADS, N_LEVELS, N_POINTS, HEAD_DIM
    M = bs * Lq

    q2 = query.reshape(M, d)
    qp2 = query_pos.reshape(M, d)
    ref2 = reference_points.reshape(M, REF_DIM)                 # (l, xy) layout

    # constants for the fused kernels (tiny; fused/folded by XLA)
    wcat = jnp.concatenate([params['samp_off_w'], params['attn_w']], axis=1)
    bcat = jnp.concatenate([params['samp_off_b'], params['attn_b']],
                           axis=0).reshape(1, OFF_DIM + ATT_DIM)
    gsum = jnp.kron(jnp.eye(H, dtype=jnp.float32),
                    jnp.ones((LP, LP), jnp.float32))            # [64, 64]
    norm = jnp.stack([spatial_shapes[:, 1], spatial_shapes[:, 0]],
                     axis=-1).astype(jnp.float32)               # [L, 2] = (W, H)
    scale = jnp.broadcast_to((1.0 / norm)[None, :, None, :],
                             (H, L, P, 2)).reshape(1, OFF_DIM)
    # reference broadcast [REF_DIM, OFF_DIM]: (l, xy) -> (h, l, p, xy)
    ref_bcast = jnp.kron(
        jnp.ones((1, H), jnp.float32),
        jnp.kron(jnp.eye(L, dtype=jnp.float32),
                 jnp.kron(jnp.ones((1, P), jnp.float32),
                          jnp.eye(2, dtype=jnp.float32))))      # [8, 128]

    # ----- fused pre-gather kernel (emits sampling LOCATIONS directly) -----
    v2, loc2, attn2 = pallas_projections(
        q2, qp2, ref2,
        params['value_proj_w'], params['value_proj_b'].reshape(1, d),
        wcat, bcat, gsum, scale, ref_bcast)

    value4 = v2.reshape(bs, Lq, H, hd)
    if key_padding_mask is not None:
        value4 = jnp.where(key_padding_mask[:, :, None, None], 0.0, value4)

    sampling_locations = loc2.reshape(bs, Lq, H, L, P, 2)
    sampled = ms_deform_sample(value4, spatial_shapes, level_start_index,
                               sampling_locations)              # [bs,Lq,H,L,P,hd]
    samp_flat = sampled.reshape(M, SAMP_DIM)                    # (h, l, p, c) order

    # broadcast / output-proj constants matching the (h, l, p, c) layout
    bcast = jnp.kron(jnp.eye(ATT_DIM, dtype=jnp.float32),
                     jnp.ones((1, hd), jnp.float32))            # [64, 512]
    wo_big = jnp.broadcast_to(
        params['out_proj_w'].reshape(H, 1, hd, d),
        (H, LP, hd, d)).reshape(SAMP_DIM, d)                    # [512, 32]

    # ----- fused post-gather kernel (attn-out + LN1 + FFN + LN2) -----
    out2 = pallas_attn_ffn(
        samp_flat, attn2, bcast, wo_big,
        params['out_proj_b'].reshape(1, d), q2,
        params['norm1_g'].reshape(1, d), params['norm1_b'].reshape(1, d),
        params['lin1_w'], params['lin1_b'].reshape(1, D_FFN),
        params['lin2_w'], params['lin2_b'].reshape(1, d),
        params['norm2_g'].reshape(1, d), params['norm2_b'].reshape(1, d))
    return out2.reshape(bs, Lq, d)


# ================= main =================

if __name__ == "__main__":
    key0 = jax.random.PRNGKey(0)
    ks = jax.random.split(key0, 20)

    spatial_shapes_list = [(8, 8), (4, 4), (2, 2), (1, 1)]
    spatial_shapes = jnp.array(spatial_shapes_list, dtype=jnp.int32)
    sizes = spatial_shapes[:, 0] * spatial_shapes[:, 1]
    level_start_index = jnp.concatenate(
        [jnp.zeros((1,), jnp.int32), jnp.cumsum(sizes)[:-1].astype(jnp.int32)])
    Lq = int(sum(h * w for h, w in spatial_shapes_list))   # 85
    bs = 2

    def w(k, shape, scale=0.05):
        return scale * jax.random.normal(k, shape, dtype=jnp.float32)

    params = {
        'value_proj_w': w(ks[0], (D_MODEL, D_MODEL)),
        'value_proj_b': w(ks[1], (D_MODEL,)),
        'samp_off_w': w(ks[2], (D_MODEL, N_HEADS * N_LEVELS * N_POINTS * 2)),
        'samp_off_b': w(ks[3], (N_HEADS * N_LEVELS * N_POINTS * 2,)),
        'attn_w': w(ks[4], (D_MODEL, N_HEADS * N_LEVELS * N_POINTS)),
        'attn_b': w(ks[5], (N_HEADS * N_LEVELS * N_POINTS,)),
        'out_proj_w': w(ks[6], (D_MODEL, D_MODEL)),
        'out_proj_b': w(ks[7], (D_MODEL,)),
        'norm1_g': jnp.ones((D_MODEL,), jnp.float32),
        'norm1_b': jnp.zeros((D_MODEL,), jnp.float32),
        'lin1_w': w(ks[8], (D_MODEL, D_FFN)),
        'lin1_b': w(ks[9], (D_FFN,)),
        'lin2_w': w(ks[10], (D_FFN, D_MODEL)),
        'lin2_b': w(ks[11], (D_MODEL,)),
        'norm2_g': jnp.ones((D_MODEL,), jnp.float32),
        'norm2_b': jnp.zeros((D_MODEL,), jnp.float32),
    }

    query = w(ks[12], (bs, Lq, D_MODEL), scale=1.0)
    query_pos = w(ks[13], (bs, Lq, D_MODEL), scale=1.0)
    reference_points = jax.random.uniform(
        ks[14], (bs, Lq, N_LEVELS, 2), dtype=jnp.float32)

    out = encoder_layer_forward(
        params, query, query, query, query_pos, reference_points,
        spatial_shapes, level_start_index, key_padding_mask=None)
    out = jax.block_until_ready(out)

    assert out.shape == (bs, Lq, D_MODEL), out.shape
    assert bool(jnp.all(jnp.isfinite(out)))
    print("KERNEL_OK")
</pallas_src>

<mosaic_0001>
module attributes {stable_mosaic.version = 11 : i64} {
  func.func @_proj_kernel(%arg0: i32, %arg1: memref<128x32xf32, #tpu.memory_space<vmem>>, %arg2: memref<128x32xf32, #tpu.memory_space<vmem>>, %arg3: memref<128x8xf32, #tpu.memory_space<vmem>>, %arg4: memref<32x32xf32, #tpu.memory_space<vmem>>, %arg5: memref<1x32xf32, #tpu.memory_space<vmem>>, %arg6: memref<32x192xf32, #tpu.memory_space<vmem>>, %arg7: memref<1x192xf32, #tpu.memory_space<vmem>>, %arg8: memref<64x64xf32, #tpu.memory_space<vmem>>, %arg9: memref<1x128xf32, #tpu.memory_space<vmem>>, %arg10: memref<8x128xf32, #tpu.memory_space<vmem>>, %arg11: memref<128x32xf32, #tpu.memory_space<vmem>>, %arg12: memref<128x128xf32, #tpu.memory_space<vmem>>, %arg13: memref<128x64xf32, #tpu.memory_space<vmem>>) attributes {dimension_semantics = [#tpu.dimension_semantics<parallel>], iteration_bounds = array<i64: 2>, scalar_prefetch = 0 : i64, scratch_operands = 0 : i64, tpu.core_type = #tpu.core_type<tc>, window_params = [{transform_indices = @transform_0, window_bounds = array<i64: 128, 32>}, {transform_indices = @transform_1, window_bounds = array<i64: 128, 32>}, {transform_indices = @transform_2, window_bounds = array<i64: 128, 8>}, {pipeline_mode = #tpu.pipeline_mode<synchronous>, transform_indices = @transform_3, window_bounds = array<i64: 32, 32>}, {pipeline_mode = #tpu.pipeline_mode<synchronous>, transform_indices = @transform_4, window_bounds = array<i64: 1, 32>}, {pipeline_mode = #tpu.pipeline_mode<synchronous>, transform_indices = @transform_5, window_bounds = array<i64: 32, 192>}, {pipeline_mode = #tpu.pipeline_mode<synchronous>, transform_indices = @transform_6, window_bounds = array<i64: 1, 192>}, {pipeline_mode = #tpu.pipeline_mode<synchronous>, transform_indices = @transform_7, window_bounds = array<i64: 64, 64>}, {pipeline_mode = #tpu.pipeline_mode<synchronous>, transform_indices = @transform_8, window_bounds = array<i64: 1, 128>}, {pipeline_mode = #tpu.pipeline_mode<synchronous>, transform_indices = @transform_9, window_bounds = array<i64: 8, 128>}, {transform_indices = @transform_10, window_bounds = array<i64: 128, 32>}, {transform_indices = @transform_11, window_bounds = array<i64: 128, 128>}, {transform_indices = @transform_12, window_bounds = array<i64: 128, 64>}]} {
    %c0 = arith.constant 0 : index
    %c0_0 = arith.constant 0 : index
    %0 = vector.load %arg1[%c0, %c0_0] : memref<128x32xf32, #tpu.memory_space<vmem>>, vector<128x32xf32>
    %c0_1 = arith.constant 0 : index
    %c0_2 = arith.constant 0 : index
    %1 = vector.load %arg2[%c0_1, %c0_2] : memref<128x32xf32, #tpu.memory_space<vmem>>, vector<128x32xf32>
    %2 = arith.addf %0, %1 : vector<128x32xf32>
    %c0_3 = arith.constant 0 : index
    %c0_4 = arith.constant 0 : index
    %3 = vector.load %arg4[%c0_3, %c0_4] : memref<32x32xf32, #tpu.memory_space<vmem>>, vector<32x32xf32>
    %cst = arith.constant dense<0.000000e+00> : vector<128x32xf32>
    %4 = tpu.matmul %0, %3, %cst {dimension_numbers = #tpu.dot_dimension_numbers<[1], [0], [0], [1], [0, 0, 1, 1], [], []>} : vector<128x32xf32>, vector<32x32xf32>, vector<128x32xf32> -> vector<128x32xf32>
    %c0_5 = arith.constant 0 : index
    %c0_6 = arith.constant 0 : index
    %5 = vector.load %arg5[%c0_5, %c0_6] : memref<1x32xf32, #tpu.memory_space<vmem>>, vector<1x32xf32>
    %6 = vector.broadcast %5 : vector<1x32xf32> to vector<128x32xf32>
    %7 = arith.addf %4, %6 : vector<128x32xf32>
    %c0_7 = arith.constant 0 : index
    %c0_8 = arith.constant 0 : index
    %8 = vector.load %arg11[%c0_7, %c0_8] : memref<128x32xf32, #tpu.memory_space<vmem>>, vector<128x32xf32>
    tpu.vector_store %arg11[%c0_7, %c0_8], %7 {strides = array<i32>} : memref<128x32xf32, #tpu.memory_space<vmem>>, vector<128x32xf32>,
    %c0_9 = arith.constant 0 : index
    %c0_10 = arith.constant 0 : index
    %9 = vector.load %arg6[%c0_9, %c0_10] : memref<32x192xf32, #tpu.memory_space<vmem>>, vector<32x192xf32>
    %cst_11 = arith.constant dense<0.000000e+00> : vector<128x192xf32>
    %10 = tpu.matmul %2, %9, %cst_11 {dimension_numbers = #tpu.dot_dimension_numbers<[1], [0], [0], [1], [0, 0, 1, 1], [], []>} : vector<128x32xf32>, vector<32x192xf32>, vector<128x192xf32> -> vector<128x192xf32>
    %c0_12 = arith.constant 0 : index
    %c0_13 = arith.constant 0 : index
    %11 = vector.load %arg7[%c0_12, %c0_13] : memref<1x192xf32, #tpu.memory_space<vmem>>, vector<1x192xf32>
    %12 = vector.broadcast %11 : vector<1x192xf32> to vector<128x192xf32>
    %13 = arith.addf %10, %12 : vector<128x192xf32>
    %14 = vector.extract_strided_slice %13 {offsets = [0, 0], sizes = [128, 128], strides = [1, 1]} : vector<128x192xf32> to vector<128x128xf32>
    %c0_14 = arith.constant 0 : index
    %c0_15 = arith.constant 0 : index
    %15 = vector.load %arg9[%c0_14, %c0_15] : memref<1x128xf32, #tpu.memory_space<vmem>>, vector<1x128xf32>
    %16 = vector.broadcast %15 : vector<1x128xf32> to vector<128x128xf32>
    %17 = arith.mulf %14, %16 : vector<128x128xf32>
    %c0_16 = arith.constant 0 : index
    %c0_17 = arith.constant 0 : index
    %18 = vector.load %arg3[%c0_16, %c0_17] : memref<128x8xf32, #tpu.memory_space<vmem>>, vector<128x8xf32>
    %c0_18 = arith.constant 0 : index
    %c0_19 = arith.constant 0 : index
    %19 = vector.load %arg10[%c0_18, %c0_19] : memref<8x128xf32, #tpu.memory_space<vmem>>, vector<8x128xf32>
    %cst_20 = arith.constant dense<0.000000e+00> : vector<128x128xf32>
    %20 = tpu.matmul %18, %19, %cst_20 {dimension_numbers = #tpu.dot_dimension_numbers<[1], [0], [0], [1], [0, 0, 1, 1], [], []>} : vector<128x8xf32>, vector<8x128xf32>, vector<128x128xf32> -> vector<128x128xf32>
    %21 = arith.addf %17, %20 : vector<128x128xf32>
    %c0_21 = arith.constant 0 : index
    %c0_22 = arith.constant 0 : index
    %22 = vector.load %arg12[%c0_21, %c0_22] : memref<128x128xf32, #tpu.memory_space<vmem>>, vector<128x128xf32>
    tpu.vector_store %arg12[%c0_21, %c0_22], %21 {strides = array<i32>} : memref<128x128xf32, #tpu.memory_space<vmem>>, vector<128x128xf32>,
    %23 = vector.extract_strided_slice %13 {offsets = [0, 128], sizes = [128, 64], strides = [1, 1]} : vector<128x192xf32> to vector<128x64xf32>
    %cst_23 = arith.constant dense<0xFF800000> : vector<128xf32>
    %24 = vector.multi_reduction <maximumf>, %23, %cst_23 [1] : vector<128x64xf32> to vector<128xf32>
    %25 = vector.shape_cast %24 : vector<128xf32> to vector<128x1xf32>
    %26 = vector.broadcast %25 : vector<128x1xf32> to vector<128x64xf32>
    %27 = arith.subf %23, %26 : vector<128x64xf32>
    %28 = math.exp %27 : vector<128x64xf32>
    %c0_24 = arith.constant 0 : index
    %c0_25 = arith.constant 0 : index
    %29 = vector.load %arg8[%c0_24, %c0_25] : memref<64x64xf32, #tpu.memory_space<vmem>>, vector<64x64xf32>
    %cst_26 = arith.constant dense<0.000000e+00> : vector<128x64xf32>
    %30 = tpu.matmul %28, %29, %cst_26 {dimension_numbers = #tpu.dot_dimension_numbers<[1], [0], [0], [1], [0, 0, 1, 1], [], []>} : vector<128x64xf32>, vector<64x64xf32>, vector<128x64xf32> -> vector<128x64xf32>
    %31 = tpu.reciprocal %30 {approx = true} : vector<128x64xf32> -> vector<128x64xf32>
    %32 = arith.mulf %28, %31 : vector<128x64xf32>
    %c0_27 = arith.constant 0 : index
    %c0_28 = arith.constant 0 : index
    %33 = vector.load %arg13[%c0_27, %c0_28] : memref<128x64xf32, #tpu.memory_space<vmem>>, vector<128x64xf32>
    tpu.vector_store %arg13[%c0_27, %c0_28], %32 {strides = array<i32>} : memref<128x64xf32, #tpu.memory_space<vmem>>, vector<128x64xf32>,
    return
  }
  func.func @transform_0(%arg0: i32) -> (i32, i32) {
    %c0_i32 = arith.constant 0 : i32
    %c0_i32_0 = arith.constant 0 : i32
    return %arg0, %c0_i32 : i32, i32
  }
  func.func @transform_1(%arg0: i32) -> (i32, i32) {
    %c0_i32 = arith.constant 0 : i32
    %c0_i32_0 = arith.constant 0 : i32
    return %arg0, %c0_i32 : i32, i32
  }
  func.func @transform_2(%arg0: i32) -> (i32, i32) {
    %c0_i32 = arith.constant 0 : i32
    %c0_i32_0 = arith.constant 0 : i32
    return %arg0, %c0_i32 : i32, i32
  }
  func.func @transform_3(%arg0: i32) -> (i32, i32) {
    %c0_i32 = arith.constant 0 : i32
    %c0_i32_0 = arith.constant 0 : i32
    %c0_i32_1 = arith.constant 0 : i32
    return %c0_i32, %c0_i32_0 : i32, i32
  }
  func.func @transform_4(%arg0: i32) -> (i32, i32) {
    %c0_i32 = arith.constant 0 : i32
    %c0_i32_0 = arith.constant 0 : i32
    %c0_i32_1 = arith.constant 0 : i32
    return %c0_i32, %c0_i32_0 : i32, i32
  }
  func.func @transform_5(%arg0: i32) -> (i32, i32) {
    %c0_i32 = arith.constant 0 : i32
    %c0_i32_0 = arith.constant 0 : i32
    %c0_i32_1 = arith.constant 0 : i32
    return %c0_i32, %c0_i32_0 : i32, i32
  }
  func.func @transform_6(%arg0: i32) -> (i32, i32) {
    %c0_i32 = arith.constant 0 : i32
    %c0_i32_0 = arith.constant 0 : i32
    %c0_i32_1 = arith.constant 0 : i32
    return %c0_i32, %c0_i32_0 : i32, i32
  }
  func.func @transform_7(%arg0: i32) -> (i32, i32) {
    %c0_i32 = arith.constant 0 : i32
    %c0_i32_0 = arith.constant 0 : i32
    %c0_i32_1 = arith.constant 0 : i32
    return %c0_i32, %c0_i32_0 : i32, i32
  }
  func.func @transform_8(%arg0: i32) -> (i32, i32) {
    %c0_i32 = arith.constant 0 : i32
    %c0_i32_0 = arith.constant 0 : i32
    %c0_i32_1 = arith.constant 0 : i32
    return %c0_i32, %c0_i32_0 : i32, i32
  }
  func.func @transform_9(%arg0: i32) -> (i32, i32) {
    %c0_i32 = arith.constant 0 : i32
    %c0_i32_0 = arith.constant 0 : i32
    %c0_i32_1 = arith.constant 0 : i32
    return %c0_i32, %c0_i32_0 : i32, i32
  }
  func.func @transform_10(%arg0: i32) -> (i32, i32) {
    %c0_i32 = arith.constant 0 : i32
    %c0_i32_0 = arith.constant 0 : i32
    return %arg0, %c0_i32 : i32, i32
  }
  func.func @transform_11(%arg0: i32) -> (i32, i32) {
    %c0_i32 = arith.constant 0 : i32
    %c0_i32_0 = arith.constant 0 : i32
    return %arg0, %c0_i32 : i32, i32
  }
  func.func @transform_12(%arg0: i32) -> (i32, i32) {
    %c0_i32 = arith.constant 0 : i32
    %c0_i32_0 = arith.constant 0 : i32
    return %arg0, %c0_i32 : i32, i32
  }
}

module attributes {stable_mosaic.version = 11 : i64} {
  func.func @_attn_ffn_kernel(%arg0: i32, %arg1: memref<128x512xf32, #tpu.memory_space<vmem>>, %arg2: memref<128x64xf32, #tpu.memory_space<vmem>>, %arg3: memref<64x512xf32, #tpu.memory_space<vmem>>, %arg4: memref<512x32xf32, #tpu.memory_space<vmem>>, %arg5: memref<1x32xf32, #tpu.memory_space<vmem>>, %arg6: memref<128x32xf32, #tpu.memory_space<vmem>>, %arg7: memref<1x32xf32, #tpu.memory_space<vmem>>, %arg8: memref<1x32xf32, #tpu.memory_space<vmem>>, %arg9: memref<32x64xf32, #tpu.memory_space<vmem>>, %arg10: memref<1x64xf32, #tpu.memory_space<vmem>>, %arg11: memref<64x32xf32, #tpu.memory_space<vmem>>, %arg12: memref<1x32xf32, #tpu.memory_space<vmem>>, %arg13: memref<1x32xf32, #tpu.memory_space<vmem>>, %arg14: memref<1x32xf32, #tpu.memory_space<vmem>>, %arg15: memref<128x32xf32, #tpu.memory_space<vmem>>) attributes {dimension_semantics = [#tpu.dimension_semantics<parallel>], iteration_bounds = array<i64: 2>, scalar_prefetch = 0 : i64, scratch_operands = 0 : i64, tpu.core_type = #tpu.core_type<tc>, window_params = [{transform_indices = @transform_0, window_bounds = array<i64: 128, 512>}, {transform_indices = @transform_1, window_bounds = array<i64: 128, 64>}, {pipeline_mode = #tpu.pipeline_mode<synchronous>, transform_indices = @transform_2, window_bounds = array<i64: 64, 512>}, {pipeline_mode = #tpu.pipeline_mode<synchronous>, transform_indices = @transform_3, window_bounds = array<i64: 512, 32>}, {pipeline_mode = #tpu.pipeline_mode<synchronous>, transform_indices = @transform_4, window_bounds = array<i64: 1, 32>}, {transform_indices = @transform_5, window_bounds = array<i64: 128, 32>}, {pipeline_mode = #tpu.pipeline_mode<synchronous>, transform_indices = @transform_6, window_bounds = array<i64: 1, 32>}, {pipeline_mode = #tpu.pipeline_mode<synchronous>, transform_indices = @transform_7, window_bounds = array<i64: 1, 32>}, {pipeline_mode = #tpu.pipeline_mode<synchronous>, transform_indices = @transform_8, window_bounds = array<i64: 32, 64>}, {pipeline_mode = #tpu.pipeline_mode<synchronous>, transform_indices = @transform_9, window_bounds = array<i64: 1, 64>}, {pipeline_mode = #tpu.pipeline_mode<synchronous>, transform_indices = @transform_10, window_bounds = array<i64: 64, 32>}, {pipeline_mode = #tpu.pipeline_mode<synchronous>, transform_indices = @transform_11, window_bounds = array<i64: 1, 32>}, {pipeline_mode = #tpu.pipeline_mode<synchronous>, transform_indices = @transform_12, window_bounds = array<i64: 1, 32>}, {pipeline_mode = #tpu.pipeline_mode<synchronous>, transform_indices = @transform_13, window_bounds = array<i64: 1, 32>}, {transform_indices = @transform_14, window_bounds = array<i64: 128, 32>}]} {
    %c0 = arith.constant 0 : index
    %c0_0 = arith.constant 0 : index
    %0 = vector.load %arg2[%c0, %c0_0] : memref<128x64xf32, #tpu.memory_space<vmem>>, vector<128x64xf32>
    %c0_1 = arith.constant 0 : index
    %c0_2 = arith.constant 0 : index
    %1 = vector.load %arg3[%c0_1, %c0_2] : memref<64x512xf32, #tpu.memory_space<vmem>>, vector<64x512xf32>
    %cst = arith.constant dense<0.000000e+00> : vector<128x512xf32>
    %2 = tpu.matmul %0, %1, %cst {dimension_numbers = #tpu.dot_dimension_numbers<[1], [0], [0], [1], [0, 0, 1, 1], [], []>} : vector<128x64xf32>, vector<64x512xf32>, vector<128x512xf32> -> vector<128x512xf32>
    %c0_3 = arith.constant 0 : index
    %c0_4 = arith.constant 0 : index
    %3 = vector.load %arg1[%c0_3, %c0_4] : memref<128x512xf32, #tpu.memory_space<vmem>>, vector<128x512xf32>
    %4 = arith.mulf %3, %2 : vector<128x512xf32>
    %c0_5 = arith.constant 0 : index
    %c0_6 = arith.constant 0 : index
    %5 = vector.load %arg4[%c0_5, %c0_6] : memref<512x32xf32, #tpu.memory_space<vmem>>, vector<512x32xf32>
    %cst_7 = arith.constant dense<0.000000e+00> : vector<128x32xf32>
    %6 = tpu.matmul %4, %5, %cst_7 {dimension_numbers = #tpu.dot_dimension_numbers<[1], [0], [0], [1], [0, 0, 1, 1], [], []>} : vector<128x512xf32>, vector<512x32xf32>, vector<128x32xf32> -> vector<128x32xf32>
    %c0_8 = arith.constant 0 : index
    %c0_9 = arith.constant 0 : index
    %7 = vector.load %arg5[%c0_8, %c0_9] : memref<1x32xf32, #tpu.memory_space<vmem>>, vector<1x32xf32>
    %8 = vector.broadcast %7 : vector<1x32xf32> to vector<128x32xf32>
    %9 = arith.addf %6, %8 : vector<128x32xf32>
    %c0_10 = arith.constant 0 : index
    %c0_11 = arith.constant 0 : index
    %10 = vector.load %arg6[%c0_10, %c0_11] : memref<128x32xf32, #tpu.memory_space<vmem>>, vector<128x32xf32>
    %11 = arith.addf %9, %10 : vector<128x32xf32>
    %cst_12 = arith.constant dense<0.000000e+00> : vector<128xf32>
    %12 = vector.multi_reduction <add>, %11, %cst_12 [1] : vector<128x32xf32> to vector<128xf32>
    %13 = vector.shape_cast %12 : vector<128xf32> to vector<128x1xf32>
    %cst_13 = arith.constant 3.200000e+01 : f32
    %14 = vector.broadcast %cst_13 : f32 to vector<128x1xf32>
    %15 = arith.divf %13, %14 : vector<128x1xf32>
    %16 = vector.broadcast %15 : vector<128x1xf32> to vector<128x32xf32>
    %17 = arith.subf %11, %16 : vector<128x32xf32>
    %18 = arith.mulf %17, %17 : vector<128x32xf32>
    %cst_14 = arith.constant dense<0.000000e+00> : vector<128xf32>
    %19 = vector.multi_reduction <add>, %18, %cst_14 [1] : vector<128x32xf32> to vector<128xf32>
    %20 = vector.shape_cast %19 : vector<128xf32> to vector<128x1xf32>
    %cst_15 = arith.constant 3.200000e+01 : f32
    %21 = vector.broadcast %cst_15 : f32 to vector<128x1xf32>
    %22 = arith.divf %20, %21 : vector<128x1xf32>
    %23 = vector.broadcast %15 : vector<128x1xf32> to vector<128x32xf32>
    %24 = arith.subf %11, %23 : vector<128x32xf32>
    %cst_16 = arith.constant 9.99999974E-6 : f32
    %25 = vector.broadcast %cst_16 : f32 to vector<128x1xf32>
    %26 = arith.addf %22, %25 : vector<128x1xf32>
    %27 = math.rsqrt %26 : vector<128x1xf32>
    %28 = vector.broadcast %27 : vector<128x1xf32> to vector<128x32xf32>
    %29 = arith.mulf %24, %28 : vector<128x32xf32>
    %c0_17 = arith.constant 0 : index
    %c0_18 = arith.constant 0 : index
    %30 = vector.load %arg7[%c0_17, %c0_18] : memref<1x32xf32, #tpu.memory_space<vmem>>, vector<1x32xf32>
    %31 = vector.broadcast %30 : vector<1x32xf32> to vector<128x32xf32>
    %32 = arith.mulf %29, %31 : vector<128x32xf32>
    %c0_19 = arith.constant 0 : index
    %c0_20 = arith.constant 0 : index
    %33 = vector.load %arg8[%c0_19, %c0_20] : memref<1x32xf32, #tpu.memory_space<vmem>>, vector<1x32xf32>
    %34 = vector.broadcast %33 : vector<1x32xf32> to vector<128x32xf32>
    %35 = arith.addf %32, %34 : vector<128x32xf32>
    %c0_21 = arith.constant 0 : index
    %c0_22 = arith.constant 0 : index
    %36 = vector.load %arg9[%c0_21, %c0_22] : memref<32x64xf32, #tpu.memory_space<vmem>>, vector<32x64xf32>
    %cst_23 = arith.constant dense<0.000000e+00> : vector<128x64xf32>
    %37 = tpu.matmul %35, %36, %cst_23 {dimension_numbers = #tpu.dot_dimension_numbers<[1], [0], [0], [1], [0, 0, 1, 1], [], []>} : vector<128x32xf32>, vector<32x64xf32>, vector<128x64xf32> -> vector<128x64xf32>
    %c0_24 = arith.constant 0 : index
    %c0_25 = arith.constant 0 : index
    %38 = vector.load %arg10[%c0_24, %c0_25] : memref<1x64xf32, #tpu.memory_space<vmem>>, vector<1x64xf32>
    %39 = vector.broadcast %38 : vector<1x64xf32> to vector<128x64xf32>
    %40 = arith.addf %37, %39 : vector<128x64xf32>
    %cst_26 = arith.constant 0.000000e+00 : f32
    %41 = vector.broadcast %cst_26 : f32 to vector<128x64xf32>
    %42 = arith.maximumf %40, %41 : vector<128x64xf32>
    %c0_27 = arith.constant 0 : index
    %c0_28 = arith.constant 0 : index
    %43 = vector.load %arg11[%c0_27, %c0_28] : memref<64x32xf32, #tpu.memory_space<vmem>>, vector<64x32xf32>
    %cst_29 = arith.constant dense<0.000000e+00> : vector<128x32xf32>
    %44 = tpu.matmul %42, %43, %cst_29 {dimension_numbers = #tpu.dot_dimension_numbers<[1], [0], [0], [1], [0, 0, 1, 1], [], []>} : vector<128x64xf32>, vector<64x32xf32>, vector<128x32xf32> -> vector<128x32xf32>
    %c0_30 = arith.constant 0 : index
    %c0_31 = arith.constant 0 : index
    %45 = vector.load %arg12[%c0_30, %c0_31] : memref<1x32xf32, #tpu.memory_space<vmem>>, vector<1x32xf32>
    %46 = vector.broadcast %45 : vector<1x32xf32> to vector<128x32xf32>
    %47 = arith.addf %44, %46 : vector<128x32xf32>
    %48 = arith.addf %35, %47 : vector<128x32xf32>
    %cst_32 = arith.constant dense<0.000000e+00> : vector<128xf32>
    %49 = vector.multi_reduction <add>, %48, %cst_32 [1] : vector<128x32xf32> to vector<128xf32>
    %50 = vector.shape_cast %49 : vector<128xf32> to vector<128x1xf32>
    %cst_33 = arith.constant 3.200000e+01 : f32
    %51 = vector.broadcast %cst_33 : f32 to vector<128x1xf32>
    %52 = arith.divf %50, %51 : vector<128x1xf32>
    %53 = vector.broadcast %52 : vector<128x1xf32> to vector<128x32xf32>
    %54 = arith.subf %48, %53 : vector<128x32xf32>
    %55 = arith.mulf %54, %54 : vector<128x32xf32>
    %cst_34 = arith.constant dense<0.000000e+00> : vector<128xf32>
    %56 = vector.multi_reduction <add>, %55, %cst_34 [1] : vector<128x32xf32> to vector<128xf32>
    %57 = vector.shape_cast %56 : vector<128xf32> to vector<128x1xf32>
    %cst_35 = arith.constant 3.200000e+01 : f32
    %58 = vector.broadcast %cst_35 : f32 to vector<128x1xf32>
    %59 = arith.divf %57, %58 : vector<128x1xf32>
    %60 = vector.broadcast %52 : vector<128x1xf32> to vector<128x32xf32>
    %61 = arith.subf %48, %60 : vector<128x32xf32>
    %cst_36 = arith.constant 9.99999974E-6 : f32
    %62 = vector.broadcast %cst_36 : f32 to vector<128x1xf32>
    %63 = arith.addf %59, %62 : vector<128x1xf32>
    %64 = math.rsqrt %63 : vector<128x1xf32>
    %65 = vector.broadcast %64 : vector<128x1xf32> to vector<128x32xf32>
    %66 = arith.mulf %61, %65 : vector<128x32xf32>
    %c0_37 = arith.constant 0 : index
    %c0_38 = arith.constant 0 : index
    %67 = vector.load %arg13[%c0_37, %c0_38] : memref<1x32xf32, #tpu.memory_space<vmem>>, vector<1x32xf32>
    %68 = vector.broadcast %67 : vector<1x32xf32> to vector<128x32xf32>
    %69 = arith.mulf %66, %68 : vector<128x32xf32>
    %c0_39 = arith.constant 0 : index
    %c0_40 = arith.constant 0 : index
    %70 = vector.load %arg14[%c0_39, %c0_40] : memref<1x32xf32, #tpu.memory_space<vmem>>, vector<1x32xf32>
    %71 = vector.broadcast %70 : vector<1x32xf32> to vector<128x32xf32>
    %72 = arith.addf %69, %71 : vector<128x32xf32>
    %c0_41 = arith.constant 0 : index
    %c0_42 = arith.constant 0 : index
    %73 = vector.load %arg15[%c0_41, %c0_42] : memref<128x32xf32, #tpu.memory_space<vmem>>, vector<128x32xf32>
    tpu.vector_store %arg15[%c0_41, %c0_42], %72 {strides = array<i32>} : memref<128x32xf32, #tpu.memory_space<vmem>>, vector<128x32xf32>,
    return
  }
  func.func @transform_0(%arg0: i32) -> (i32, i32) {
    %c0_i32 = arith.constant 0 : i32
    %c0_i32_0 = arith.constant 0 : i32
    return %arg0, %c0_i32 : i32, i32
  }
  func.func @transform_1(%arg0: i32) -> (i32, i32) {
    %c0_i32 = arith.constant 0 : i32
    %c0_i32_0 = arith.constant 0 : i32
    return %arg0, %c0_i32 : i32, i32
  }
  func.func @transform_2(%arg0: i32) -> (i32, i32) {
    %c0_i32 = arith.constant 0 : i32
    %c0_i32_0 = arith.constant 0 : i32
    %c0_i32_1 = arith.constant 0 : i32
    return %c0_i32, %c0_i32_0 : i32, i32
  }
  func.func @transform_3(%arg0: i32) -> (i32, i32) {
    %c0_i32 = arith.constant 0 : i32
    %c0_i32_0 = arith.constant 0 : i32
    %c0_i32_1 = arith.constant 0 : i32
    return %c0_i32, %c0_i32_0 : i32, i32
  }
  func.func @transform_4(%arg0: i32) -> (i32, i32) {
    %c0_i32 = arith.constant 0 : i32
    %c0_i32_0 = arith.constant 0 : i32
    %c0_i32_1 = arith.constant 0 : i32
    return %c0_i32, %c0_i32_0 : i32, i32
  }
  func.func @transform_5(%arg0: i32) -> (i32, i32) {
    %c0_i32 = arith.constant 0 : i32
    %c0_i32_0 = arith.constant 0 : i32
    return %arg0, %c0_i32 : i32, i32
  }
  func.func @transform_6(%arg0: i32) -> (i32, i32) {
    %c0_i32 = arith.constant 0 : i32
    %c0_i32_0 = arith.constant 0 : i32
    %c0_i32_1 = arith.constant 0 : i32
    return %c0_i32, %c0_i32_0 : i32, i32
  }
  func.func @transform_7(%arg0: i32) -> (i32, i32) {
    %c0_i32 = arith.constant 0 : i32
    %c0_i32_0 = arith.constant 0 : i32
    %c0_i32_1 = arith.constant 0 : i32
    return %c0_i32, %c0_i32_0 : i32, i32
  }
  func.func @transform_8(%arg0: i32) -> (i32, i32) {
    %c0_i32 = arith.constant 0 : i32
    %c0_i32_0 = arith.constant 0 : i32
    %c0_i32_1 = arith.constant 0 : i32
    return %c0_i32, %c0_i32_0 : i32, i32
  }
  func.func @transform_9(%arg0: i32) -> (i32, i32) {
    %c0_i32 = arith.constant 0 : i32
    %c0_i32_0 = arith.constant 0 : i32
    %c0_i32_1 = arith.constant 0 : i32
    return %c0_i32, %c0_i32_0 : i32, i32
  }
  func.func @transform_10(%arg0: i32) -> (i32, i32) {
    %c0_i32 = arith.constant 0 : i32
    %c0_i32_0 = arith.constant 0 : i32
    %c0_i32_1 = arith.constant 0 : i32
    return %c0_i32, %c0_i32_0 : i32, i32
  }
  func.func @transform_11(%arg0: i32) -> (i32, i32) {
    %c0_i32 = arith.constant 0 : i32
    %c0_i32_0 = arith.constant 0 : i32
    %c0_i32_1 = arith.constant 0 : i32
    return %c0_i32, %c0_i32_0 : i32, i32
  }
  func.func @transform_12(%arg0: i32) -> (i32, i32) {
    %c0_i32 = arith.constant 0 : i32
    %c0_i32_0 = arith.constant 0 : i32
    %c0_i32_1 = arith.constant 0 : i32
    return %c0_i32, %c0_i32_0 : i32, i32
  }
  func.func @transform_13(%arg0: i32) -> (i32, i32) {
    %c0_i32 = arith.constant 0 : i32
    %c0_i32_0 = arith.constant 0 : i32
    %c0_i32_1 = arith.constant 0 : i32
    return %c0_i32, %c0_i32_0 : i32, i32
  }
  func.func @transform_14(%arg0: i32) -> (i32, i32) {
    %c0_i32 = arith.constant 0 : i32
    %c0_i32_0 = arith.constant 0 : i32
    return %arg0, %c0_i32 : i32, i32
  }
}

</mosaic_0001>

<llo_original>
// kernel: encoder_layer_forward.2
$region0: #{encoder_layer_forward.2}
  #allocation0 [shape = 'u32[]', space=smem, size = 0x4, offset = 0x4, fixed_abs, tag = 'smem constant byte address 0x4 - core index']
  #allocation1 [shape = 'u32[72,128]{1,0:T(1,128)}', space=vmem, size = 0x9000, scoped, tag = 'internal scratch']
  %s0 = inlined_call_operand.vmem [shape: f32[170,32], index: 0, kind: input, shape index: {}]
  %s1 = inlined_call_operand.vmem [shape: f32[170,32], index: 1, kind: input, shape index: {}]
  %s2 = inlined_call_operand.vmem [shape: f32[170,8], index: 2, kind: input, shape index: {}]
  %s3 = inlined_call_operand.hbm [shape: f32[32,32], index: 3, kind: input, shape index: {}]
  %s4 = inlined_call_operand.hbm [shape: f32[1,32], index: 4, kind: input, shape index: {}]
  %s5 = inlined_call_operand.vmem [shape: f32[32,192], index: 5, kind: input, shape index: {}]
  %s6 = inlined_call_operand.vmem [shape: f32[1,192], index: 6, kind: input, shape index: {}]
  %s7 = inlined_call_operand.vmem [shape: f32[64,64], index: 7, kind: input, shape index: {}]
  %s8 = inlined_call_operand.vmem [shape: f32[1,128], index: 8, kind: input, shape index: {}]
  %s9 = inlined_call_operand.vmem [shape: f32[8,128], index: 9, kind: input, shape index: {}]
  %s10 = inlined_call_operand.vmem [shape: f32[170,32], index: 10, kind: output, shape index: {0}]
  %s11 = inlined_call_operand.vmem [shape: f32[170,128], index: 11, kind: output, shape index: {1}]
  %s12 = inlined_call_operand.hbm [shape: f32[170,64], index: 12, kind: output, shape index: {2}]
  %13 = xla_tuple %s10, %s11, %s12
  %s14 = sld [smem:[#allocation0]]
  $region193: #{encoder_layer_forward.2} parent=0
    _
  %s16 = ssub.s32 1, %s14
  %s17 = scalar_select 0, %s16, %s14
  $region1: #{encoder_layer_forward.2} parent=0
    #allocation2 [shape = 'u8[16384]{0}', space=vmem, size = 0x4000, scoped, tag = 'input window, operand 3, single buffered']
    #allocation3 [shape = 's32[2]{0}', space=sflag, size = 0x8, scoped, tag = 'scoped memory for encoder_layer_forward.2']
    #allocation4 [shape = 's32[2]{0}', space=sflag, size = 0x8, scoped, tag = 'scoped memory for encoder_layer_forward.2']
    #allocation5 [shape = 'u8[512]{0}', space=vmem, size = 0x400, scoped, tag = 'input window, operand 4, single buffered']
    #allocation6 [shape = 's32[1]{0}', space=sflag, size = 0x4, scoped, tag = 'scoped memory for encoder_layer_forward.2']
    #allocation7 [shape = 'u8[131072]{0}', space=vmem, size = 0x20000, scoped, tag = 'output window, operand 0']
    #allocation8 [shape = 'u8[131072]{0}', space=vmem, size = 0x20000, scoped, tag = 'output window, operand 1']
    #allocation9 [shape = 'u8[131072]{0}', space=vmem, size = 0x20000, scoped, tag = 'output window, operand 2']
    %18 = vsyncpa [#allocation3], 0
    %19 = vsyncpa [#allocation6], 0
    %20 = vsyncpa [#allocation4], 0
    %s21 = scalar_lea.sflag [#allocation4], 1
    %22 = vsyncpa %s21, 0
    loop: start=0, step=1, limit=4
    $region2: #{encoder_layer_forward.2} parent=1 // loop_pre_header
      _
    $region3: #{encoder_layer_forward.2} parent=1 // loop_header
      %s24 = sphi 0, %s28
      %p25 = scmp.ge.s32.totalorder %s24, 4
      %s34 = sphi 0, %s36
      %s37 = sphi 0, %s34
      %s38 = sphi 0, %s37
      %s54 = sphi 0, %s38
      %s60 = sphi 0, %s62
      %s63 = sphi 0, %s60
      %s64 = sphi 0, %s63
      %s80 = sphi 0, %s64
      %s86 = sphi 0, %s88
      %s89 = sphi 0, %s86
      %s90 = sphi 0, %s89
      %s106 = sphi 0, %s90
      %s110 = sphi 0, %s110
      %s112 = sphi 0, %s110
      %s113 = sphi 0, %s112
      %s127 = sphi 0, %s113
      %s131 = sphi 0, %s131
      %s133 = sphi 0, %s131
      %s134 = sphi 0, %s133
      %s148 = sphi 0, %s134
      %s152 = sphi 0, %s152
      %s154 = sphi 0, %s152
      %s155 = sphi 0, %s154
      %s169 = sphi 0, %s155
      %s173 = sphi 0, %s173
      %s175 = sphi 0, %s173
      %s176 = sphi 0, %s175
      %s190 = sphi 0, %s176
      %s194 = sphi 0, %s194
      %s196 = sphi 0, %s194
      %s197 = sphi 0, %s196
      %s211 = sphi 0, %s197
      %s215 = sphi 0, %s215
      %s217 = sphi 0, %s215
      %s218 = sphi 0, %s217
      %s232 = sphi 0, %s218
      %s236 = sphi 0, %s236
      %s238 = sphi 0, %s236
      %s239 = sphi 0, %s238
      %s253 = sphi 0, %s239
      %s259 = sphi 0, %s261
      %s262 = sphi 0, %s259
      %s263 = sphi 0, %s262
      %s279 = sphi 0, %s263
      %s285 = sphi 0, %s287
      %s288 = sphi 0, %s285
      %s289 = sphi 0, %s288
      %s305 = sphi 0, %s289
      %s311 = sphi 0, %s313
      %s314 = sphi 0, %s311
      %s315 = sphi 0, %s314
      %s331 = sphi 0, %s315
    $region4: #{encoder_layer_forward.2} parent=1 // loop_header_branch
      %27 = sbr.rel (%p25) target = $region8
    $region5: #{encoder_layer_forward.2} parent=1 // loop_body
      %s29 = ssub.s32 %s24, 1
      %s30 = ssub.s32 %s24, 2
      %s31 = sadd.s32 %s24, 1
      %s32 = ssub.s32 %s24, %s31
      %p33 = scmp.eq.s32.totalorder %s32, 0
      %s35 = sadd.s32 %s34, 1
      %s36 = scalar_select %p33, %s34, %s35
      %p39 = pneg %p33
      %p40 = scmp.eq.s32.totalorder %s24, 1
      %p41 = por %p39, %p40
      %p42 = scmp.ne.s32.totalorder %s34, %s37
      %p43 = scmp.eq.s32.totalorder %s24, 0
      %p44 = por %p42, %p43
      %p45 = scmp.ne.s32.totalorder %s34, %s37
      %p46 = scmp.eq.s32.totalorder %s29, 1
      %p47 = por %p45, %p46
      %p48 = scmp.ne.s32.totalorder %s37, %s38
      %p49 = scmp.eq.s32.totalorder %s29, 0
      %p50 = por %p48, %p49
      %p51 = scmp.ne.s32.totalorder %s37, %s38
      %p52 = scmp.eq.s32.totalorder %s30, 1
      %p53 = por %p51, %p52
      %p55 = scmp.ne.s32.totalorder %s38, %s54
      %p56 = scmp.eq.s32.totalorder %s30, 0
      %p57 = por %p55, %p56
      %s58 = ssub.s32 %s24, %s31
      %p59 = scmp.eq.s32.totalorder %s58, 0
      %s61 = sadd.s32 %s60, 1
      %s62 = scalar_select %p59, %s60, %s61
      %p65 = pneg %p59
      %p66 = scmp.eq.s32.totalorder %s24, 1
      %p67 = por %p65, %p66
      %p68 = scmp.ne.s32.totalorder %s60, %s63
      %p69 = scmp.eq.s32.totalorder %s24, 0
      %p70 = por %p68, %p69
      %p71 = scmp.ne.s32.totalorder %s60, %s63
      %p72 = scmp.eq.s32.totalorder %s29, 1
      %p73 = por %p71, %p72
      %p74 = scmp.ne.s32.totalorder %s63, %s64
      %p75 = scmp.eq.s32.totalorder %s29, 0
      %p76 = por %p74, %p75
      %p77 = scmp.ne.s32.totalorder %s63, %s64
      %p78 = scmp.eq.s32.totalorder %s30, 1
      %p79 = por %p77, %p78
      %p81 = scmp.ne.s32.totalorder %s64, %s80
      %p82 = scmp.eq.s32.totalorder %s30, 0
      %p83 = por %p81, %p82
      %s84 = ssub.s32 %s24, %s31
      %p85 = scmp.eq.s32.totalorder %s84, 0
      %s87 = sadd.s32 %s86, 1
      %s88 = scalar_select %p85, %s86, %s87
      %p91 = pneg %p85
      %p92 = scmp.eq.s32.totalorder %s24, 1
      %p93 = por %p91, %p92
      %p94 = scmp.ne.s32.totalorder %s86, %s89
      %p95 = scmp.eq.s32.totalorder %s24, 0
      %p96 = por %p94, %p95
      %p97 = scmp.ne.s32.totalorder %s86, %s89
      %p98 = scmp.eq.s32.totalorder %s29, 1
      %p99 = por %p97, %p98
      %p100 = scmp.ne.s32.totalorder %s89, %s90
      %p101 = scmp.eq.s32.totalorder %s29, 0
      %p102 = por %p100, %p101
      %p103 = scmp.ne.s32.totalorder %s89, %s90
      %p104 = scmp.eq.s32.totalorder %s30, 1
      %p105 = por %p103, %p104
      %p107 = scmp.ne.s32.totalorder %s90, %s106
      %p108 = scmp.eq.s32.totalorder %s30, 0
      %p109 = por %p107, %p108
      %s111 = sadd.s32 %s110, 1
      %p114 = scmp.eq.s32.totalorder %s24, 1
      %p115 = scmp.ne.s32.totalorder %s110, %s112
      %p116 = scmp.eq.s32.totalorder %s24, 0
      %p117 = por %p115, %p116
      %p118 = scmp.ne.s32.totalorder %s110, %s112
      %p119 = scmp.eq.s32.totalorder %s29, 1
      %p120 = por %p118, %p119
      %p121 = scmp.ne.s32.totalorder %s112, %s113
      %p122 = scmp.eq.s32.totalorder %s29, 0
      %p123 = por %p121, %p122
      %p124 = scmp.ne.s32.totalorder %s112, %s113
      %p125 = scmp.eq.s32.totalorder %s30, 1
      %p126 = por %p124, %p125
      %p128 = scmp.ne.s32.totalorder %s113, %s127
      %p129 = scmp.eq.s32.totalorder %s30, 0
      %p130 = por %p128, %p129
      %s132 = sadd.s32 %s131, 1
      %p135 = scmp.eq.s32.totalorder %s24, 1
      %p136 = scmp.ne.s32.totalorder %s131, %s133
      %p137 = scmp.eq.s32.totalorder %s24, 0
      %p138 = por %p136, %p137
      %p139 = scmp.ne.s32.totalorder %s131, %s133
      %p140 = scmp.eq.s32.totalorder %s29, 1
      %p141 = por %p139, %p140
      %p142 = scmp.ne.s32.totalorder %s133, %s134
      %p143 = scmp.eq.s32.totalorder %s29, 0
      %p144 = por %p142, %p143
      %p145 = scmp.ne.s32.totalorder %s133, %s134
      %p146 = scmp.eq.s32.totalorder %s30, 1
      %p147 = por %p145, %p146
      %p149 = scmp.ne.s32.totalorder %s134, %s148
      %p150 = scmp.eq.s32.totalorder %s30, 0
      %p151 = por %p149, %p150
      %s153 = sadd.s32 %s152, 1
      %p156 = scmp.eq.s32.totalorder %s24, 1
      %p157 = scmp.ne.s32.totalorder %s152, %s154
      %p158 = scmp.eq.s32.totalorder %s24, 0
      %p159 = por %p157, %p158
      %p160 = scmp.ne.s32.totalorder %s152, %s154
      %p161 = scmp.eq.s32.totalorder %s29, 1
      %p162 = por %p160, %p161
      %p163 = scmp.ne.s32.totalorder %s154, %s155
      %p164 = scmp.eq.s32.totalorder %s29, 0
      %p165 = por %p163, %p164
      %p166 = scmp.ne.s32.totalorder %s154, %s155
      %p167 = scmp.eq.s32.totalorder %s30, 1
      %p168 = por %p166, %p167
      %p170 = scmp.ne.s32.totalorder %s155, %s169
      %p171 = scmp.eq.s32.totalorder %s30, 0
      %p172 = por %p170, %p171
      %s174 = sadd.s32 %s173, 1
      %p177 = scmp.eq.s32.totalorder %s24, 1
      %p178 = scmp.ne.s32.totalorder %s173, %s175
      %p179 = scmp.eq.s32.totalorder %s24, 0
      %p180 = por %p178, %p179
      %p181 = scmp.ne.s32.totalorder %s173, %s175
      %p182 = scmp.eq.s32.totalorder %s29, 1
      %p183 = por %p181, %p182
      %p184 = scmp.ne.s32.totalorder %s175, %s176
      %p185 = scmp.eq.s32.totalorder %s29, 0
      %p186 = por %p184, %p185
      %p187 = scmp.ne.s32.totalorder %s175, %s176
      %p188 = scmp.eq.s32.totalorder %s30, 1
      %p189 = por %p187, %p188
      %p191 = scmp.ne.s32.totalorder %s176, %s190
      %p192 = scmp.eq.s32.totalorder %s30, 0
      %p193 = por %p191, %p192
      %s195 = sadd.s32 %s194, 1
      %p198 = scmp.eq.s32.totalorder %s24, 1
      %p199 = scmp.ne.s32.totalorder %s194, %s196
      %p200 = scmp.eq.s32.totalorder %s24, 0
      %p201 = por %p199, %p200
      %p202 = scmp.ne.s32.totalorder %s194, %s196
      %p203 = scmp.eq.s32.totalorder %s29, 1
      %p204 = por %p202, %p203
      %p205 = scmp.ne.s32.totalorder %s196, %s197
      %p206 = scmp.eq.s32.totalorder %s29, 0
      %p207 = por %p205, %p206
      %p208 = scmp.ne.s32.totalorder %s196, %s197
      %p209 = scmp.eq.s32.totalorder %s30, 1
      %p210 = por %p208, %p209
      %p212 = scmp.ne.s32.totalorder %s197, %s211
      %p213 = scmp.eq.s32.totalorder %s30, 0
      %p214 = por %p212, %p213
      %s216 = sadd.s32 %s215, 1
      %p219 = scmp.eq.s32.totalorder %s24, 1
      %p220 = scmp.ne.s32.totalorder %s215, %s217
      %p221 = scmp.eq.s32.totalorder %s24, 0
      %p222 = por %p220, %p221
      %p223 = scmp.ne.s32.totalorder %s215, %s217
      %p224 = scmp.eq.s32.totalorder %s29, 1
      %p225 = por %p223, %p224
      %p226 = scmp.ne.s32.totalorder %s217, %s218
      %p227 = scmp.eq.s32.totalorder %s29, 0
      %p228 = por %p226, %p227
      %p229 = scmp.ne.s32.totalorder %s217, %s218
      %p230 = scmp.eq.s32.totalorder %s30, 1
      %p231 = por %p229, %p230
      %p233 = scmp.ne.s32.totalorder %s218, %s232
      %p234 = scmp.eq.s32.totalorder %s30, 0
      %p235 = por %p233, %p234
      %s237 = sadd.s32 %s236, 1
      %p240 = scmp.eq.s32.totalorder %s24, 1
      %p241 = scmp.ne.s32.totalorder %s236, %s238
      %p242 = scmp.eq.s32.totalorder %s24, 0
      %p243 = por %p241, %p242
      %p244 = scmp.ne.s32.totalorder %s236, %s238
      %p245 = scmp.eq.s32.totalorder %s29, 1
      %p246 = por %p244, %p245
      %p247 = scmp.ne.s32.totalorder %s238, %s239
      %p248 = scmp.eq.s32.totalorder %s29, 0
      %p249 = por %p247, %p248
      %p250 = scmp.ne.s32.totalorder %s238, %s239
      %p251 = scmp.eq.s32.totalorder %s30, 1
      %p252 = por %p250, %p251
      %p254 = scmp.ne.s32.totalorder %s239, %s253
      %p255 = scmp.eq.s32.totalorder %s30, 0
      %p256 = por %p254, %p255
      %s257 = ssub.s32 %s24, %s31
      %p258 = scmp.eq.s32.totalorder %s257, 0
      %s260 = sadd.s32 %s259, 1
      %s261 = scalar_select %p258, %s259, %s260
      %p264 = pneg %p258
      %p265 = scmp.eq.s32.totalorder %s24, 1
      %p266 = por %p264, %p265
      %p267 = scmp.ne.s32.totalorder %s259, %s262
      %p268 = scmp.eq.s32.totalorder %s24, 0
      %p269 = por %p267, %p268
      %p270 = scmp.ne.s32.totalorder %s259, %s262
      %p271 = scmp.eq.s32.totalorder %s29, 1
      %p272 = por %p270, %p271
      %p273 = scmp.ne.s32.totalorder %s262, %s263
      %p274 = scmp.eq.s32.totalorder %s29, 0
      %p275 = por %p273, %p274
      %p276 = scmp.ne.s32.totalorder %s262, %s263
      %p277 = scmp.eq.s32.totalorder %s30, 1
      %p278 = por %p276, %p277
      %p280 = scmp.ne.s32.totalorder %s263, %s279
      %p281 = scmp.eq.s32.totalorder %s30, 0
      %p282 = por %p280, %p281
      %s283 = ssub.s32 %s24, %s31
      %p284 = scmp.eq.s32.totalorder %s283, 0
      %s286 = sadd.s32 %s285, 1
      %s287 = scalar_select %p284, %s285, %s286
      %p290 = pneg %p284
      %p291 = scmp.eq.s32.totalorder %s24, 1
      %p292 = por %p290, %p291
      %p293 = scmp.ne.s32.totalorder %s285, %s288
      %p294 = scmp.eq.s32.totalorder %s24, 0
      %p295 = por %p293, %p294
      %p296 = scmp.ne.s32.totalorder %s285, %s288
      %p297 = scmp.eq.s32.totalorder %s29, 1
      %p298 = por %p296, %p297
      %p299 = scmp.ne.s32.totalorder %s288, %s289
      %p300 = scmp.eq.s32.totalorder %s29, 0
      %p301 = por %p299, %p300
      %p302 = scmp.ne.s32.totalorder %s288, %s289
      %p303 = scmp.eq.s32.totalorder %s30, 1
      %p304 = por %p302, %p303
      %p306 = scmp.ne.s32.totalorder %s289, %s305
      %p307 = scmp.eq.s32.totalorder %s30, 0
      %p308 = por %p306, %p307
      %s309 = ssub.s32 %s24, %s31
      %p310 = scmp.eq.s32.totalorder %s309, 0
      %s312 = sadd.s32 %s311, 1
      %s313 = scalar_select %p310, %s311, %s312
      %p316 = pneg %p310
      %p317 = scmp.eq.s32.totalorder %s24, 1
      %p318 = por %p316, %p317
      %p319 = scmp.ne.s32.totalorder %s311, %s314
      %p320 = scmp.eq.s32.totalorder %s24, 0
      %p321 = por %p319, %p320
      %p322 = scmp.ne.s32.totalorder %s311, %s314
      %p323 = scmp.eq.s32.totalorder %s29, 1
      %p324 = por %p322, %p323
      %p325 = scmp.ne.s32.totalorder %s314, %s315
      %p326 = scmp.eq.s32.totalorder %s29, 0
      %p327 = por %p325, %p326
      %p328 = scmp.ne.s32.totalorder %s314, %s315
      %p329 = scmp.eq.s32.totalorder %s30, 1
      %p330 = por %p328, %p329
      %p332 = scmp.ne.s32.totalorder %s315, %s331
      %p333 = scmp.eq.s32.totalorder %s30, 0
      %p334 = por %p332, %p333
      %p335 = scmp.le.s32.totalorder 1, %s24
      %p336 = scmp.lt.s32.totalorder %s24, 3
      %p337 = pnand %p335, %p336
      %p338 = pneg %p337
      // Predicated region
      $region9: #{encoder_layer_forward.2} parent=5 // pred_check
        _
      $region10: #{encoder_layer_forward.2} parent=5 // pred_check_branch
        %340 = sbr.rel (%p337) target = $region12
      $region11: #{encoder_layer_forward.2} parent=5 // pred_region
        %s341 = ssub.s32 %s24, 1
        // Predicated region
        $region13: #{encoder_layer_forward.2} parent=11 // pred_check
          %p342 = pneg %p123
        $region14: #{encoder_layer_forward.2} parent=11 // pred_check_branch
          %344 = sbr.rel (%p342) target = $region16
        $region15: #{encoder_layer_forward.2} parent=11 // pred_region
          %346 = vsyncadd [#allocation3], 0
          %s347 = sshll.u32 %s3, 4
          %s348 = int_to_ptr.hbm [resolvable:$true] %s347
          %s349 = sshll.u32 [#allocation2], 4
          %s350 = int_to_ptr.vmem [resolvable:$true] %s349
          %355 = dma.hbm_to_vmem [thread:$0]  %s348, 512, %s350, [#allocation3], 128, 128, 8
        $region16: #{encoder_layer_forward.2} parent=11 // pred_fallthru
          _
        // Predicated region
        $region17: #{encoder_layer_forward.2} parent=11 // pred_check
          %p356 = pneg %p144
        $region18: #{encoder_layer_forward.2} parent=11 // pred_check_branch
          %358 = sbr.rel (%p356) target = $region20
        $region19: #{encoder_layer_forward.2} parent=11 // pred_region
          %360 = vsyncadd [#allocation6], 0
          %s362 = sshll.u32 %s4, 4
          %s363 = int_to_ptr.hbm [resolvable:$true] %s362
          %s364 = sshll.u32 [#allocation5], 4
          %s365 = int_to_ptr.vmem [resolvable:$true] %s364
          %367 = dma.hbm_to_vmem [thread:$0]  %s363, 16, %s365, [#allocation6]
        $region20: #{encoder_layer_forward.2} parent=11 // pred_fallthru
          _
        // Predicated region
        $region21: #{encoder_layer_forward.2} parent=11 // pred_check
          %p368 = pneg %p165
        $region22: #{encoder_layer_forward.2} parent=11 // pred_check_branch
          %370 = sbr.rel (%p368) target = $region24
        $region23: #{encoder_layer_forward.2} parent=11 // pred_region
          _
        $region24: #{encoder_layer_forward.2} parent=11 // pred_fallthru
          _
        // Predicated region
        $region25: #{encoder_layer_forward.2} parent=11 // pred_check
          %p371 = pneg %p186
        $region26: #{encoder_layer_forward.2} parent=11 // pred_check_branch
          %373 = sbr.rel (%p371) target = $region28
        $region27: #{encoder_layer_forward.2} parent=11 // pred_region
          _
        $region28: #{encoder_layer_forward.2} parent=11 // pred_fallthru
          _
        // Predicated region
        $region29: #{encoder_layer_forward.2} parent=11 // pred_check
          %p374 = pneg %p207
        $region30: #{encoder_layer_forward.2} parent=11 // pred_check_branch
          %376 = sbr.rel (%p374) target = $region32
        $region31: #{encoder_layer_forward.2} parent=11 // pred_region
          _
        $region32: #{encoder_layer_forward.2} parent=11 // pred_fallthru
          _
        // Predicated region
        $region33: #{encoder_layer_forward.2} parent=11 // pred_check
          %p377 = pneg %p228
        $region34: #{encoder_layer_forward.2} parent=11 // pred_check_branch
          %379 = sbr.rel (%p377) target = $region36
        $region35: #{encoder_layer_forward.2} parent=11 // pred_region
          _
        $region36: #{encoder_layer_forward.2} parent=11 // pred_fallthru
          _
        // Predicated region
        $region37: #{encoder_layer_forward.2} parent=11 // pred_check
          %p380 = pneg %p249
        $region38: #{encoder_layer_forward.2} parent=11 // pred_check_branch
          %382 = sbr.rel (%p380) target = $region40
        $region39: #{encoder_layer_forward.2} parent=11 // pred_region
          _
        $region40: #{encoder_layer_forward.2} parent=11 // pred_fallthru
          _
      $region12: #{encoder_layer_forward.2} parent=5 // pred_fallthru
        _
      %p383 = scmp.lt.s32.totalorder %s24, 2
      // Predicated region
      $region41: #{encoder_layer_forward.2} parent=5 // pred_check
        %p384 = pneg %p383
      $region42: #{encoder_layer_forward.2} parent=5 // pred_check_branch
        %386 = sbr.rel (%p384) target = $region44
      $region43: #{encoder_layer_forward.2} parent=5 // pred_region
        // Predicated region
        $region45: #{encoder_layer_forward.2} parent=43 // pred_check
          %p387 = pneg %p44
        $region46: #{encoder_layer_forward.2} parent=43 // pred_check_branch
          %389 = sbr.rel (%p387) target = $region48
        $region47: #{encoder_layer_forward.2} parent=43 // pred_region
          %s390 = smul.u32 16, %s24
          %s391 = ssub.s32 22, %s390
          %p392 = scmp.lt.s32.totalorder %s391, 16
          %s393 = scalar_select %p392, %s391, 16
          %s394 = smul.u32 8, %s393
          %p395 = scmp.lt.s32.totalorder %s390, 21
          %s396 = scalar_select %p395, %s390, 21
          %s397 = smul.addr %s396, 8
          %s398 = scalar_lea.vmem %s0, %s397
          %s399 = smul.u32 16, %s24
          %s400 = ssub.s32 22, %s399
          %p401 = scmp.lt.s32.totalorder %s400, 16
          %s402 = scalar_select %p401, %s400, 16
          %s403 = smul.u32 8, %s402
        $region48: #{encoder_layer_forward.2} parent=43 // pred_fallthru
          _
        // Predicated region
        $region49: #{encoder_layer_forward.2} parent=43 // pred_check
          %p404 = pneg %p70
        $region50: #{encoder_layer_forward.2} parent=43 // pred_check_branch
          %406 = sbr.rel (%p404) target = $region52
        $region51: #{encoder_layer_forward.2} parent=43 // pred_region
          %s407 = smul.u32 16, %s24
          %s408 = ssub.s32 22, %s407
          %p409 = scmp.lt.s32.totalorder %s408, 16
          %s410 = scalar_select %p409, %s408, 16
          %s411 = smul.u32 8, %s410
          %p412 = scmp.lt.s32.totalorder %s407, 21
          %s413 = scalar_select %p412, %s407, 21
          %s414 = smul.addr %s413, 8
          %s415 = scalar_lea.vmem %s1, %s414
          %s416 = smul.u32 16, %s24
          %s417 = ssub.s32 22, %s416
          %p418 = scmp.lt.s32.totalorder %s417, 16
          %s419 = scalar_select %p418, %s417, 16
          %s420 = smul.u32 8, %s419
        $region52: #{encoder_layer_forward.2} parent=43 // pred_fallthru
          _
        // Predicated region
        $region53: #{encoder_layer_forward.2} parent=43 // pred_check
          %p421 = pneg %p96
        $region54: #{encoder_layer_forward.2} parent=43 // pred_check_branch
          %423 = sbr.rel (%p421) target = $region56
        $region55: #{encoder_layer_forward.2} parent=43 // pred_region
          %s424 = smul.u32 16, %s24
          %s425 = ssub.s32 22, %s424
          %p426 = scmp.lt.s32.totalorder %s425, 16
          %s427 = scalar_select %p426, %s425, 16
          %s428 = smul.u32 8, %s427
          %p429 = scmp.lt.s32.totalorder %s424, 21
          %s430 = scalar_select %p429, %s424, 21
          %s431 = smul.addr %s430, 8
          %s432 = scalar_lea.vmem %s2, %s431
          %s433 = smul.u32 16, %s24
          %s434 = ssub.s32 22, %s433
          %p435 = scmp.lt.s32.totalorder %s434, 16
          %s436 = scalar_select %p435, %s434, 16
          %s437 = smul.u32 8, %s436
        $region56: #{encoder_layer_forward.2} parent=43 // pred_fallthru
          _
      $region44: #{encoder_layer_forward.2} parent=5 // pred_fallthru
        _
      %p438 = scmp.le.s32.totalorder 1, %s24
      %p439 = scmp.lt.s32.totalorder %s24, 3
      %p440 = pnand %p438, %p439
      %p441 = pneg %p440
      // Predicated region
      $region57: #{encoder_layer_forward.2} parent=5 // pred_check
        _
      $region58: #{encoder_layer_forward.2} parent=5 // pred_check_branch
        %443 = sbr.rel (%p440) target = $region60
      $region59: #{encoder_layer_forward.2} parent=5 // pred_region
        %s444 = ssub.s32 %s24, 1
        // Predicated region
        $region61: #{encoder_layer_forward.2} parent=59 // pred_check
          %p445 = pneg %p123
        $region62: #{encoder_layer_forward.2} parent=59 // pred_check_branch
          %447 = sbr.rel (%p445) target = $region64
        $region63: #{encoder_layer_forward.2} parent=59 // pred_region
          %449 = dma.done [#allocation3], 512
        $region64: #{encoder_layer_forward.2} parent=59 // pred_fallthru
          _
        // Predicated region
        $region65: #{encoder_layer_forward.2} parent=59 // pred_check
          %p450 = pneg %p144
        $region66: #{encoder_layer_forward.2} parent=59 // pred_check_branch
          %452 = sbr.rel (%p450) target = $region68
        $region67: #{encoder_layer_forward.2} parent=59 // pred_region
          %454 = dma.done [#allocation6], 16
        $region68: #{encoder_layer_forward.2} parent=59 // pred_fallthru
          _
        %s455 = smul.u32 16, %s29
        %s456 = ssub.s32 22, %s455
        %p457 = scmp.lt.s32.totalorder %s456, 16
        %s458 = scalar_select %p457, %s456, 16
        %s459 = smul.u32 8, %s458
        %p460 = scmp.lt.s32.totalorder %s455, 21
        %s461 = scalar_select %p460, %s455, 21
        %s462 = smul.addr %s461, 8
        %s463 = scalar_lea.vmem %s0, %s462
        %p464 = pneg %p50
        %p465 = pneg %p47
        %s466 = smul.u32 16, %s29
        %s467 = ssub.s32 22, %s466
        %p468 = scmp.lt.s32.totalorder %s467, 16
        %s469 = scalar_select %p468, %s467, 16
        %s470 = smul.u32 8, %s469
        %p471 = scmp.lt.s32.totalorder %s466, 21
        %s472 = scalar_select %p471, %s466, 21
        %s473 = smul.addr %s472, 8
        %s474 = scalar_lea.vmem %s1, %s473
        %p475 = pneg %p76
        %p476 = pneg %p73
        %s477 = smul.u32 16, %s29
        %s478 = ssub.s32 22, %s477
        %p479 = scmp.lt.s32.totalorder %s478, 16
        %s480 = scalar_select %p479, %s478, 16
        %s481 = smul.u32 8, %s480
        %p482 = scmp.lt.s32.totalorder %s477, 21
        %s483 = scalar_select %p482, %s477, 21
        %s484 = smul.addr %s483, 8
        %s485 = scalar_lea.vmem %s2, %s484
        %p486 = pneg %p102
        %p487 = pneg %p99
        %p488 = pneg %p123
        %p489 = pneg %p120
        %p490 = pneg %p144
        %p491 = pneg %p141
        %p492 = pneg %p165
        %p493 = pneg %p162
        %p494 = pneg %p186
        %p495 = pneg %p183
        %p496 = pneg %p207
        %p497 = pneg %p204
        %p498 = pneg %p228
        %p499 = pneg %p225
        %p500 = pneg %p249
        %p501 = pneg %p246
        %p502 = pneg %p275
        %p503 = pneg %p272
        %s504 = sand.u32 %s262, 1
        %s505 = sand.u32 %s262, 1
        %s506 = smul.addr %s505, 128
        %s507 = scalar_lea.vmem [#allocation7], %s506
        %p508 = pneg %p301
        %p509 = pneg %p298
        %s510 = sand.u32 %s288, 1
        %s511 = sand.u32 %s288, 1
        %s512 = smul.addr %s511, 128
        %s513 = scalar_lea.vmem [#allocation8], %s512
        %p514 = pneg %p327
        %p515 = pneg %p324
        %s516 = sand.u32 %s314, 1
        %s517 = scalar_lea.sflag [#allocation4], %s516
        %s518 = sand.u32 %s314, 1
        %s519 = smul.addr %s518, 128
        %s520 = scalar_lea.vmem [#allocation9], %s519
        %s521 = smul.u32 16, %s29
        %s522 = ssub.s32 22, %s521
        %p523 = scmp.lt.s32.totalorder %s522, 16
        %s524 = scalar_select %p523, %s522, 16
        %s525 = smul.u32 8, %s524
        %p526 = scmp.lt.s32.totalorder %s521, 21
        %s527 = scalar_select %p526, %s521, 21
        %s528 = smul.addr %s527, 8
        %s529 = scalar_lea.vmem %s0, %s528
        %s530 = smul.u32 16, %s29
        %s531 = ssub.s32 22, %s530
        %p532 = scmp.lt.s32.totalorder %s531, 16
        %s533 = scalar_select %p532, %s531, 16
        %s534 = smul.u32 8, %s533
        %s535 = smul.u32 16, %s29
        %s536 = ssub.s32 22, %s535
        %p537 = scmp.lt.s32.totalorder %s536, 16
        %s538 = scalar_select %p537, %s536, 16
        %s539 = smul.u32 8, %s538
        %p540 = scmp.lt.s32.totalorder %s535, 21
        %s541 = scalar_select %p540, %s535, 21
        %s542 = smul.addr %s541, 8
        %s543 = scalar_lea.vmem %s1, %s542
        %s544 = smul.u32 16, %s29
        %s545 = ssub.s32 22, %s544
        %p546 = scmp.lt.s32.totalorder %s545, 16
        %s547 = scalar_select %p546, %s545, 16
        %s548 = smul.u32 8, %s547
        %s549 = smul.u32 16, %s29
        %s550 = ssub.s32 22, %s549
        %p551 = scmp.lt.s32.totalorder %s550, 16
        %s552 = scalar_select %p551, %s550, 16
        %s553 = smul.u32 8, %s552
        %p554 = scmp.lt.s32.totalorder %s549, 21
        %s555 = scalar_select %p554, %s549, 21
        %s556 = smul.addr %s555, 8
        %s557 = scalar_lea.vmem %s2, %s556
        %s558 = smul.u32 16, %s29
        %s559 = ssub.s32 22, %s558
        %p560 = scmp.lt.s32.totalorder %s559, 16
        %s561 = scalar_select %p560, %s559, 16
        %s562 = smul.u32 8, %s561
        %s563 = smul.u32 16, %s29
        %s564 = ssub.s32 22, %s563
        %p565 = scmp.lt.s32.totalorder %s564, 16
        %s566 = scalar_select %p565, %s564, 16
        %s567 = smul.u32 8, %s566
        %s568 = smul.u32 16, %s29
        %s569 = ssub.s32 22, %s568
        %p570 = scmp.lt.s32.totalorder %s569, 16
        %s571 = scalar_select %p570, %s569, 16
        %s572 = smul.u32 8, %s571
        %s573 = smul.u32 16, %s29
        %s574 = ssub.s32 22, %s573
        %p575 = scmp.lt.s32.totalorder %s574, 16
        %s576 = scalar_select %p575, %s574, 16
        %s577 = smul.u32 8, %s576
        %v578 = vld [vmem:[%s529] sm:$0xff]
        %v579 = vld [vmem:[%s529 + $0x8] sm:$0xff]
        %v580 = vld [vmem:[%s529 + $0x10] sm:$0xff]
        %v581 = vld [vmem:[%s529 + $0x18] sm:$0xff]
        %v582 = vld [vmem:[%s529 + $0x20] sm:$0xff]
        %v583 = vld [vmem:[%s529 + $0x28] sm:$0xff]
        %v584 = vld [vmem:[%s529 + $0x30] sm:$0xff]
        %v585 = vld [vmem:[%s529 + $0x38] sm:$0xff]
        %v586 = vld [vmem:[%s529 + $0x40] sm:$0xff]
        %v587 = vld [vmem:[%s529 + $0x48] sm:$0xff]
        %v588 = vld [vmem:[%s529 + $0x50] sm:$0xff]
        %v589 = vld [vmem:[%s529 + $0x58] sm:$0xff]
        %v590 = vld [vmem:[%s529 + $0x60] sm:$0xff]
        %v591 = vld [vmem:[%s529 + $0x68] sm:$0xff]
        %v592 = vld [vmem:[%s529 + $0x70] sm:$0xff]
        %v593 = vld [vmem:[%s529 + $0x78] sm:$0xff]
        %v594 = vld [vmem:[%s543] sm:$0xff]
        %v595 = vld [vmem:[%s543 + $0x8] sm:$0xff]
        %v596 = vld [vmem:[%s543 + $0x10] sm:$0xff]
        %v597 = vld [vmem:[%s543 + $0x18] sm:$0xff]
        %v598 = vld [vmem:[%s543 + $0x20] sm:$0xff]
        %v599 = vld [vmem:[%s543 + $0x28] sm:$0xff]
        %v600 = vld [vmem:[%s543 + $0x30] sm:$0xff]
        %v601 = vld [vmem:[%s543 + $0x38] sm:$0xff]
        %v602 = vld [vmem:[%s543 + $0x40] sm:$0xff]
        %v603 = vld [vmem:[%s543 + $0x48] sm:$0xff]
        %v604 = vld [vmem:[%s543 + $0x50] sm:$0xff]
        %v605 = vld [vmem:[%s543 + $0x58] sm:$0xff]
        %v606 = vld [vmem:[%s543 + $0x60] sm:$0xff]
        %v607 = vld [vmem:[%s543 + $0x68] sm:$0xff]
        %v608 = vld [vmem:[%s543 + $0x70] sm:$0xff]
        %v609 = vld [vmem:[%s543 + $0x78] sm:$0xff]
        %v610 = vadd.f32 %v578, %v594
        %v611 = vadd.f32 %v579, %v595
        %v612 = vadd.f32 %v580, %v596
        %v613 = vadd.f32 %v581, %v597
        %v614 = vadd.f32 %v582, %v598
        %v615 = vadd.f32 %v583, %v599
        %v616 = vadd.f32 %v584, %v600
        %v617 = vadd.f32 %v585, %v601
        %v618 = vadd.f32 %v586, %v602
        %v619 = vadd.f32 %v587, %v603
        %v620 = vadd.f32 %v588, %v604
        %v621 = vadd.f32 %v589, %v605
        %v622 = vadd.f32 %v590, %v606
        %v623 = vadd.f32 %v591, %v607
        %v624 = vadd.f32 %v592, %v608
        %v625 = vadd.f32 %v593, %v609
        %v626 = vld [vmem:[#allocation2] sm:$0xff]
        %v627 = vld [vmem:[#allocation2 + $0x8] sm:$0xff]
        %v628 = vld [vmem:[#allocation2 + $0x10] sm:$0xff]
        %v629 = vld [vmem:[#allocation2 + $0x18] sm:$0xff]
        %v630 = vld [vmem:[#allocation5] sm:$0x1]
        %v632 = vperm.slane %v630, 0
        %vm634 = vcmask 261120
        %v636 = vsel %vm634, %v578, 0
        %v639 = vsel %vm634, %v579, 0
        %v642 = vsel %vm634, %v580, 0
        %v645 = vsel %vm634, %v581, 0
        %v648 = vsel %vm634, %v582, 0
        %v651 = vsel %vm634, %v583, 0
        %v654 = vsel %vm634, %v584, 0
        %v657 = vsel %vm634, %v585, 0
        %v660 = vsel %vm634, %v586, 0
        %v663 = vsel %vm634, %v587, 0
        %v666 = vsel %vm634, %v588, 0
        %v669 = vsel %vm634, %v589, 0
        %v672 = vsel %vm634, %v590, 0
        %v675 = vsel %vm634, %v591, 0
        %v678 = vsel %vm634, %v592, 0
        %v681 = vsel %vm634, %v593, 0
        %683 = vmatpush.msra.mxu0 0.0
        %684 = vmatpush.msra.mxu0 0.0
        %685 = vmatpush.msra.mxu0 0.0
        %686 = vmatpush.msra.mxu0 0.0
        %687 = vmatpush.msra.mxu0 0.0
        %688 = vmatpush.msra.mxu0 0.0
        %689 = vmatpush.msra.mxu0 0.0
        %690 = vmatpush.msra.mxu0 0.0
        %691 = vmatpush.msra.mxu0 0.0
        %692 = vmatpush.msra.mxu0 0.0
        %693 = vmatpush.msra.mxu0 0.0
        %694 = vmatpush.msra.mxu0 0.0
        %695 = vmatpush.msra.mxu0 %v629
        %696 = vmatpush.msra.mxu0 %v628
        %697 = vmatpush.msra.mxu0 %v627
        %698 = vmatpush.msra.mxu0 %v626
        %699 = vmatmul.f32.gmra.mxu0 %v636
        %v700 = vpop.f32.mrf.mxu0
        %v701 = vadd.f32 %v632, %v700
        %702 = vmatmul.f32.gmra.mxu0 %v639
        %v703 = vpop.f32.mrf.mxu0
        %v704 = vadd.f32 %v632, %v703
        %705 = vmatmul.f32.gmra.mxu0 %v642
        %v706 = vpop.f32.mrf.mxu0
        %v707 = vadd.f32 %v632, %v706
        %708 = vmatmul.f32.gmra.mxu0 %v645
        %v709 = vpop.f32.mrf.mxu0
        %v710 = vadd.f32 %v632, %v709
        %711 = vmatmul.f32.gmra.mxu0 %v648
        %v712 = vpop.f32.mrf.mxu0
        %v713 = vadd.f32 %v632, %v712
        %714 = vmatmul.f32.gmra.mxu0 %v651
        %v715 = vpop.f32.mrf.mxu0
        %v716 = vadd.f32 %v632, %v715
        %717 = vmatmul.f32.gmra.mxu0 %v654
        %v718 = vpop.f32.mrf.mxu0
        %v719 = vadd.f32 %v632, %v718
        %720 = vmatmul.f32.gmra.mxu0 %v657
        %v721 = vpop.f32.mrf.mxu0
        %v722 = vadd.f32 %v632, %v721
        %723 = vmatmul.f32.gmra.mxu0 %v660
        %v724 = vpop.f32.mrf.mxu0
        %v725 = vadd.f32 %v632, %v724
        %726 = vmatmul.f32.gmra.mxu0 %v663
        %v727 = vpop.f32.mrf.mxu0
        %v728 = vadd.f32 %v632, %v727
        %729 = vmatmul.f32.gmra.mxu0 %v666
        %v730 = vpop.f32.mrf.mxu0
        %v731 = vadd.f32 %v632, %v730
        %732 = vmatmul.f32.gmra.mxu0 %v669
        %v733 = vpop.f32.mrf.mxu0
        %v734 = vadd.f32 %v632, %v733
        %735 = vmatmul.f32.gmra.mxu0 %v672
        %v736 = vpop.f32.mrf.mxu0
        %v737 = vadd.f32 %v632, %v736
        %738 = vmatmul.f32.gmra.mxu0 %v675
        %v739 = vpop.f32.mrf.mxu0
        %v740 = vadd.f32 %v632, %v739
        %741 = vmatmul.f32.gmra.mxu0 %v678
        %v742 = vpop.f32.mrf.mxu0
        %v743 = vadd.f32 %v632, %v742
        %744 = vmatmul.f32.gmra.mxu0 %v681
        %v745 = vpop.f32.mrf.mxu0
        %v746 = vadd.f32 %v632, %v745
        %747 = vdwg.mxu0
        %748 = vst.msk [vmem:[%s507] sm:$0xff] %vm634, %v701
        %749 = vst.msk [vmem:[%s507 + $0x8] sm:$0xff] %vm634, %v704
        %750 = vst.msk [vmem:[%s507 + $0x10] sm:$0xff] %vm634, %v707
        %751 = vst.msk [vmem:[%s507 + $0x18] sm:$0xff] %vm634, %v710
        %752 = vst.msk [vmem:[%s507 + $0x20] sm:$0xff] %vm634, %v713
        %753 = vst.msk [vmem:[%s507 + $0x28] sm:$0xff] %vm634, %v716
        %754 = vst.msk [vmem:[%s507 + $0x30] sm:$0xff] %vm634, %v719
        %755 = vst.msk [vmem:[%s507 + $0x38] sm:$0xff] %vm634, %v722
        %756 = vst.msk [vmem:[%s507 + $0x40] sm:$0xff] %vm634, %v725
        %757 = vst.msk [vmem:[%s507 + $0x48] sm:$0xff] %vm634, %v728
        %758 = vst.msk [vmem:[%s507 + $0x50] sm:$0xff] %vm634, %v731
        %759 = vst.msk [vmem:[%s507 + $0x58] sm:$0xff] %vm634, %v734
        %760 = vst.msk [vmem:[%s507 + $0x60] sm:$0xff] %vm634, %v737
        %761 = vst.msk [vmem:[%s507 + $0x68] sm:$0xff] %vm634, %v740
        %762 = vst.msk [vmem:[%s507 + $0x70] sm:$0xff] %vm634, %v743
        %763 = vst.msk [vmem:[%s507 + $0x78] sm:$0xff] %vm634, %v746
        %v764 = vld [vmem:[%s5] sm:$0xff]
        %v765 = vld [vmem:[%s5 + $0x8] sm:$0xff]
        %v766 = vld [vmem:[%s5 + $0x10] sm:$0xff]
        %v767 = vld [vmem:[%s5 + $0x18] sm:$0xff]
        %v768 = vld [vmem:[%s5 + $0x20] sm:$0xff]
        %v769 = vld [vmem:[%s5 + $0x28] sm:$0xff]
        %v770 = vld [vmem:[%s5 + $0x30] sm:$0xff]
        %v771 = vld [vmem:[%s5 + $0x38] sm:$0xff]
        %v772 = vld [vmem:[%s6] sm:$0x3]
        %v774 = vperm.slane %v772, 0
        %v775 = vperm.slane %v772, 1
        %v779 = vsel %vm634, %v610, 0
        %v782 = vsel %vm634, %v611, 0
        %v785 = vsel %vm634, %v612, 0
        %v788 = vsel %vm634, %v613, 0
        %v791 = vsel %vm634, %v614, 0
        %v794 = vsel %vm634, %v615, 0
        %v797 = vsel %vm634, %v616, 0
        %v800 = vsel %vm634, %v617, 0
        %v803 = vsel %vm634, %v618, 0
        %v806 = vsel %vm634, %v619, 0
        %v809 = vsel %vm634, %v620, 0
        %v812 = vsel %vm634, %v621, 0
        %v815 = vsel %vm634, %v622, 0
        %v818 = vsel %vm634, %v623, 0
        %v821 = vsel %vm634, %v624, 0
        %v824 = vsel %vm634, %v625, 0
        %826 = vmatpush.msra.mxu0 0.0
        %827 = vmatpush.msra.mxu0 0.0
        %828 = vmatpush.msra.mxu0 0.0
        %829 = vmatpush.msra.mxu0 0.0
        %830 = vmatpush.msra.mxu0 0.0
        %831 = vmatpush.msra.mxu0 0.0
        %832 = vmatpush.msra.mxu0 0.0
        %833 = vmatpush.msra.mxu0 0.0
        %834 = vmatpush.msra.mxu0 0.0
        %835 = vmatpush.msra.mxu0 0.0
        %836 = vmatpush.msra.mxu0 0.0
        %837 = vmatpush.msra.mxu0 0.0
        %838 = vmatpush.msra.mxu0 %v770
        %839 = vmatpush.msra.mxu0 %v768
        %840 = vmatpush.msra.mxu0 %v766
        %841 = vmatpush.msra.mxu0 %v764
        %842 = vmatmul.f32.gmra.mxu0 %v779
        %v843 = vpop.f32.mrf.mxu0
        %v844 = vadd.f32 %v774, %v843
        %845 = vmatmul.f32.gmra.mxu0 %v782
        %v846 = vpop.f32.mrf.mxu0
        %v847 = vadd.f32 %v774, %v846
        %848 = vmatmul.f32.gmra.mxu0 %v785
        %v849 = vpop.f32.mrf.mxu0
        %v850 = vadd.f32 %v774, %v849
        %851 = vmatmul.f32.gmra.mxu0 %v788
        %v852 = vpop.f32.mrf.mxu0
        %v853 = vadd.f32 %v774, %v852
        %854 = vmatmul.f32.gmra.mxu0 %v791
        %v855 = vpop.f32.mrf.mxu0
        %v856 = vadd.f32 %v774, %v855
        %857 = vmatmul.f32.gmra.mxu0 %v794
        %v858 = vpop.f32.mrf.mxu0
        %v859 = vadd.f32 %v774, %v858
        %860 = vmatmul.f32.gmra.mxu0 %v797
        %v861 = vpop.f32.mrf.mxu0
        %v862 = vadd.f32 %v774, %v861
        %863 = vmatmul.f32.gmra.mxu0 %v800
        %v864 = vpop.f32.mrf.mxu0
        %v865 = vadd.f32 %v774, %v864
        %866 = vmatmul.f32.gmra.mxu0 %v803
        %v867 = vpop.f32.mrf.mxu0
        %v868 = vadd.f32 %v774, %v867
        %869 = vmatmul.f32.gmra.mxu0 %v806
        %v870 = vpop.f32.mrf.mxu0
        %v871 = vadd.f32 %v774, %v870
        %872 = vmatmul.f32.gmra.mxu0 %v809
        %v873 = vpop.f32.mrf.mxu0
        %v874 = vadd.f32 %v774, %v873
        %875 = vmatmul.f32.gmra.mxu0 %v812
        %v876 = vpop.f32.mrf.mxu0
        %v877 = vadd.f32 %v774, %v876
        %878 = vmatmul.f32.gmra.mxu0 %v815
        %v879 = vpop.f32.mrf.mxu0
        %v880 = vadd.f32 %v774, %v879
        %881 = vmatmul.f32.gmra.mxu0 %v818
        %v882 = vpop.f32.mrf.mxu0
        %v883 = vadd.f32 %v774, %v882
        %884 = vmatmul.f32.gmra.mxu0 %v821
        %v885 = vpop.f32.mrf.mxu0
        %v886 = vadd.f32 %v774, %v885
        %887 = vmatmul.f32.gmra.mxu0 %v824
        %v888 = vpop.f32.mrf.mxu0
        %v889 = vadd.f32 %v774, %v888
        %890 = vdwg.mxu0
        %891 = vmatpush.msra.mxu0 0.0
        %892 = vmatpush.msra.mxu0 0.0
        %893 = vmatpush.msra.mxu0 0.0
        %894 = vmatpush.msra.mxu0 0.0
        %895 = vmatpush.msra.mxu0 0.0
        %896 = vmatpush.msra.mxu0 0.0
        %897 = vmatpush.msra.mxu0 0.0
        %898 = vmatpush.msra.mxu0 0.0
        %899 = vmatpush.msra.mxu0 0.0
        %900 = vmatpush.msra.mxu0 0.0
        %901 = vmatpush.msra.mxu0 0.0
        %902 = vmatpush.msra.mxu0 0.0
        %903 = vmatpush.msra.mxu0 %v771
        %904 = vmatpush.msra.mxu0 %v769
        %905 = vmatpush.msra.mxu0 %v767
        %906 = vmatpush.msra.mxu0 %v765
        %907 = vmatmul.f32.gmra.mxu0 %v779
        %v908 = vpop.f32.mrf.mxu0
        %v909 = vadd.f32 %v775, %v908
        %910 = vmatmul.f32.gmra.mxu0 %v782
        %v911 = vpop.f32.mrf.mxu0
        %v912 = vadd.f32 %v775, %v911
        %913 = vmatmul.f32.gmra.mxu0 %v785
        %v914 = vpop.f32.mrf.mxu0
        %v915 = vadd.f32 %v775, %v914
        %916 = vmatmul.f32.gmra.mxu0 %v788
        %v917 = vpop.f32.mrf.mxu0
        %v918 = vadd.f32 %v775, %v917
        %919 = vmatmul.f32.gmra.mxu0 %v791
        %v920 = vpop.f32.mrf.mxu0
        %v921 = vadd.f32 %v775, %v920
        %922 = vmatmul.f32.gmra.mxu0 %v794
        %v923 = vpop.f32.mrf.mxu0
        %v924 = vadd.f32 %v775, %v923
        %925 = vmatmul.f32.gmra.mxu0 %v797
        %v926 = vpop.f32.mrf.mxu0
        %v927 = vadd.f32 %v775, %v926
        %928 = vmatmul.f32.gmra.mxu0 %v800
        %v929 = vpop.f32.mrf.mxu0
        %v930 = vadd.f32 %v775, %v929
        %931 = vmatmul.f32.gmra.mxu0 %v803
        %v932 = vpop.f32.mrf.mxu0
        %v933 = vadd.f32 %v775, %v932
        %934 = vmatmul.f32.gmra.mxu0 %v806
        %v935 = vpop.f32.mrf.mxu0
        %v936 = vadd.f32 %v775, %v935
        %937 = vmatmul.f32.gmra.mxu0 %v809
        %v938 = vpop.f32.mrf.mxu0
        %v939 = vadd.f32 %v775, %v938
        %940 = vmatmul.f32.gmra.mxu0 %v812
        %v941 = vpop.f32.mrf.mxu0
        %v942 = vadd.f32 %v775, %v941
        %943 = vmatmul.f32.gmra.mxu0 %v815
        %v944 = vpop.f32.mrf.mxu0
        %v945 = vadd.f32 %v775, %v944
        %946 = vmatmul.f32.gmra.mxu0 %v818
        %v947 = vpop.f32.mrf.mxu0
        %v948 = vadd.f32 %v775, %v947
        %949 = vmatmul.f32.gmra.mxu0 %v821
        %v950 = vpop.f32.mrf.mxu0
        %v951 = vadd.f32 %v775, %v950
        %952 = vmatmul.f32.gmra.mxu0 %v824
        %v953 = vpop.f32.mrf.mxu0
        %v954 = vadd.f32 %v775, %v953
        %955 = vdwg.mxu0
        %v956 = vld [vmem:[%s8] sm:$0x1]
        %v958 = vperm.slane %v956, 0
        %v960 = vmul.f32 %v844, %v958
        %v961 = vmul.f32 %v847, %v958
        %v962 = vmul.f32 %v850, %v958
        %v963 = vmul.f32 %v853, %v958
        %v964 = vmul.f32 %v856, %v958
        %v965 = vmul.f32 %v859, %v958
        %v966 = vmul.f32 %v862, %v958
        %v967 = vmul.f32 %v865, %v958
        %v968 = vmul.f32 %v868, %v958
        %v969 = vmul.f32 %v871, %v958
        %v970 = vmul.f32 %v874, %v958
        %v971 = vmul.f32 %v877, %v958
        %v972 = vmul.f32 %v880, %v958
        %v973 = vmul.f32 %v883, %v958
        %v974 = vmul.f32 %v886, %v958
        %v975 = vmul.f32 %v889, %v958
        %v976 = vld [vmem:[%s557] sm:$0xff]
        %v977 = vld [vmem:[%s557 + $0x8] sm:$0xff]
        %v978 = vld [vmem:[%s557 + $0x10] sm:$0xff]
        %v979 = vld [vmem:[%s557 + $0x18] sm:$0xff]
        %v980 = vld [vmem:[%s557 + $0x20] sm:$0xff]
        %v981 = vld [vmem:[%s557 + $0x28] sm:$0xff]
        %v982 = vld [vmem:[%s557 + $0x30] sm:$0xff]
        %v983 = vld [vmem:[%s557 + $0x38] sm:$0xff]
        %v984 = vld [vmem:[%s557 + $0x40] sm:$0xff]
        %v985 = vld [vmem:[%s557 + $0x48] sm:$0xff]
        %v986 = vld [vmem:[%s557 + $0x50] sm:$0xff]
        %v987 = vld [vmem:[%s557 + $0x58] sm:$0xff]
        %v988 = vld [vmem:[%s557 + $0x60] sm:$0xff]
        %v989 = vld [vmem:[%s557 + $0x68] sm:$0xff]
        %v990 = vld [vmem:[%s557 + $0x70] sm:$0xff]
        %v991 = vld [vmem:[%s557 + $0x78] sm:$0xff]
        %v992 = vld [vmem:[%s9] sm:$0xff]
        %vm993 = vcmask 64512
        %v995 = vsel %vm993, %v976, 0
        %v998 = vsel %vm993, %v977, 0
        %v1001 = vsel %vm993, %v978, 0
        %v1004 = vsel %vm993, %v979, 0
        %v1007 = vsel %vm993, %v980, 0
        %v1010 = vsel %vm993, %v981, 0
        %v1013 = vsel %vm993, %v982, 0
        %v1016 = vsel %vm993, %v983, 0
        %v1019 = vsel %vm993, %v984, 0
        %v1022 = vsel %vm993, %v985, 0
        %v1025 = vsel %vm993, %v986, 0
        %v1028 = vsel %vm993, %v987, 0
        %v1031 = vsel %vm993, %v988, 0
        %v1034 = vsel %vm993, %v989, 0
        %v1037 = vsel %vm993, %v990, 0
        %v1040 = vsel %vm993, %v991, 0
        %1042 = vmatpush.msra.mxu0 0.0
        %1043 = vmatpush.msra.mxu0 0.0
        %1044 = vmatpush.msra.mxu0 0.0
        %1045 = vmatpush.msra.mxu0 0.0
        %1046 = vmatpush.msra.mxu0 0.0
        %1047 = vmatpush.msra.mxu0 0.0
        %1048 = vmatpush.msra.mxu0 0.0
        %1049 = vmatpush.msra.mxu0 0.0
        %1050 = vmatpush.msra.mxu0 0.0
        %1051 = vmatpush.msra.mxu0 0.0
        %1052 = vmatpush.msra.mxu0 0.0
        %1053 = vmatpush.msra.mxu0 0.0
        %1054 = vmatpush.msra.mxu0 0.0
        %1055 = vmatpush.msra.mxu0 0.0
        %1056 = vmatpush.msra.mxu0 0.0
        %1057 = vmatpush.msra.mxu0 %v992
        %1058 = vmatmul.f32.gmra.mxu0 %v995
        %v1059 = vpop.f32.mrf.mxu0
        %v1060 = vadd.f32 0.0, %v1059
        %1061 = vmatmul.f32.gmra.mxu0 %v998
        %v1062 = vpop.f32.mrf.mxu0
        %v1063 = vadd.f32 0.0, %v1062
        %1064 = vmatmul.f32.gmra.mxu0 %v1001
        %v1065 = vpop.f32.mrf.mxu0
        %v1066 = vadd.f32 0.0, %v1065
        %1067 = vmatmul.f32.gmra.mxu0 %v1004
        %v1068 = vpop.f32.mrf.mxu0
        %v1069 = vadd.f32 0.0, %v1068
        %1070 = vmatmul.f32.gmra.mxu0 %v1007
        %v1071 = vpop.f32.mrf.mxu0
        %v1072 = vadd.f32 0.0, %v1071
        %1073 = vmatmul.f32.gmra.mxu0 %v1010
        %v1074 = vpop.f32.mrf.mxu0
        %v1075 = vadd.f32 0.0, %v1074
        %1076 = vmatmul.f32.gmra.mxu0 %v1013
        %v1077 = vpop.f32.mrf.mxu0
        %v1078 = vadd.f32 0.0, %v1077
        %1079 = vmatmul.f32.gmra.mxu0 %v1016
        %v1080 = vpop.f32.mrf.mxu0
        %v1081 = vadd.f32 0.0, %v1080
        %1082 = vmatmul.f32.gmra.mxu0 %v1019
        %v1083 = vpop.f32.mrf.mxu0
        %v1084 = vadd.f32 0.0, %v1083
        %1085 = vmatmul.f32.gmra.mxu0 %v1022
        %v1086 = vpop.f32.mrf.mxu0
        %v1087 = vadd.f32 0.0, %v1086
        %1088 = vmatmul.f32.gmra.mxu0 %v1025
        %v1089 = vpop.f32.mrf.mxu0
        %v1090 = vadd.f32 0.0, %v1089
        %1091 = vmatmul.f32.gmra.mxu0 %v1028
        %v1092 = vpop.f32.mrf.mxu0
        %v1093 = vadd.f32 0.0, %v1092
        %1094 = vmatmul.f32.gmra.mxu0 %v1031
        %v1095 = vpop.f32.mrf.mxu0
        %v1096 = vadd.f32 0.0, %v1095
        %1097 = vmatmul.f32.gmra.mxu0 %v1034
        %v1098 = vpop.f32.mrf.mxu0
        %v1099 = vadd.f32 0.0, %v1098
        %1100 = vmatmul.f32.gmra.mxu0 %v1037
        %v1101 = vpop.f32.mrf.mxu0
        %v1102 = vadd.f32 0.0, %v1101
        %1103 = vmatmul.f32.gmra.mxu0 %v1040
        %v1104 = vpop.f32.mrf.mxu0
        %v1105 = vadd.f32 0.0, %v1104
        %1106 = vdwg.mxu0
        %v1107 = vadd.f32 %v960, %v1060
        %v1108 = vadd.f32 %v961, %v1063
        %v1109 = vadd.f32 %v962, %v1066
        %v1110 = vadd.f32 %v963, %v1069
        %v1111 = vadd.f32 %v964, %v1072
        %v1112 = vadd.f32 %v965, %v1075
        %v1113 = vadd.f32 %v966, %v1078
        %v1114 = vadd.f32 %v967, %v1081
        %v1115 = vadd.f32 %v968, %v1084
        %v1116 = vadd.f32 %v969, %v1087
        %v1117 = vadd.f32 %v970, %v1090
        %v1118 = vadd.f32 %v971, %v1093
        %v1119 = vadd.f32 %v972, %v1096
        %v1120 = vadd.f32 %v973, %v1099
        %v1121 = vadd.f32 %v974, %v1102
        %v1122 = vadd.f32 %v975, %v1105
        %1123 = vst [vmem:[%s513] sm:$0xff] %v1107
        %1124 = vst [vmem:[%s513 + $0x8] sm:$0xff] %v1108
        %1125 = vst [vmem:[%s513 + $0x10] sm:$0xff] %v1109
        %1126 = vst [vmem:[%s513 + $0x18] sm:$0xff] %v1110
        %1127 = vst [vmem:[%s513 + $0x20] sm:$0xff] %v1111
        %1128 = vst [vmem:[%s513 + $0x28] sm:$0xff] %v1112
        %1129 = vst [vmem:[%s513 + $0x30] sm:$0xff] %v1113
        %1130 = vst [vmem:[%s513 + $0x38] sm:$0xff] %v1114
        %1131 = vst [vmem:[%s513 + $0x40] sm:$0xff] %v1115
        %1132 = vst [vmem:[%s513 + $0x48] sm:$0xff] %v1116
        %1133 = vst [vmem:[%s513 + $0x50] sm:$0xff] %v1117
        %1134 = vst [vmem:[%s513 + $0x58] sm:$0xff] %v1118
        %1135 = vst [vmem:[%s513 + $0x60] sm:$0xff] %v1119
        %1136 = vst [vmem:[%s513 + $0x68] sm:$0xff] %v1120
        %1137 = vst [vmem:[%s513 + $0x70] sm:$0xff] %v1121
        %1138 = vst [vmem:[%s513 + $0x78] sm:$0xff] %v1122
        %vm1139 = vcmask 523264
        %v1140 = vsel %vm1139, %v909, -inf
        %1141 = vmax.xlane.f32.xlu0 %v1140
        %v1142 = vpop.xlane.xlu0 %1141
        %v1143 = vsel %vm1139, %v912, -inf
        %1144 = vmax.xlane.f32.xlu0 %v1143
        %v1145 = vpop.xlane.xlu0 %1144
        %v1146 = vsel %vm1139, %v915, -inf
        %1147 = vmax.xlane.f32.xlu0 %v1146
        %v1148 = vpop.xlane.xlu0 %1147
        %v1149 = vsel %vm1139, %v918, -inf
        %1150 = vmax.xlane.f32.xlu0 %v1149
        %v1151 = vpop.xlane.xlu0 %1150
        %v1152 = vsel %vm1139, %v921, -inf
        %1153 = vmax.xlane.f32.xlu0 %v1152
        %v1154 = vpop.xlane.xlu0 %1153
        %v1155 = vsel %vm1139, %v924, -inf
        %1156 = vmax.xlane.f32.xlu0 %v1155
        %v1157 = vpop.xlane.xlu0 %1156
        %v1158 = vsel %vm1139, %v927, -inf
        %1159 = vmax.xlane.f32.xlu0 %v1158
        %v1160 = vpop.xlane.xlu0 %1159
        %v1161 = vsel %vm1139, %v930, -inf
        %1162 = vmax.xlane.f32.xlu0 %v1161
        %v1163 = vpop.xlane.xlu0 %1162
        %v1164 = vsel %vm1139, %v933, -inf
        %1165 = vmax.xlane.f32.xlu0 %v1164
        %v1166 = vpop.xlane.xlu0 %1165
        %v1167 = vsel %vm1139, %v936, -inf
        %1168 = vmax.xlane.f32.xlu0 %v1167
        %v1169 = vpop.xlane.xlu0 %1168
        %v1170 = vsel %vm1139, %v939, -inf
        %1171 = vmax.xlane.f32.xlu0 %v1170
        %v1172 = vpop.xlane.xlu0 %1171
        %v1173 = vsel %vm1139, %v942, -inf
        %1174 = vmax.xlane.f32.xlu0 %v1173
        %v1175 = vpop.xlane.xlu0 %1174
        %v1176 = vsel %vm1139, %v945, -inf
        %1177 = vmax.xlane.f32.xlu0 %v1176
        %v1178 = vpop.xlane.xlu0 %1177
        %v1179 = vsel %vm1139, %v948, -inf
        %1180 = vmax.xlane.f32.xlu0 %v1179
        %v1181 = vpop.xlane.xlu0 %1180
        %v1182 = vsel %vm1139, %v951, -inf
        %1183 = vmax.xlane.f32.xlu0 %v1182
        %v1184 = vpop.xlane.xlu0 %1183
        %v1185 = vsel %vm1139, %v954, -inf
        %1186 = vmax.xlane.f32.xlu0 %v1185
        %v1187 = vpop.xlane.xlu0 %1186
        %v1188 = vsub.f32 %v909, %v1142
        %v1189 = vsub.f32 %v912, %v1145
        %v1190 = vsub.f32 %v915, %v1148
        %v1191 = vsub.f32 %v918, %v1151
        %v1192 = vsub.f32 %v921, %v1154
        %v1193 = vsub.f32 %v924, %v1157
        %v1194 = vsub.f32 %v927, %v1160
        %v1195 = vsub.f32 %v930, %v1163
        %v1196 = vsub.f32 %v933, %v1166
        %v1197 = vsub.f32 %v936, %v1169
        %v1198 = vsub.f32 %v939, %v1172
        %v1199 = vsub.f32 %v942, %v1175
        %v1200 = vsub.f32 %v945, %v1178
        %v1201 = vsub.f32 %v948, %v1181
        %v1202 = vsub.f32 %v951, %v1184
        %v1203 = vsub.f32 %v954, %v1187
        %v1204 = vmul.f32 %v1188, 1.442695
        %v1205 = vpow.pop %v1204
        %v1206 = vmul.f32 %v1189, 1.442695
        %v1207 = vpow.pop %v1206
        %v1208 = vmul.f32 %v1190, 1.442695
        %v1209 = vpow.pop %v1208
        %v1210 = vmul.f32 %v1191, 1.442695
        %v1211 = vpow.pop %v1210
        %v1212 = vmul.f32 %v1192, 1.442695
        %v1213 = vpow.pop %v1212
        %v1214 = vmul.f32 %v1193, 1.442695
        %v1215 = vpow.pop %v1214
        %v1216 = vmul.f32 %v1194, 1.442695
        %v1217 = vpow.pop %v1216
        %v1218 = vmul.f32 %v1195, 1.442695
        %v1219 = vpow.pop %v1218
        %v1220 = vmul.f32 %v1196, 1.442695
        %v1221 = vpow.pop %v1220
        %v1222 = vmul.f32 %v1197, 1.442695
        %v1223 = vpow.pop %v1222
        %v1224 = vmul.f32 %v1198, 1.442695
        %v1225 = vpow.pop %v1224
        %v1226 = vmul.f32 %v1199, 1.442695
        %v1227 = vpow.pop %v1226
        %v1228 = vmul.f32 %v1200, 1.442695
        %v1229 = vpow.pop %v1228
        %v1230 = vmul.f32 %v1201, 1.442695
        %v1231 = vpow.pop %v1230
        %v1232 = vmul.f32 %v1202, 1.442695
        %v1233 = vpow.pop %v1232
        %v1234 = vmul.f32 %v1203, 1.442695
        %v1235 = vpow.pop %v1234
        %v1236 = vld [vmem:[%s7] sm:$0xff]
        %v1237 = vld [vmem:[%s7 + $0x8] sm:$0xff]
        %v1238 = vld [vmem:[%s7 + $0x10] sm:$0xff]
        %v1239 = vld [vmem:[%s7 + $0x18] sm:$0xff]
        %v1240 = vld [vmem:[%s7 + $0x20] sm:$0xff]
        %v1241 = vld [vmem:[%s7 + $0x28] sm:$0xff]
        %v1242 = vld [vmem:[%s7 + $0x30] sm:$0xff]
        %v1243 = vld [vmem:[%s7 + $0x38] sm:$0xff]
        %v1245 = vsel %vm1139, %v1205, 0
        %v1248 = vsel %vm1139, %v1207, 0
        %v1251 = vsel %vm1139, %v1209, 0
        %v1254 = vsel %vm1139, %v1211, 0
        %v1257 = vsel %vm1139, %v1213, 0
        %v1260 = vsel %vm1139, %v1215, 0
        %v1263 = vsel %vm1139, %v1217, 0
        %v1266 = vsel %vm1139, %v1219, 0
        %v1269 = vsel %vm1139, %v1221, 0
        %v1272 = vsel %vm1139, %v1223, 0
        %v1275 = vsel %vm1139, %v1225, 0
        %v1278 = vsel %vm1139, %v1227, 0
        %v1281 = vsel %vm1139, %v1229, 0
        %v1284 = vsel %vm1139, %v1231, 0
        %v1287 = vsel %vm1139, %v1233, 0
        %v1290 = vsel %vm1139, %v1235, 0
        %1292 = vmatpush.msra.mxu0 0.0
        %1293 = vmatpush.msra.mxu0 0.0
        %1294 = vmatpush.msra.mxu0 0.0
        %1295 = vmatpush.msra.mxu0 0.0
        %1296 = vmatpush.msra.mxu0 0.0
        %1297 = vmatpush.msra.mxu0 0.0
        %1298 = vmatpush.msra.mxu0 0.0
        %1299 = vmatpush.msra.mxu0 0.0
        %1300 = vmatpush.msra.mxu0 %v1243
        %1301 = vmatpush.msra.mxu0 %v1242
        %1302 = vmatpush.msra.mxu0 %v1241
        %1303 = vmatpush.msra.mxu0 %v1240
        %1304 = vmatpush.msra.mxu0 %v1239
        %1305 = vmatpush.msra.mxu0 %v1238
        %1306 = vmatpush.msra.mxu0 %v1237
        %1307 = vmatpush.msra.mxu0 %v1236
        %1308 = vmatmul.f32.gmra.mxu0 %v1245
        %v1309 = vpop.f32.mrf.mxu0
        %v1310 = vadd.f32 0.0, %v1309
        %1311 = vmatmul.f32.gmra.mxu0 %v1248
        %v1312 = vpop.f32.mrf.mxu0
        %v1313 = vadd.f32 0.0, %v1312
        %1314 = vmatmul.f32.gmra.mxu0 %v1251
        %v1315 = vpop.f32.mrf.mxu0
        %v1316 = vadd.f32 0.0, %v1315
        %1317 = vmatmul.f32.gmra.mxu0 %v1254
        %v1318 = vpop.f32.mrf.mxu0
        %v1319 = vadd.f32 0.0, %v1318
        %1320 = vmatmul.f32.gmra.mxu0 %v1257
        %v1321 = vpop.f32.mrf.mxu0
        %v1322 = vadd.f32 0.0, %v1321
        %1323 = vmatmul.f32.gmra.mxu0 %v1260
        %v1324 = vpop.f32.mrf.mxu0
        %v1325 = vadd.f32 0.0, %v1324
        %1326 = vmatmul.f32.gmra.mxu0 %v1263
        %v1327 = vpop.f32.mrf.mxu0
        %v1328 = vadd.f32 0.0, %v1327
        %1329 = vmatmul.f32.gmra.mxu0 %v1266
        %v1330 = vpop.f32.mrf.mxu0
        %v1331 = vadd.f32 0.0, %v1330
        %1332 = vmatmul.f32.gmra.mxu0 %v1269
        %v1333 = vpop.f32.mrf.mxu0
        %v1334 = vadd.f32 0.0, %v1333
        %1335 = vmatmul.f32.gmra.mxu0 %v1272
        %v1336 = vpop.f32.mrf.mxu0
        %v1337 = vadd.f32 0.0, %v1336
        %1338 = vmatmul.f32.gmra.mxu0 %v1275
        %v1339 = vpop.f32.mrf.mxu0
        %v1340 = vadd.f32 0.0, %v1339
        %1341 = vmatmul.f32.gmra.mxu0 %v1278
        %v1342 = vpop.f32.mrf.mxu0
        %v1343 = vadd.f32 0.0, %v1342
        %1344 = vmatmul.f32.gmra.mxu0 %v1281
        %v1345 = vpop.f32.mrf.mxu0
        %v1346 = vadd.f32 0.0, %v1345
        %1347 = vmatmul.f32.gmra.mxu0 %v1284
        %v1348 = vpop.f32.mrf.mxu0
        %v1349 = vadd.f32 0.0, %v1348
        %1350 = vmatmul.f32.gmra.mxu0 %v1287
        %v1351 = vpop.f32.mrf.mxu0
        %v1352 = vadd.f32 0.0, %v1351
        %1353 = vmatmul.f32.gmra.mxu0 %v1290
        %v1354 = vpop.f32.mrf.mxu0
        %v1355 = vadd.f32 0.0, %v1354
        %1356 = vdwg.mxu0
        %v1357 = vrcp.pop %v1310
        %v1358 = vrcp.pop %v1313
        %v1359 = vrcp.pop %v1316
        %v1360 = vrcp.pop %v1319
        %v1361 = vrcp.pop %v1322
        %v1362 = vrcp.pop %v1325
        %v1363 = vrcp.pop %v1328
        %v1364 = vrcp.pop %v1331
        %v1365 = vrcp.pop %v1334
        %v1366 = vrcp.pop %v1337
        %v1367 = vrcp.pop %v1340
        %v1368 = vrcp.pop %v1343
        %v1369 = vrcp.pop %v1346
        %v1370 = vrcp.pop %v1349
        %v1371 = vrcp.pop %v1352
        %v1372 = vrcp.pop %v1355
        %v1373 = vmul.f32 %v1205, %v1357
        %v1374 = vmul.f32 %v1207, %v1358
        %v1375 = vmul.f32 %v1209, %v1359
        %v1376 = vmul.f32 %v1211, %v1360
        %v1377 = vmul.f32 %v1213, %v1361
        %v1378 = vmul.f32 %v1215, %v1362
        %v1379 = vmul.f32 %v1217, %v1363
        %v1380 = vmul.f32 %v1219, %v1364
        %v1381 = vmul.f32 %v1221, %v1365
        %v1382 = vmul.f32 %v1223, %v1366
        %v1383 = vmul.f32 %v1225, %v1367
        %v1384 = vmul.f32 %v1227, %v1368
        %v1385 = vmul.f32 %v1229, %v1369
        %v1386 = vmul.f32 %v1231, %v1370
        %v1387 = vmul.f32 %v1233, %v1371
        %v1388 = vmul.f32 %v1235, %v1372
        %1389 = vst.msk [vmem:[%s520] sm:$0xff] %vm1139, %v1373
        %1390 = vst.msk [vmem:[%s520 + $0x8] sm:$0xff] %vm1139, %v1374
        %1391 = vst.msk [vmem:[%s520 + $0x10] sm:$0xff] %vm1139, %v1375
        %1392 = vst.msk [vmem:[%s520 + $0x18] sm:$0xff] %vm1139, %v1376
        %1393 = vst.msk [vmem:[%s520 + $0x20] sm:$0xff] %vm1139, %v1377
        %1394 = vst.msk [vmem:[%s520 + $0x28] sm:$0xff] %vm1139, %v1378
        %1395 = vst.msk [vmem:[%s520 + $0x30] sm:$0xff] %vm1139, %v1379
        %1396 = vst.msk [vmem:[%s520 + $0x38] sm:$0xff] %vm1139, %v1380
        %1397 = vst.msk [vmem:[%s520 + $0x40] sm:$0xff] %vm1139, %v1381
        %1398 = vst.msk [vmem:[%s520 + $0x48] sm:$0xff] %vm1139, %v1382
        %1399 = vst.msk [vmem:[%s520 + $0x50] sm:$0xff] %vm1139, %v1383
        %1400 = vst.msk [vmem:[%s520 + $0x58] sm:$0xff] %vm1139, %v1384
        %1401 = vst.msk [vmem:[%s520 + $0x60] sm:$0xff] %vm1139, %v1385
        %1402 = vst.msk [vmem:[%s520 + $0x68] sm:$0xff] %vm1139, %v1386
        %1403 = vst.msk [vmem:[%s520 + $0x70] sm:$0xff] %vm1139, %v1387
        %1404 = vst.msk [vmem:[%s520 + $0x78] sm:$0xff] %vm1139, %v1388
        %s1405 = sand.u32 %s262, 1
        %s1406 = sand.u32 %s262, 1
        %s1407 = smul.addr %s1406, 128
        %s1408 = scalar_lea.vmem [#allocation7], %s1407
        %s1409 = sand.u32 %s288, 1
        %s1410 = sand.u32 %s288, 1
        %s1411 = smul.addr %s1410, 128
        %s1412 = scalar_lea.vmem [#allocation8], %s1411
        %s1413 = sand.u32 %s314, 1
        %s1414 = scalar_lea.sflag [#allocation4], %s1413
        %s1415 = sand.u32 %s314, 1
        %s1416 = smul.addr %s1415, 128
        %s1417 = scalar_lea.vmem [#allocation9], %s1416
        // Predicated region
        $region69: #{encoder_layer_forward.2} parent=59 // pred_check
          %p1418 = pneg %p272
        $region70: #{encoder_layer_forward.2} parent=59 // pred_check_branch
          %1420 = sbr.rel (%p1418) target = $region72
        $region71: #{encoder_layer_forward.2} parent=59 // pred_region
          %s1421 = smul.u32 16, %s29
          %s1422 = ssub.s32 22, %s1421
          %p1423 = scmp.lt.s32.totalorder %s1422, 16
          %s1424 = scalar_select %p1423, %s1422, 16
          %s1425 = smul.u32 8, %s1424
          %p1426 = scmp.ne.s32.totalorder 0, %s1425
          %s1427 = smul.addr %s1421, 8
          %s1428 = scalar_lea.vmem %s10, %s1427
          // Predicated region
          $region73: #{encoder_layer_forward.2} parent=71 // pred_check
            %p1429 = pneg %p1426
          $region74: #{encoder_layer_forward.2} parent=71 // pred_check_branch
            %1431 = sbr.rel (%p1429) target = $region76
          $region75: #{encoder_layer_forward.2} parent=71 // pred_region
            // Predicated region
            $region77: #{encoder_layer_forward.2} parent=75 // pred_check
              _
            $region78: #{encoder_layer_forward.2} parent=75 // pred_check_branch
              %1433 = sbr.rel (0) target = $region80
            $region79: #{encoder_layer_forward.2} parent=75 // pred_region
              // Predicated region
              $region99: #{encoder_layer_forward.2} parent=79 // pred_check
                _
              $region100: #{encoder_layer_forward.2} parent=79 // pred_check_branch
                %1513 = sbr.rel (0) target = $region102
              $region101: #{encoder_layer_forward.2} parent=79 // pred_region
                %s1514 = sshrl.u32 %s1424, 4
                // While loop
                $region103: #{encoder_layer_forward.2} parent=101 // loop_pre_header
                  _
                $region104: #{encoder_layer_forward.2} parent=101 // loop_header
                  %s1516 = sphi 0, %s1518
                  %p1517 = scmp.ge.s32.totalorder %s1516, %s1514
                  %s1521 = sphi 0, %s1558
                  %s1522 = sphi %s1408, %s1561
                  %s1523 = sphi %s1428, %s1562
                $region105: #{encoder_layer_forward.2} parent=101 // loop_header_branch
                  %1520 = sbr.rel (%p1517) target = $region109
                $region106: #{encoder_layer_forward.2} parent=101 // loop_body
                  %v1524 = vld [vmem:[%s1522] sm:$0xff]
                  %1525 = vst [vmem:[%s1523] sm:$0xff] %v1524
                  %v1526 = vld [vmem:[%s1522 + $0x8] sm:$0xff]
                  %1527 = vst [vmem:[%s1523 + $0x8] sm:$0xff] %v1526
                  %v1528 = vld [vmem:[%s1522 + $0x10] sm:$0xff]
                  %1529 = vst [vmem:[%s1523 + $0x10] sm:$0xff] %v1528
                  %v1530 = vld [vmem:[%s1522 + $0x18] sm:$0xff]
                  %1531 = vst [vmem:[%s1523 + $0x18] sm:$0xff] %v1530
                  %v1532 = vld [vmem:[%s1522 + $0x20] sm:$0xff]
                  %1533 = vst [vmem:[%s1523 + $0x20] sm:$0xff] %v1532
                  %v1534 = vld [vmem:[%s1522 + $0x28] sm:$0xff]
                  %1535 = vst [vmem:[%s1523 + $0x28] sm:$0xff] %v1534
                  %v1536 = vld [vmem:[%s1522 + $0x30] sm:$0xff]
                  %1537 = vst [vmem:[%s1523 + $0x30] sm:$0xff] %v1536
                  %v1538 = vld [vmem:[%s1522 + $0x38] sm:$0xff]
                  %1539 = vst [vmem:[%s1523 + $0x38] sm:$0xff] %v1538
                  %v1540 = vld [vmem:[%s1522 + $0x40] sm:$0xff]
                  %1541 = vst [vmem:[%s1523 + $0x40] sm:$0xff] %v1540
                  %v1542 = vld [vmem:[%s1522 + $0x48] sm:$0xff]
                  %1543 = vst [vmem:[%s1523 + $0x48] sm:$0xff] %v1542
                  %v1544 = vld [vmem:[%s1522 + $0x50] sm:$0xff]
                  %1545 = vst [vmem:[%s1523 + $0x50] sm:$0xff] %v1544
                  %v1546 = vld [vmem:[%s1522 + $0x58] sm:$0xff]
                  %1547 = vst [vmem:[%s1523 + $0x58] sm:$0xff] %v1546
                  %v1548 = vld [vmem:[%s1522 + $0x60] sm:$0xff]
                  %1549 = vst [vmem:[%s1523 + $0x60] sm:$0xff] %v1548
                  %v1550 = vld [vmem:[%s1522 + $0x68] sm:$0xff]
                  %1551 = vst [vmem:[%s1523 + $0x68] sm:$0xff] %v1550
                  %v1552 = vld [vmem:[%s1522 + $0x70] sm:$0xff]
                  %1553 = vst [vmem:[%s1523 + $0x70] sm:$0xff] %v1552
                  %v1554 = vld [vmem:[%s1522 + $0x78] sm:$0xff]
                  %1555 = vst [vmem:[%s1523 + $0x78] sm:$0xff] %v1554
                  %s1556 = sadd.s32 1, %s1521
                  %p1557 = scmp.ge.s32.totalorder %s1556, %s1514
                  %s1558 = scalar_select %p1557, 0, %s1556
                  %s1559 = smul.u32 %s1558, 128
                  %s1560 = smul.u32 %s1558, 128
                  %s1561 = scalar_lea.vmem %s1408, %s1559 [#allocation7]
                  %s1562 = scalar_lea.vmem %s1428, %s1560
                $region107: #{encoder_layer_forward.2} parent=101 // loop_footer
                  %s1518 = sadd.s32 %s1516, 1
                $region108: #{encoder_layer_forward.2} parent=101 // loop_footer_branch
                  %1515 = sbr.rel target = $region104
                $region109: #{encoder_layer_forward.2} parent=101 // loop_exit
                  _
                %s1563 = sshrl.u32 %s1424, 4
                %s1564 = sand.u32 %s1424, 15
                %s1565 = smul.u32 %s1563, 16
                %s1566 = smul.u32 8, %s1565
                %s1567 = scalar_lea.vmem %s1408, %s1566 [#allocation7]
                %s1568 = smul.u32 8, %s1565
                %s1569 = scalar_lea.vmem %s1428, %s1568
                // While loop
                $region110: #{encoder_layer_forward.2} parent=101 // loop_pre_header
                  _
                $region111: #{encoder_layer_forward.2} parent=101 // loop_header
                  %s1571 = sphi 0, %s1573
                  %p1572 = scmp.ge.s32.totalorder %s1571, %s1564
                  %s1576 = sphi 0, %s1583
                  %s1577 = sphi %s1567, %s1586
                  %s1578 = sphi %s1569, %s1587
                $region112: #{encoder_layer_forward.2} parent=101 // loop_header_branch
                  %1575 = sbr.rel (%p1572) target = $region116
                $region113: #{encoder_layer_forward.2} parent=101 // loop_body
                  %v1579 = vld [vmem:[%s1577] sm:$0xff]
                  %1580 = vst [vmem:[%s1578] sm:$0xff] %v1579
                  %s1581 = sadd.s32 1, %s1576
                  %p1582 = scmp.ge.s32.totalorder %s1581, %s1564
                  %s1583 = scalar_select %p1582, 0, %s1581
                  %s1584 = smul.u32 %s1583, 8
                  %s1585 = smul.u32 %s1583, 8
                  %s1586 = scalar_lea.vmem %s1567, %s1584 [#allocation7]
                  %s1587 = scalar_lea.vmem %s1569, %s1585
                $region114: #{encoder_layer_forward.2} parent=101 // loop_footer
                  %s1573 = sadd.s32 %s1571, 1
                $region115: #{encoder_layer_forward.2} parent=101 // loop_footer_branch
                  %1570 = sbr.rel target = $region111
                $region116: #{encoder_layer_forward.2} parent=101 // loop_exit
                  _
              $region102: #{encoder_layer_forward.2} parent=79 // pred_fallthru
                _
              // Predicated region
              $region117: #{encoder_layer_forward.2} parent=79 // pred_check
                _
              $region118: #{encoder_layer_forward.2} parent=79 // pred_check_branch
                %1589 = sbr.rel target = $region120
              $region119: #{encoder_layer_forward.2} parent=79 // pred_region
                _
              $region120: #{encoder_layer_forward.2} parent=79 // pred_fallthru
                _
            $region80: #{encoder_layer_forward.2} parent=75 // pred_fallthru
              _
            // Predicated region
            $region81: #{encoder_layer_forward.2} parent=75 // pred_check
              _
            $region82: #{encoder_layer_forward.2} parent=75 // pred_check_branch
              %1435 = sbr.rel target = $region84
            $region83: #{encoder_layer_forward.2} parent=75 // pred_region
              %s1437 = ssub.s32 256, 1
              %s1438 = sshrl.u32 %s1424, 4
              // While loop
              $region85: #{encoder_layer_forward.2} parent=83 // loop_pre_header
                _
              $region86: #{encoder_layer_forward.2} parent=83 // loop_header
                %s1440 = sphi 0, %s1442
                %p1441 = scmp.ge.s32.totalorder %s1440, %s1438
                %s1445 = sphi 0, %s1482
                %s1446 = sphi %s1408, %s1485
                %s1447 = sphi %s1428, %s1486
              $region87: #{encoder_layer_forward.2} parent=83 // loop_header_branch
                %1444 = sbr.rel (%p1441) target = $region91
              $region88: #{encoder_layer_forward.2} parent=83 // loop_body
                %v1448 = vld [vmem:[%s1446] sm:%s1437]
                %1449 = vst [vmem:[%s1447] sm:%s1437] %v1448
                %v1450 = vld [vmem:[%s1446 + $0x8] sm:%s1437]
                %1451 = vst [vmem:[%s1447 + $0x8] sm:%s1437] %v1450
                %v1452 = vld [vmem:[%s1446 + $0x10] sm:%s1437]
                %1453 = vst [vmem:[%s1447 + $0x10] sm:%s1437] %v1452
                %v1454 = vld [vmem:[%s1446 + $0x18] sm:%s1437]
                %1455 = vst [vmem:[%s1447 + $0x18] sm:%s1437] %v1454
                %v1456 = vld [vmem:[%s1446 + $0x20] sm:%s1437]
                %1457 = vst [vmem:[%s1447 + $0x20] sm:%s1437] %v1456
                %v1458 = vld [vmem:[%s1446 + $0x28] sm:%s1437]
                %1459 = vst [vmem:[%s1447 + $0x28] sm:%s1437] %v1458
                %v1460 = vld [vmem:[%s1446 + $0x30] sm:%s1437]
                %1461 = vst [vmem:[%s1447 + $0x30] sm:%s1437] %v1460
                %v1462 = vld [vmem:[%s1446 + $0x38] sm:%s1437]
                %1463 = vst [vmem:[%s1447 + $0x38] sm:%s1437] %v1462
                %v1464 = vld [vmem:[%s1446 + $0x40] sm:%s1437]
                %1465 = vst [vmem:[%s1447 + $0x40] sm:%s1437] %v1464
                %v1466 = vld [vmem:[%s1446 + $0x48] sm:%s1437]
                %1467 = vst [vmem:[%s1447 + $0x48] sm:%s1437] %v1466
                %v1468 = vld [vmem:[%s1446 + $0x50] sm:%s1437]
                %1469 = vst [vmem:[%s1447 + $0x50] sm:%s1437] %v1468
                %v1470 = vld [vmem:[%s1446 + $0x58] sm:%s1437]
                %1471 = vst [vmem:[%s1447 + $0x58] sm:%s1437] %v1470
                %v1472 = vld [vmem:[%s1446 + $0x60] sm:%s1437]
                %1473 = vst [vmem:[%s1447 + $0x60] sm:%s1437] %v1472
                %v1474 = vld [vmem:[%s1446 + $0x68] sm:%s1437]
                %1475 = vst [vmem:[%s1447 + $0x68] sm:%s1437] %v1474
                %v1476 = vld [vmem:[%s1446 + $0x70] sm:%s1437]
                %1477 = vst [vmem:[%s1447 + $0x70] sm:%s1437] %v1476
                %v1478 = vld [vmem:[%s1446 + $0x78] sm:%s1437]
                %1479 = vst [vmem:[%s1447 + $0x78] sm:%s1437] %v1478
                %s1480 = sadd.s32 1, %s1445
                %p1481 = scmp.ge.s32.totalorder %s1480, %s1438
                %s1482 = scalar_select %p1481, 0, %s1480
                %s1483 = smul.u32 %s1482, 128
                %s1484 = smul.u32 %s1482, 128
                %s1485 = scalar_lea.vmem %s1408, %s1483 [#allocation7]
                %s1486 = scalar_lea.vmem %s1428, %s1484
              $region89: #{encoder_layer_forward.2} parent=83 // loop_footer
                %s1442 = sadd.s32 %s1440, 1
              $region90: #{encoder_layer_forward.2} parent=83 // loop_footer_branch
                %1439 = sbr.rel target = $region86
              $region91: #{encoder_layer_forward.2} parent=83 // loop_exit
                _
              %s1487 = sshrl.u32 %s1424, 4
              %s1488 = sand.u32 %s1424, 15
              %s1489 = smul.u32 %s1487, 16
              %s1490 = smul.u32 8, %s1489
              %s1491 = scalar_lea.vmem %s1408, %s1490 [#allocation7]
              %s1492 = smul.u32 8, %s1489
              %s1493 = scalar_lea.vmem %s1428, %s1492
              // While loop
              $region92: #{encoder_layer_forward.2} parent=83 // loop_pre_header
                _
              $region93: #{encoder_layer_forward.2} parent=83 // loop_header
                %s1495 = sphi 0, %s1497
                %p1496 = scmp.ge.s32.totalorder %s1495, %s1488
                %s1500 = sphi 0, %s1507
                %s1501 = sphi %s1491, %s1510
                %s1502 = sphi %s1493, %s1511
              $region94: #{encoder_layer_forward.2} parent=83 // loop_header_branch
                %1499 = sbr.rel (%p1496) target = $region98
              $region95: #{encoder_layer_forward.2} parent=83 // loop_body
                %v1503 = vld [vmem:[%s1501] sm:%s1437]
                %1504 = vst [vmem:[%s1502] sm:%s1437] %v1503
                %s1505 = sadd.s32 1, %s1500
                %p1506 = scmp.ge.s32.totalorder %s1505, %s1488
                %s1507 = scalar_select %p1506, 0, %s1505
                %s1508 = smul.u32 %s1507, 8
                %s1509 = smul.u32 %s1507, 8
                %s1510 = scalar_lea.vmem %s1491, %s1508 [#allocation7]
                %s1511 = scalar_lea.vmem %s1493, %s1509
              $region96: #{encoder_layer_forward.2} parent=83 // loop_footer
                %s1497 = sadd.s32 %s1495, 1
              $region97: #{encoder_layer_forward.2} parent=83 // loop_footer_branch
                %1494 = sbr.rel target = $region93
              $region98: #{encoder_layer_forward.2} parent=83 // loop_exit
                _
            $region84: #{encoder_layer_forward.2} parent=75 // pred_fallthru
              _
          $region76: #{encoder_layer_forward.2} parent=71 // pred_fallthru
            _
          %1590 = vnop
        $region72: #{encoder_layer_forward.2} parent=59 // pred_fallthru
          _
        // Predicated region
        $region121: #{encoder_layer_forward.2} parent=59 // pred_check
          %p1591 = pneg %p298
        $region122: #{encoder_layer_forward.2} parent=59 // pred_check_branch
          %1593 = sbr.rel (%p1591) target = $region124
        $region123: #{encoder_layer_forward.2} parent=59 // pred_region
          %s1594 = smul.u32 16, %s29
          %s1595 = ssub.s32 22, %s1594
          %p1596 = scmp.lt.s32.totalorder %s1595, 16
          %s1597 = scalar_select %p1596, %s1595, 16
          %s1598 = smul.u32 8, %s1597
          %p1599 = scmp.ne.s32.totalorder 0, %s1598
          %s1600 = smul.addr %s1594, 8
          %s1601 = scalar_lea.vmem %s11, %s1600
          // Predicated region
          $region125: #{encoder_layer_forward.2} parent=123 // pred_check
            %p1602 = pneg %p1599
          $region126: #{encoder_layer_forward.2} parent=123 // pred_check_branch
            %1604 = sbr.rel (%p1602) target = $region128
          $region127: #{encoder_layer_forward.2} parent=123 // pred_region
            // Predicated region
            $region129: #{encoder_layer_forward.2} parent=127 // pred_check
              _
            $region130: #{encoder_layer_forward.2} parent=127 // pred_check_branch
              %1606 = sbr.rel (0) target = $region132
            $region131: #{encoder_layer_forward.2} parent=127 // pred_region
              // Predicated region
              $region151: #{encoder_layer_forward.2} parent=131 // pred_check
                _
              $region152: #{encoder_layer_forward.2} parent=131 // pred_check_branch
                %1686 = sbr.rel (0) target = $region154
              $region153: #{encoder_layer_forward.2} parent=131 // pred_region
                %s1687 = sshrl.u32 %s1597, 4
                // While loop
                $region155: #{encoder_layer_forward.2} parent=153 // loop_pre_header
                  _
                $region156: #{encoder_layer_forward.2} parent=153 // loop_header
                  %s1689 = sphi 0, %s1691
                  %p1690 = scmp.ge.s32.totalorder %s1689, %s1687
                  %s1694 = sphi 0, %s1731
                  %s1695 = sphi %s1412, %s1734
                  %s1696 = sphi %s1601, %s1735
                $region157: #{encoder_layer_forward.2} parent=153 // loop_header_branch
                  %1693 = sbr.rel (%p1690) target = $region161
                $region158: #{encoder_layer_forward.2} parent=153 // loop_body
                  %v1697 = vld [vmem:[%s1695] sm:$0xff]
                  %1698 = vst [vmem:[%s1696] sm:$0xff] %v1697
                  %v1699 = vld [vmem:[%s1695 + $0x8] sm:$0xff]
                  %1700 = vst [vmem:[%s1696 + $0x8] sm:$0xff] %v1699
                  %v1701 = vld [vmem:[%s1695 + $0x10] sm:$0xff]
                  %1702 = vst [vmem:[%s1696 + $0x10] sm:$0xff] %v1701
                  %v1703 = vld [vmem:[%s1695 + $0x18] sm:$0xff]
                  %1704 = vst [vmem:[%s1696 + $0x18] sm:$0xff] %v1703
                  %v1705 = vld [vmem:[%s1695 + $0x20] sm:$0xff]
                  %1706 = vst [vmem:[%s1696 + $0x20] sm:$0xff] %v1705
                  %v1707 = vld [vmem:[%s1695 + $0x28] sm:$0xff]
                  %1708 = vst [vmem:[%s1696 + $0x28] sm:$0xff] %v1707
                  %v1709 = vld [vmem:[%s1695 + $0x30] sm:$0xff]
                  %1710 = vst [vmem:[%s1696 + $0x30] sm:$0xff] %v1709
                  %v1711 = vld [vmem:[%s1695 + $0x38] sm:$0xff]
                  %1712 = vst [vmem:[%s1696 + $0x38] sm:$0xff] %v1711
                  %v1713 = vld [vmem:[%s1695 + $0x40] sm:$0xff]
                  %1714 = vst [vmem:[%s1696 + $0x40] sm:$0xff] %v1713
                  %v1715 = vld [vmem:[%s1695 + $0x48] sm:$0xff]
                  %1716 = vst [vmem:[%s1696 + $0x48] sm:$0xff] %v1715
                  %v1717 = vld [vmem:[%s1695 + $0x50] sm:$0xff]
                  %1718 = vst [vmem:[%s1696 + $0x50] sm:$0xff] %v1717
                  %v1719 = vld [vmem:[%s1695 + $0x58] sm:$0xff]
                  %1720 = vst [vmem:[%s1696 + $0x58] sm:$0xff] %v1719
                  %v1721 = vld [vmem:[%s1695 + $0x60] sm:$0xff]
                  %1722 = vst [vmem:[%s1696 + $0x60] sm:$0xff] %v1721
                  %v1723 = vld [vmem:[%s1695 + $0x68] sm:$0xff]
                  %1724 = vst [vmem:[%s1696 + $0x68] sm:$0xff] %v1723
                  %v1725 = vld [vmem:[%s1695 + $0x70] sm:$0xff]
                  %1726 = vst [vmem:[%s1696 + $0x70] sm:$0xff] %v1725
                  %v1727 = vld [vmem:[%s1695 + $0x78] sm:$0xff]
                  %1728 = vst [vmem:[%s1696 + $0x78] sm:$0xff] %v1727
                  %s1729 = sadd.s32 1, %s1694
                  %p1730 = scmp.ge.s32.totalorder %s1729, %s1687
                  %s1731 = scalar_select %p1730, 0, %s1729
                  %s1732 = smul.u32 %s1731, 128
                  %s1733 = smul.u32 %s1731, 128
                  %s1734 = scalar_lea.vmem %s1412, %s1732 [#allocation8]
                  %s1735 = scalar_lea.vmem %s1601, %s1733
                $region159: #{encoder_layer_forward.2} parent=153 // loop_footer
                  %s1691 = sadd.s32 %s1689, 1
                $region160: #{encoder_layer_forward.2} parent=153 // loop_footer_branch
                  %1688 = sbr.rel target = $region156
                $region161: #{encoder_layer_forward.2} parent=153 // loop_exit
                  _
                %s1736 = sshrl.u32 %s1597, 4
                %s1737 = sand.u32 %s1597, 15
                %s1738 = smul.u32 %s1736, 16
                %s1739 = smul.u32 8, %s1738
                %s1740 = scalar_lea.vmem %s1412, %s1739 [#allocation8]
                %s1741 = smul.u32 8, %s1738
                %s1742 = scalar_lea.vmem %s1601, %s1741
                // While loop
                $region162: #{encoder_layer_forward.2} parent=153 // loop_pre_header
                  _
                $region163: #{encoder_layer_forward.2} parent=153 // loop_header
                  %s1744 = sphi 0, %s1746
                  %p1745 = scmp.ge.s32.totalorder %s1744, %s1737
                  %s1749 = sphi 0, %s1756
                  %s1750 = sphi %s1740, %s1759
                  %s1751 = sphi %s1742, %s1760
                $region164: #{encoder_layer_forward.2} parent=153 // loop_header_branch
                  %1748 = sbr.rel (%p1745) target = $region168
                $region165: #{encoder_layer_forward.2} parent=153 // loop_body
                  %v1752 = vld [vmem:[%s1750] sm:$0xff]
                  %1753 = vst [vmem:[%s1751] sm:$0xff] %v1752
                  %s1754 = sadd.s32 1, %s1749
                  %p1755 = scmp.ge.s32.totalorder %s1754, %s1737
                  %s1756 = scalar_select %p1755, 0, %s1754
                  %s1757 = smul.u32 %s1756, 8
                  %s1758 = smul.u32 %s1756, 8
                  %s1759 = scalar_lea.vmem %s1740, %s1757 [#allocation8]
                  %s1760 = scalar_lea.vmem %s1742, %s1758
                $region166: #{encoder_layer_forward.2} parent=153 // loop_footer
                  %s1746 = sadd.s32 %s1744, 1
                $region167: #{encoder_layer_forward.2} parent=153 // loop_footer_branch
                  %1743 = sbr.rel target = $region163
                $region168: #{encoder_layer_forward.2} parent=153 // loop_exit
                  _
              $region154: #{encoder_layer_forward.2} parent=131 // pred_fallthru
                _
              // Predicated region
              $region169: #{encoder_layer_forward.2} parent=131 // pred_check
                _
              $region170: #{encoder_layer_forward.2} parent=131 // pred_check_branch
                %1762 = sbr.rel target = $region172
              $region171: #{encoder_layer_forward.2} parent=131 // pred_region
                _
              $region172: #{encoder_layer_forward.2} parent=131 // pred_fallthru
                _
            $region132: #{encoder_layer_forward.2} parent=127 // pred_fallthru
              _
            // Predicated region
            $region133: #{encoder_layer_forward.2} parent=127 // pred_check
              _
            $region134: #{encoder_layer_forward.2} parent=127 // pred_check_branch
              %1608 = sbr.rel target = $region136
            $region135: #{encoder_layer_forward.2} parent=127 // pred_region
              %s1610 = ssub.s32 256, 1
              %s1611 = sshrl.u32 %s1597, 4
              // While loop
              $region137: #{encoder_layer_forward.2} parent=135 // loop_pre_header
                _
              $region138: #{encoder_layer_forward.2} parent=135 // loop_header
                %s1613 = sphi 0, %s1615
                %p1614 = scmp.ge.s32.totalorder %s1613, %s1611
                %s1618 = sphi 0, %s1655
                %s1619 = sphi %s1412, %s1658
                %s1620 = sphi %s1601, %s1659
              $region139: #{encoder_layer_forward.2} parent=135 // loop_header_branch
                %1617 = sbr.rel (%p1614) target = $region143
              $region140: #{encoder_layer_forward.2} parent=135 // loop_body
                %v1621 = vld [vmem:[%s1619] sm:%s1610]
                %1622 = vst [vmem:[%s1620] sm:%s1610] %v1621
                %v1623 = vld [vmem:[%s1619 + $0x8] sm:%s1610]
                %1624 = vst [vmem:[%s1620 + $0x8] sm:%s1610] %v1623
                %v1625 = vld [vmem:[%s1619 + $0x10] sm:%s1610]
                %1626 = vst [vmem:[%s1620 + $0x10] sm:%s1610] %v1625
                %v1627 = vld [vmem:[%s1619 + $0x18] sm:%s1610]
                %1628 = vst [vmem:[%s1620 + $0x18] sm:%s1610] %v1627
                %v1629 = vld [vmem:[%s1619 + $0x20] sm:%s1610]
                %1630 = vst [vmem:[%s1620 + $0x20] sm:%s1610] %v1629
                %v1631 = vld [vmem:[%s1619 + $0x28] sm:%s1610]
                %1632 = vst [vmem:[%s1620 + $0x28] sm:%s1610] %v1631
                %v1633 = vld [vmem:[%s1619 + $0x30] sm:%s1610]
                %1634 = vst [vmem:[%s1620 + $0x30] sm:%s1610] %v1633
                %v1635 = vld [vmem:[%s1619 + $0x38] sm:%s1610]
                %1636 = vst [vmem:[%s1620 + $0x38] sm:%s1610] %v1635
                %v1637 = vld [vmem:[%s1619 + $0x40] sm:%s1610]
                %1638 = vst [vmem:[%s1620 + $0x40] sm:%s1610] %v1637
                %v1639 = vld [vmem:[%s1619 + $0x48] sm:%s1610]
                %1640 = vst [vmem:[%s1620 + $0x48] sm:%s1610] %v1639
                %v1641 = vld [vmem:[%s1619 + $0x50] sm:%s1610]
                %1642 = vst [vmem:[%s1620 + $0x50] sm:%s1610] %v1641
                %v1643 = vld [vmem:[%s1619 + $0x58] sm:%s1610]
                %1644 = vst [vmem:[%s1620 + $0x58] sm:%s1610] %v1643
                %v1645 = vld [vmem:[%s1619 + $0x60] sm:%s1610]
                %1646 = vst [vmem:[%s1620 + $0x60] sm:%s1610] %v1645
                %v1647 = vld [vmem:[%s1619 + $0x68] sm:%s1610]
                %1648 = vst [vmem:[%s1620 + $0x68] sm:%s1610] %v1647
                %v1649 = vld [vmem:[%s1619 + $0x70] sm:%s1610]
                %1650 = vst [vmem:[%s1620 + $0x70] sm:%s1610] %v1649
                %v1651 = vld [vmem:[%s1619 + $0x78] sm:%s1610]
                %1652 = vst [vmem:[%s1620 + $0x78] sm:%s1610] %v1651
                %s1653 = sadd.s32 1, %s1618
                %p1654 = scmp.ge.s32.totalorder %s1653, %s1611
                %s1655 = scalar_select %p1654, 0, %s1653
                %s1656 = smul.u32 %s1655, 128
                %s1657 = smul.u32 %s1655, 128
                %s1658 = scalar_lea.vmem %s1412, %s1656 [#allocation8]
                %s1659 = scalar_lea.vmem %s1601, %s1657
              $region141: #{encoder_layer_forward.2} parent=135 // loop_footer
                %s1615 = sadd.s32 %s1613, 1
              $region142: #{encoder_layer_forward.2} parent=135 // loop_footer_branch
                %1612 = sbr.rel target = $region138
              $region143: #{encoder_layer_forward.2} parent=135 // loop_exit
                _
              %s1660 = sshrl.u32 %s1597, 4
              %s1661 = sand.u32 %s1597, 15
              %s1662 = smul.u32 %s1660, 16
              %s1663 = smul.u32 8, %s1662
              %s1664 = scalar_lea.vmem %s1412, %s1663 [#allocation8]
              %s1665 = smul.u32 8, %s1662
              %s1666 = scalar_lea.vmem %s1601, %s1665
              // While loop
              $region144: #{encoder_layer_forward.2} parent=135 // loop_pre_header
                _
              $region145: #{encoder_layer_forward.2} parent=135 // loop_header
                %s1668 = sphi 0, %s1670
                %p1669 = scmp.ge.s32.totalorder %s1668, %s1661
                %s1673 = sphi 0, %s1680
                %s1674 = sphi %s1664, %s1683
                %s1675 = sphi %s1666, %s1684
              $region146: #{encoder_layer_forward.2} parent=135 // loop_header_branch
                %1672 = sbr.rel (%p1669) target = $region150
              $region147: #{encoder_layer_forward.2} parent=135 // loop_body
                %v1676 = vld [vmem:[%s1674] sm:%s1610]
                %1677 = vst [vmem:[%s1675] sm:%s1610] %v1676
                %s1678 = sadd.s32 1, %s1673
                %p1679 = scmp.ge.s32.totalorder %s1678, %s1661
                %s1680 = scalar_select %p1679, 0, %s1678
                %s1681 = smul.u32 %s1680, 8
                %s1682 = smul.u32 %s1680, 8
                %s1683 = scalar_lea.vmem %s1664, %s1681 [#allocation8]
                %s1684 = scalar_lea.vmem %s1666, %s1682
              $region148: #{encoder_layer_forward.2} parent=135 // loop_footer
                %s1670 = sadd.s32 %s1668, 1
              $region149: #{encoder_layer_forward.2} parent=135 // loop_footer_branch
                %1667 = sbr.rel target = $region145
              $region150: #{encoder_layer_forward.2} parent=135 // loop_exit
                _
            $region136: #{encoder_layer_forward.2} parent=127 // pred_fallthru
              _
          $region128: #{encoder_layer_forward.2} parent=123 // pred_fallthru
            _
          %1763 = vnop
        $region124: #{encoder_layer_forward.2} parent=59 // pred_fallthru
          _
        // Predicated region
        $region173: #{encoder_layer_forward.2} parent=59 // pred_check
          %p1764 = pneg %p324
        $region174: #{encoder_layer_forward.2} parent=59 // pred_check_branch
          %1766 = sbr.rel (%p1764) target = $region176
        $region175: #{encoder_layer_forward.2} parent=59 // pred_region
          %s1767 = smul.u32 16, %s29
          %s1768 = ssub.s32 22, %s1767
          %p1769 = scmp.lt.s32.totalorder %s1768, 16
          %s1770 = scalar_select %p1769, %s1768, 16
          %s1771 = smul.u32 8, %s1770
          %s1772 = ssub.s32 128, %s1771
          %s1773 = sshll.u32 %s1772, 4
          %1774 = vsyncadd %s1414, %s1773
          %p1775 = scmp.ne.s32.totalorder 0, %s1771
          %s1776 = smul.addr %s1767, 8
          %s1777 = scalar_lea.hbm %s12, %s1776
          %s1778 = smul.u32 8, %s1770
          %s1779 = sshll.u32 %s1417, 4
          %s1780 = int_to_ptr.vmem [resolvable:$true] %s1779
          %s1781 = sshll.u32 %s1777, 4
          %s1782 = int_to_ptr.hbm [resolvable:$true] %s1781
          %s1783 = sshll.u32 %s1778, 4
          %1787 = dma.vmem_to_hbm [thread:$0]  (%p1775), %s1780, %s1783, %s1782, %s1414, 128, 128, 8
        $region176: #{encoder_layer_forward.2} parent=59 // pred_fallthru
          _
      $region60: #{encoder_layer_forward.2} parent=5 // pred_fallthru
        _
      %p1788 = scmp.le.s32.totalorder 2, %s24
      // Predicated region
      $region177: #{encoder_layer_forward.2} parent=5 // pred_check
        %p1789 = pneg %p1788
      $region178: #{encoder_layer_forward.2} parent=5 // pred_check_branch
        %1791 = sbr.rel (%p1789) target = $region180
      $region179: #{encoder_layer_forward.2} parent=5 // pred_region
        %s1792 = ssub.s32 %s24, 2
        // Predicated region
        $region181: #{encoder_layer_forward.2} parent=179 // pred_check
          %p1793 = pneg %p278
        $region182: #{encoder_layer_forward.2} parent=179 // pred_check_branch
          %1795 = sbr.rel (%p1793) target = $region184
        $region183: #{encoder_layer_forward.2} parent=179 // pred_region
          %s1796 = sand.u32 %s263, 1
          %s1797 = sand.u32 %s263, 1
          %s1798 = smul.addr %s1797, 128
          %s1799 = scalar_lea.vmem [#allocation7], %s1798
        $region184: #{encoder_layer_forward.2} parent=179 // pred_fallthru
          _
        // Predicated region
        $region185: #{encoder_layer_forward.2} parent=179 // pred_check
          %p1800 = pneg %p304
        $region186: #{encoder_layer_forward.2} parent=179 // pred_check_branch
          %1802 = sbr.rel (%p1800) target = $region188
        $region187: #{encoder_layer_forward.2} parent=179 // pred_region
          %s1803 = sand.u32 %s289, 1
          %s1804 = sand.u32 %s289, 1
          %s1805 = smul.addr %s1804, 128
          %s1806 = scalar_lea.vmem [#allocation8], %s1805
        $region188: #{encoder_layer_forward.2} parent=179 // pred_fallthru
          _
        // Predicated region
        $region189: #{encoder_layer_forward.2} parent=179 // pred_check
          %p1807 = pneg %p330
        $region190: #{encoder_layer_forward.2} parent=179 // pred_check_branch
          %1809 = sbr.rel (%p1807) target = $region192
        $region191: #{encoder_layer_forward.2} parent=179 // pred_region
          %s1810 = sand.u32 %s315, 1
          %s1811 = scalar_lea.sflag [#allocation4], %s1810
          %s1812 = sand.u32 %s315, 1
          %s1813 = smul.addr %s1812, 128
          %s1814 = scalar_lea.vmem [#allocation9], %s1813
          %1816 = dma.done %s1811, 2048
        $region192: #{encoder_layer_forward.2} parent=179 // pred_fallthru
          _
      $region180: #{encoder_layer_forward.2} parent=5 // pred_fallthru
        _
    $region6: #{encoder_layer_forward.2} parent=1 // loop_footer
      %s28 = sadd.s32 1, %s24
    $region7: #{encoder_layer_forward.2} parent=1 // loop_footer_branch
      %23 = sbr.rel target = $region3
    $region8: #{encoder_layer_forward.2} parent=1 // loop_exit
      _
    %1817 = vsyncpa [#allocation3], 1
    %s1818 = scalar_lea.sflag [#allocation3], 1
    %1819 = vsyncpa %s1818, 1
    %1820 = vsyncpa [#allocation6], 1
    %1821 = vsyncpa [#allocation4], 1
    %s1822 = scalar_lea.sflag [#allocation4], 1
    %1823 = vsyncpa %s1822, 1

// kernel: encoder_layer_forward.3
$region0: #{encoder_layer_forward.3}
  #allocation0 [shape = 'u32[]', space=smem, size = 0x4, offset = 0x4, fixed_abs, tag = 'smem constant byte address 0x4 - core index']
  #allocation1 [shape = 'u32[72,128]{1,0:T(1,128)}', space=vmem, size = 0x9000, scoped, tag = 'internal scratch']
  %s0 = inlined_call_operand.vmem [shape: f32[170,512], index: 0, kind: input, shape index: {}]
  %s1 = inlined_call_operand.vmem [shape: f32[170,64], index: 1, kind: input, shape index: {}]
  %s2 = inlined_call_operand.vmem [shape: f32[64,512], index: 2, kind: input, shape index: {}]
  %s3 = inlined_call_operand.vmem [shape: f32[512,32], index: 3, kind: input, shape index: {}]
  %s4 = inlined_call_operand.vmem [shape: f32[1,32], index: 4, kind: input, shape index: {}]
  %s5 = inlined_call_operand.vmem [shape: f32[170,32], index: 5, kind: input, shape index: {}]
  %s6 = inlined_call_operand.vmem [shape: f32[1,32], index: 6, kind: input, shape index: {}]
  %s7 = inlined_call_operand.vmem [shape: f32[1,32], index: 7, kind: input, shape index: {}]
  %s8 = inlined_call_operand.vmem [shape: f32[32,64], index: 8, kind: input, shape index: {}]
  %s9 = inlined_call_operand.vmem [shape: f32[1,64], index: 9, kind: input, shape index: {}]
  %s10 = inlined_call_operand.vmem [shape: f32[64,32], index: 10, kind: input, shape index: {}]
  %s11 = inlined_call_operand.vmem [shape: f32[1,32], index: 11, kind: input, shape index: {}]
  %s12 = inlined_call_operand.vmem [shape: f32[1,32], index: 12, kind: input, shape index: {}]
  %s13 = inlined_call_operand.vmem [shape: f32[1,32], index: 13, kind: input, shape index: {}]
  %s14 = inlined_call_operand.vmem [shape: f32[170,32], index: 14, kind: output, shape index: {}]
  %s15 = sld [smem:[#allocation0]]
  $region137: #{encoder_layer_forward.3} parent=0
    _
  %s17 = ssub.s32 1, %s15
  %s18 = scalar_select 0, %s17, %s15
  $region1: #{encoder_layer_forward.3} parent=0
    #allocation2 [shape = 'u8[131072]{0}', space=vmem, size = 0x20000, scoped, tag = 'output window, operand 0']
    loop: start=0, step=1, limit=4
    $region2: #{encoder_layer_forward.3} parent=1 // loop_pre_header
      _
    $region3: #{encoder_layer_forward.3} parent=1 // loop_header
      %s20 = sphi 0, %s24
      %p21 = scmp.ge.s32.totalorder %s20, 4
      %s30 = sphi 0, %s32
      %s33 = sphi 0, %s30
      %s34 = sphi 0, %s33
      %s50 = sphi 0, %s34
      %s56 = sphi 0, %s58
      %s59 = sphi 0, %s56
      %s60 = sphi 0, %s59
      %s76 = sphi 0, %s60
      %s80 = sphi 0, %s80
      %s82 = sphi 0, %s80
      %s83 = sphi 0, %s82
      %s97 = sphi 0, %s83
      %s101 = sphi 0, %s101
      %s103 = sphi 0, %s101
      %s104 = sphi 0, %s103
      %s118 = sphi 0, %s104
      %s122 = sphi 0, %s122
      %s124 = sphi 0, %s122
      %s125 = sphi 0, %s124
      %s139 = sphi 0, %s125
      %s145 = sphi 0, %s147
      %s148 = sphi 0, %s145
      %s149 = sphi 0, %s148
      %s165 = sphi 0, %s149
      %s169 = sphi 0, %s169
      %s171 = sphi 0, %s169
      %s172 = sphi 0, %s171
      %s186 = sphi 0, %s172
      %s190 = sphi 0, %s190
      %s192 = sphi 0, %s190
      %s193 = sphi 0, %s192
      %s207 = sphi 0, %s193
      %s211 = sphi 0, %s211
      %s213 = sphi 0, %s211
      %s214 = sphi 0, %s213
      %s228 = sphi 0, %s214
      %s232 = sphi 0, %s232
      %s234 = sphi 0, %s232
      %s235 = sphi 0, %s234
      %s249 = sphi 0, %s235
      %s253 = sphi 0, %s253
      %s255 = sphi 0, %s253
      %s256 = sphi 0, %s255
      %s270 = sphi 0, %s256
      %s274 = sphi 0, %s274
      %s276 = sphi 0, %s274
      %s277 = sphi 0, %s276
      %s291 = sphi 0, %s277
      %s295 = sphi 0, %s295
      %s297 = sphi 0, %s295
      %s298 = sphi 0, %s297
      %s312 = sphi 0, %s298
      %s316 = sphi 0, %s316
      %s318 = sphi 0, %s316
      %s319 = sphi 0, %s318
      %s333 = sphi 0, %s319
      %s339 = sphi 0, %s341
      %s342 = sphi 0, %s339
      %s343 = sphi 0, %s342
      %s359 = sphi 0, %s343
    $region4: #{encoder_layer_forward.3} parent=1 // loop_header_branch
      %23 = sbr.rel (%p21) target = $region8
    $region5: #{encoder_layer_forward.3} parent=1 // loop_body
      %s25 = ssub.s32 %s20, 1
      %s26 = ssub.s32 %s20, 2
      %s27 = sadd.s32 %s20, 1
      %s28 = ssub.s32 %s20, %s27
      %p29 = scmp.eq.s32.totalorder %s28, 0
      %s31 = sadd.s32 %s30, 1
      %s32 = scalar_select %p29, %s30, %s31
      %p35 = pneg %p29
      %p36 = scmp.eq.s32.totalorder %s20, 1
      %p37 = por %p35, %p36
      %p38 = scmp.ne.s32.totalorder %s30, %s33
      %p39 = scmp.eq.s32.totalorder %s20, 0
      %p40 = por %p38, %p39
      %p41 = scmp.ne.s32.totalorder %s30, %s33
      %p42 = scmp.eq.s32.totalorder %s25, 1
      %p43 = por %p41, %p42
      %p44 = scmp.ne.s32.totalorder %s33, %s34
      %p45 = scmp.eq.s32.totalorder %s25, 0
      %p46 = por %p44, %p45
      %p47 = scmp.ne.s32.totalorder %s33, %s34
      %p48 = scmp.eq.s32.totalorder %s26, 1
      %p49 = por %p47, %p48
      %p51 = scmp.ne.s32.totalorder %s34, %s50
      %p52 = scmp.eq.s32.totalorder %s26, 0
      %p53 = por %p51, %p52
      %s54 = ssub.s32 %s20, %s27
      %p55 = scmp.eq.s32.totalorder %s54, 0
      %s57 = sadd.s32 %s56, 1
      %s58 = scalar_select %p55, %s56, %s57
      %p61 = pneg %p55
      %p62 = scmp.eq.s32.totalorder %s20, 1
      %p63 = por %p61, %p62
      %p64 = scmp.ne.s32.totalorder %s56, %s59
      %p65 = scmp.eq.s32.totalorder %s20, 0
      %p66 = por %p64, %p65
      %p67 = scmp.ne.s32.totalorder %s56, %s59
      %p68 = scmp.eq.s32.totalorder %s25, 1
      %p69 = por %p67, %p68
      %p70 = scmp.ne.s32.totalorder %s59, %s60
      %p71 = scmp.eq.s32.totalorder %s25, 0
      %p72 = por %p70, %p71
      %p73 = scmp.ne.s32.totalorder %s59, %s60
      %p74 = scmp.eq.s32.totalorder %s26, 1
      %p75 = por %p73, %p74
      %p77 = scmp.ne.s32.totalorder %s60, %s76
      %p78 = scmp.eq.s32.totalorder %s26, 0
      %p79 = por %p77, %p78
      %s81 = sadd.s32 %s80, 1
      %p84 = scmp.eq.s32.totalorder %s20, 1
      %p85 = scmp.ne.s32.totalorder %s80, %s82
      %p86 = scmp.eq.s32.totalorder %s20, 0
      %p87 = por %p85, %p86
      %p88 = scmp.ne.s32.totalorder %s80, %s82
      %p89 = scmp.eq.s32.totalorder %s25, 1
      %p90 = por %p88, %p89
      %p91 = scmp.ne.s32.totalorder %s82, %s83
      %p92 = scmp.eq.s32.totalorder %s25, 0
      %p93 = por %p91, %p92
      %p94 = scmp.ne.s32.totalorder %s82, %s83
      %p95 = scmp.eq.s32.totalorder %s26, 1
      %p96 = por %p94, %p95
      %p98 = scmp.ne.s32.totalorder %s83, %s97
      %p99 = scmp.eq.s32.totalorder %s26, 0
      %p100 = por %p98, %p99
      %s102 = sadd.s32 %s101, 1
      %p105 = scmp.eq.s32.totalorder %s20, 1
      %p106 = scmp.ne.s32.totalorder %s101, %s103
      %p107 = scmp.eq.s32.totalorder %s20, 0
      %p108 = por %p106, %p107
      %p109 = scmp.ne.s32.totalorder %s101, %s103
      %p110 = scmp.eq.s32.totalorder %s25, 1
      %p111 = por %p109, %p110
      %p112 = scmp.ne.s32.totalorder %s103, %s104
      %p113 = scmp.eq.s32.totalorder %s25, 0
      %p114 = por %p112, %p113
      %p115 = scmp.ne.s32.totalorder %s103, %s104
      %p116 = scmp.eq.s32.totalorder %s26, 1
      %p117 = por %p115, %p116
      %p119 = scmp.ne.s32.totalorder %s104, %s118
      %p120 = scmp.eq.s32.totalorder %s26, 0
      %p121 = por %p119, %p120
      %s123 = sadd.s32 %s122, 1
      %p126 = scmp.eq.s32.totalorder %s20, 1
      %p127 = scmp.ne.s32.totalorder %s122, %s124
      %p128 = scmp.eq.s32.totalorder %s20, 0
      %p129 = por %p127, %p128
      %p130 = scmp.ne.s32.totalorder %s122, %s124
      %p131 = scmp.eq.s32.totalorder %s25, 1
      %p132 = por %p130, %p131
      %p133 = scmp.ne.s32.totalorder %s124, %s125
      %p134 = scmp.eq.s32.totalorder %s25, 0
      %p135 = por %p133, %p134
      %p136 = scmp.ne.s32.totalorder %s124, %s125
      %p137 = scmp.eq.s32.totalorder %s26, 1
      %p138 = por %p136, %p137
      %p140 = scmp.ne.s32.totalorder %s125, %s139
      %p141 = scmp.eq.s32.totalorder %s26, 0
      %p142 = por %p140, %p141
      %s143 = ssub.s32 %s20, %s27
      %p144 = scmp.eq.s32.totalorder %s143, 0
      %s146 = sadd.s32 %s145, 1
      %s147 = scalar_select %p144, %s145, %s146
      %p150 = pneg %p144
      %p151 = scmp.eq.s32.totalorder %s20, 1
      %p152 = por %p150, %p151
      %p153 = scmp.ne.s32.totalorder %s145, %s148
      %p154 = scmp.eq.s32.totalorder %s20, 0
      %p155 = por %p153, %p154
      %p156 = scmp.ne.s32.totalorder %s145, %s148
      %p157 = scmp.eq.s32.totalorder %s25, 1
      %p158 = por %p156, %p157
      %p159 = scmp.ne.s32.totalorder %s148, %s149
      %p160 = scmp.eq.s32.totalorder %s25, 0
      %p161 = por %p159, %p160
      %p162 = scmp.ne.s32.totalorder %s148, %s149
      %p163 = scmp.eq.s32.totalorder %s26, 1
      %p164 = por %p162, %p163
      %p166 = scmp.ne.s32.totalorder %s149, %s165
      %p167 = scmp.eq.s32.totalorder %s26, 0
      %p168 = por %p166, %p167
      %s170 = sadd.s32 %s169, 1
      %p173 = scmp.eq.s32.totalorder %s20, 1
      %p174 = scmp.ne.s32.totalorder %s169, %s171
      %p175 = scmp.eq.s32.totalorder %s20, 0
      %p176 = por %p174, %p175
      %p177 = scmp.ne.s32.totalorder %s169, %s171
      %p178 = scmp.eq.s32.totalorder %s25, 1
      %p179 = por %p177, %p178
      %p180 = scmp.ne.s32.totalorder %s171, %s172
      %p181 = scmp.eq.s32.totalorder %s25, 0
      %p182 = por %p180, %p181
      %p183 = scmp.ne.s32.totalorder %s171, %s172
      %p184 = scmp.eq.s32.totalorder %s26, 1
      %p185 = por %p183, %p184
      %p187 = scmp.ne.s32.totalorder %s172, %s186
      %p188 = scmp.eq.s32.totalorder %s26, 0
      %p189 = por %p187, %p188
      %s191 = sadd.s32 %s190, 1
      %p194 = scmp.eq.s32.totalorder %s20, 1
      %p195 = scmp.ne.s32.totalorder %s190, %s192
      %p196 = scmp.eq.s32.totalorder %s20, 0
      %p197 = por %p195, %p196
      %p198 = scmp.ne.s32.totalorder %s190, %s192
      %p199 = scmp.eq.s32.totalorder %s25, 1
      %p200 = por %p198, %p199
      %p201 = scmp.ne.s32.totalorder %s192, %s193
      %p202 = scmp.eq.s32.totalorder %s25, 0
      %p203 = por %p201, %p202
      %p204 = scmp.ne.s32.totalorder %s192, %s193
      %p205 = scmp.eq.s32.totalorder %s26, 1
      %p206 = por %p204, %p205
      %p208 = scmp.ne.s32.totalorder %s193, %s207
      %p209 = scmp.eq.s32.totalorder %s26, 0
      %p210 = por %p208, %p209
      %s212 = sadd.s32 %s211, 1
      %p215 = scmp.eq.s32.totalorder %s20, 1
      %p216 = scmp.ne.s32.totalorder %s211, %s213
      %p217 = scmp.eq.s32.totalorder %s20, 0
      %p218 = por %p216, %p217
      %p219 = scmp.ne.s32.totalorder %s211, %s213
      %p220 = scmp.eq.s32.totalorder %s25, 1
      %p221 = por %p219, %p220
      %p222 = scmp.ne.s32.totalorder %s213, %s214
      %p223 = scmp.eq.s32.totalorder %s25, 0
      %p224 = por %p222, %p223
      %p225 = scmp.ne.s32.totalorder %s213, %s214
      %p226 = scmp.eq.s32.totalorder %s26, 1
      %p227 = por %p225, %p226
      %p229 = scmp.ne.s32.totalorder %s214, %s228
      %p230 = scmp.eq.s32.totalorder %s26, 0
      %p231 = por %p229, %p230
      %s233 = sadd.s32 %s232, 1
      %p236 = scmp.eq.s32.totalorder %s20, 1
      %p237 = scmp.ne.s32.totalorder %s232, %s234
      %p238 = scmp.eq.s32.totalorder %s20, 0
      %p239 = por %p237, %p238
      %p240 = scmp.ne.s32.totalorder %s232, %s234
      %p241 = scmp.eq.s32.totalorder %s25, 1
      %p242 = por %p240, %p241
      %p243 = scmp.ne.s32.totalorder %s234, %s235
      %p244 = scmp.eq.s32.totalorder %s25, 0
      %p245 = por %p243, %p244
      %p246 = scmp.ne.s32.totalorder %s234, %s235
      %p247 = scmp.eq.s32.totalorder %s26, 1
      %p248 = por %p246, %p247
      %p250 = scmp.ne.s32.totalorder %s235, %s249
      %p251 = scmp.eq.s32.totalorder %s26, 0
      %p252 = por %p250, %p251
      %s254 = sadd.s32 %s253, 1
      %p257 = scmp.eq.s32.totalorder %s20, 1
      %p258 = scmp.ne.s32.totalorder %s253, %s255
      %p259 = scmp.eq.s32.totalorder %s20, 0
      %p260 = por %p258, %p259
      %p261 = scmp.ne.s32.totalorder %s253, %s255
      %p262 = scmp.eq.s32.totalorder %s25, 1
      %p263 = por %p261, %p262
      %p264 = scmp.ne.s32.totalorder %s255, %s256
      %p265 = scmp.eq.s32.totalorder %s25, 0
      %p266 = por %p264, %p265
      %p267 = scmp.ne.s32.totalorder %s255, %s256
      %p268 = scmp.eq.s32.totalorder %s26, 1
      %p269 = por %p267, %p268
      %p271 = scmp.ne.s32.totalorder %s256, %s270
      %p272 = scmp.eq.s32.totalorder %s26, 0
      %p273 = por %p271, %p272
      %s275 = sadd.s32 %s274, 1
      %p278 = scmp.eq.s32.totalorder %s20, 1
      %p279 = scmp.ne.s32.totalorder %s274, %s276
      %p280 = scmp.eq.s32.totalorder %s20, 0
      %p281 = por %p279, %p280
      %p282 = scmp.ne.s32.totalorder %s274, %s276
      %p283 = scmp.eq.s32.totalorder %s25, 1
      %p284 = por %p282, %p283
      %p285 = scmp.ne.s32.totalorder %s276, %s277
      %p286 = scmp.eq.s32.totalorder %s25, 0
      %p287 = por %p285, %p286
      %p288 = scmp.ne.s32.totalorder %s276, %s277
      %p289 = scmp.eq.s32.totalorder %s26, 1
      %p290 = por %p288, %p289
      %p292 = scmp.ne.s32.totalorder %s277, %s291
      %p293 = scmp.eq.s32.totalorder %s26, 0
      %p294 = por %p292, %p293
      %s296 = sadd.s32 %s295, 1
      %p299 = scmp.eq.s32.totalorder %s20, 1
      %p300 = scmp.ne.s32.totalorder %s295, %s297
      %p301 = scmp.eq.s32.totalorder %s20, 0
      %p302 = por %p300, %p301
      %p303 = scmp.ne.s32.totalorder %s295, %s297
      %p304 = scmp.eq.s32.totalorder %s25, 1
      %p305 = por %p303, %p304
      %p306 = scmp.ne.s32.totalorder %s297, %s298
      %p307 = scmp.eq.s32.totalorder %s25, 0
      %p308 = por %p306, %p307
      %p309 = scmp.ne.s32.totalorder %s297, %s298
      %p310 = scmp.eq.s32.totalorder %s26, 1
      %p311 = por %p309, %p310
      %p313 = scmp.ne.s32.totalorder %s298, %s312
      %p314 = scmp.eq.s32.totalorder %s26, 0
      %p315 = por %p313, %p314
      %s317 = sadd.s32 %s316, 1
      %p320 = scmp.eq.s32.totalorder %s20, 1
      %p321 = scmp.ne.s32.totalorder %s316, %s318
      %p322 = scmp.eq.s32.totalorder %s20, 0
      %p323 = por %p321, %p322
      %p324 = scmp.ne.s32.totalorder %s316, %s318
      %p325 = scmp.eq.s32.totalorder %s25, 1
      %p326 = por %p324, %p325
      %p327 = scmp.ne.s32.totalorder %s318, %s319
      %p328 = scmp.eq.s32.totalorder %s25, 0
      %p329 = por %p327, %p328
      %p330 = scmp.ne.s32.totalorder %s318, %s319
      %p331 = scmp.eq.s32.totalorder %s26, 1
      %p332 = por %p330, %p331
      %p334 = scmp.ne.s32.totalorder %s319, %s333
      %p335 = scmp.eq.s32.totalorder %s26, 0
      %p336 = por %p334, %p335
      %s337 = ssub.s32 %s20, %s27
      %p338 = scmp.eq.s32.totalorder %s337, 0
      %s340 = sadd.s32 %s339, 1
      %s341 = scalar_select %p338, %s339, %s340
      %p344 = pneg %p338
      %p345 = scmp.eq.s32.totalorder %s20, 1
      %p346 = por %p344, %p345
      %p347 = scmp.ne.s32.totalorder %s339, %s342
      %p348 = scmp.eq.s32.totalorder %s20, 0
      %p349 = por %p347, %p348
      %p350 = scmp.ne.s32.totalorder %s339, %s342
      %p351 = scmp.eq.s32.totalorder %s25, 1
      %p352 = por %p350, %p351
      %p353 = scmp.ne.s32.totalorder %s342, %s343
      %p354 = scmp.eq.s32.totalorder %s25, 0
      %p355 = por %p353, %p354
      %p356 = scmp.ne.s32.totalorder %s342, %s343
      %p357 = scmp.eq.s32.totalorder %s26, 1
      %p358 = por %p356, %p357
      %p360 = scmp.ne.s32.totalorder %s343, %s359
      %p361 = scmp.eq.s32.totalorder %s26, 0
      %p362 = por %p360, %p361
      %p363 = scmp.le.s32.totalorder 1, %s20
      %p364 = scmp.lt.s32.totalorder %s20, 3
      %p365 = pnand %p363, %p364
      %p366 = pneg %p365
      // Predicated region
      $region9: #{encoder_layer_forward.3} parent=5 // pred_check
        _
      $region10: #{encoder_layer_forward.3} parent=5 // pred_check_branch
        %368 = sbr.rel (%p365) target = $region12
      $region11: #{encoder_layer_forward.3} parent=5 // pred_region
        %s369 = ssub.s32 %s20, 1
        // Predicated region
        $region13: #{encoder_layer_forward.3} parent=11 // pred_check
          %p370 = pneg %p93
        $region14: #{encoder_layer_forward.3} parent=11 // pred_check_branch
          %372 = sbr.rel (%p370) target = $region16
        $region15: #{encoder_layer_forward.3} parent=11 // pred_region
          _
        $region16: #{encoder_layer_forward.3} parent=11 // pred_fallthru
          _
        // Predicated region
        $region17: #{encoder_layer_forward.3} parent=11 // pred_check
          %p373 = pneg %p114
        $region18: #{encoder_layer_forward.3} parent=11 // pred_check_branch
          %375 = sbr.rel (%p373) target = $region20
        $region19: #{encoder_layer_forward.3} parent=11 // pred_region
          _
        $region20: #{encoder_layer_forward.3} parent=11 // pred_fallthru
          _
        // Predicated region
        $region21: #{encoder_layer_forward.3} parent=11 // pred_check
          %p376 = pneg %p135
        $region22: #{encoder_layer_forward.3} parent=11 // pred_check_branch
          %378 = sbr.rel (%p376) target = $region24
        $region23: #{encoder_layer_forward.3} parent=11 // pred_region
          _
        $region24: #{encoder_layer_forward.3} parent=11 // pred_fallthru
          _
        // Predicated region
        $region25: #{encoder_layer_forward.3} parent=11 // pred_check
          %p379 = pneg %p182
        $region26: #{encoder_layer_forward.3} parent=11 // pred_check_branch
          %381 = sbr.rel (%p379) target = $region28
        $region27: #{encoder_layer_forward.3} parent=11 // pred_region
          _
        $region28: #{encoder_layer_forward.3} parent=11 // pred_fallthru
          _
        // Predicated region
        $region29: #{encoder_layer_forward.3} parent=11 // pred_check
          %p382 = pneg %p203
        $region30: #{encoder_layer_forward.3} parent=11 // pred_check_branch
          %384 = sbr.rel (%p382) target = $region32
        $region31: #{encoder_layer_forward.3} parent=11 // pred_region
          _
        $region32: #{encoder_layer_forward.3} parent=11 // pred_fallthru
          _
        // Predicated region
        $region33: #{encoder_layer_forward.3} parent=11 // pred_check
          %p385 = pneg %p224
        $region34: #{encoder_layer_forward.3} parent=11 // pred_check_branch
          %387 = sbr.rel (%p385) target = $region36
        $region35: #{encoder_layer_forward.3} parent=11 // pred_region
          _
        $region36: #{encoder_layer_forward.3} parent=11 // pred_fallthru
          _
        // Predicated region
        $region37: #{encoder_layer_forward.3} parent=11 // pred_check
          %p388 = pneg %p245
        $region38: #{encoder_layer_forward.3} parent=11 // pred_check_branch
          %390 = sbr.rel (%p388) target = $region40
        $region39: #{encoder_layer_forward.3} parent=11 // pred_region
          _
        $region40: #{encoder_layer_forward.3} parent=11 // pred_fallthru
          _
        // Predicated region
        $region41: #{encoder_layer_forward.3} parent=11 // pred_check
          %p391 = pneg %p266
        $region42: #{encoder_layer_forward.3} parent=11 // pred_check_branch
          %393 = sbr.rel (%p391) target = $region44
        $region43: #{encoder_layer_forward.3} parent=11 // pred_region
          _
        $region44: #{encoder_layer_forward.3} parent=11 // pred_fallthru
          _
        // Predicated region
        $region45: #{encoder_layer_forward.3} parent=11 // pred_check
          %p394 = pneg %p287
        $region46: #{encoder_layer_forward.3} parent=11 // pred_check_branch
          %396 = sbr.rel (%p394) target = $region48
        $region47: #{encoder_layer_forward.3} parent=11 // pred_region
          _
        $region48: #{encoder_layer_forward.3} parent=11 // pred_fallthru
          _
        // Predicated region
        $region49: #{encoder_layer_forward.3} parent=11 // pred_check
          %p397 = pneg %p308
        $region50: #{encoder_layer_forward.3} parent=11 // pred_check_branch
          %399 = sbr.rel (%p397) target = $region52
        $region51: #{encoder_layer_forward.3} parent=11 // pred_region
          _
        $region52: #{encoder_layer_forward.3} parent=11 // pred_fallthru
          _
        // Predicated region
        $region53: #{encoder_layer_forward.3} parent=11 // pred_check
          %p400 = pneg %p329
        $region54: #{encoder_layer_forward.3} parent=11 // pred_check_branch
          %402 = sbr.rel (%p400) target = $region56
        $region55: #{encoder_layer_forward.3} parent=11 // pred_region
          _
        $region56: #{encoder_layer_forward.3} parent=11 // pred_fallthru
          _
      $region12: #{encoder_layer_forward.3} parent=5 // pred_fallthru
        _
      %p403 = scmp.lt.s32.totalorder %s20, 2
      // Predicated region
      $region57: #{encoder_layer_forward.3} parent=5 // pred_check
        %p404 = pneg %p403
      $region58: #{encoder_layer_forward.3} parent=5 // pred_check_branch
        %406 = sbr.rel (%p404) target = $region60
      $region59: #{encoder_layer_forward.3} parent=5 // pred_region
        // Predicated region
        $region61: #{encoder_layer_forward.3} parent=59 // pred_check
          %p407 = pneg %p40
        $region62: #{encoder_layer_forward.3} parent=59 // pred_check_branch
          %409 = sbr.rel (%p407) target = $region64
        $region63: #{encoder_layer_forward.3} parent=59 // pred_region
          %s410 = smul.u32 16, %s20
          %s411 = ssub.s32 22, %s410
          %p412 = scmp.lt.s32.totalorder %s411, 16
          %s413 = scalar_select %p412, %s411, 16
          %s414 = smul.u32 8, %s413
          %s415 = smul.u32 %s414, 4
          %p416 = scmp.lt.s32.totalorder %s410, 21
          %s417 = scalar_select %p416, %s410, 21
          %s418 = smul.addr %s417, 4
          %s419 = smul.addr %s418, 8
          %s420 = scalar_lea.vmem %s0, %s419
          %s421 = smul.u32 16, %s20
          %s422 = ssub.s32 22, %s421
          %p423 = scmp.lt.s32.totalorder %s422, 16
          %s424 = scalar_select %p423, %s422, 16
          %s425 = smul.u32 8, %s424
          %s426 = smul.u32 %s425, 4
        $region64: #{encoder_layer_forward.3} parent=59 // pred_fallthru
          _
        // Predicated region
        $region65: #{encoder_layer_forward.3} parent=59 // pred_check
          %p427 = pneg %p66
        $region66: #{encoder_layer_forward.3} parent=59 // pred_check_branch
          %429 = sbr.rel (%p427) target = $region68
        $region67: #{encoder_layer_forward.3} parent=59 // pred_region
          %s430 = smul.u32 16, %s20
          %s431 = ssub.s32 22, %s430
          %p432 = scmp.lt.s32.totalorder %s431, 16
          %s433 = scalar_select %p432, %s431, 16
          %s434 = smul.u32 8, %s433
          %p435 = scmp.lt.s32.totalorder %s430, 21
          %s436 = scalar_select %p435, %s430, 21
          %s437 = smul.addr %s436, 8
          %s438 = scalar_lea.vmem %s1, %s437
          %s439 = smul.u32 16, %s20
          %s440 = ssub.s32 22, %s439
          %p441 = scmp.lt.s32.totalorder %s440, 16
          %s442 = scalar_select %p441, %s440, 16
          %s443 = smul.u32 8, %s442
        $region68: #{encoder_layer_forward.3} parent=59 // pred_fallthru
          _
        // Predicated region
        $region69: #{encoder_layer_forward.3} parent=59 // pred_check
          %p444 = pneg %p155
        $region70: #{encoder_layer_forward.3} parent=59 // pred_check_branch
          %446 = sbr.rel (%p444) target = $region72
        $region71: #{encoder_layer_forward.3} parent=59 // pred_region
          %s447 = smul.u32 16, %s20
          %s448 = ssub.s32 22, %s447
          %p449 = scmp.lt.s32.totalorder %s448, 16
          %s450 = scalar_select %p449, %s448, 16
          %s451 = smul.u32 8, %s450
          %p452 = scmp.lt.s32.totalorder %s447, 21
          %s453 = scalar_select %p452, %s447, 21
          %s454 = smul.addr %s453, 8
          %s455 = scalar_lea.vmem %s5, %s454
          %s456 = smul.u32 16, %s20
          %s457 = ssub.s32 22, %s456
          %p458 = scmp.lt.s32.totalorder %s457, 16
          %s459 = scalar_select %p458, %s457, 16
          %s460 = smul.u32 8, %s459
        $region72: #{encoder_layer_forward.3} parent=59 // pred_fallthru
          _
      $region60: #{encoder_layer_forward.3} parent=5 // pred_fallthru
        _
      %p461 = scmp.le.s32.totalorder 1, %s20
      %p462 = scmp.lt.s32.totalorder %s20, 3
      %p463 = pnand %p461, %p462
      %p464 = pneg %p463
      // Predicated region
      $region73: #{encoder_layer_forward.3} parent=5 // pred_check
        _
      $region74: #{encoder_layer_forward.3} parent=5 // pred_check_branch
        %466 = sbr.rel (%p463) target = $region76
      $region75: #{encoder_layer_forward.3} parent=5 // pred_region
        %s467 = ssub.s32 %s20, 1
        %s468 = smul.u32 16, %s25
        %s469 = ssub.s32 22, %s468
        %p470 = scmp.lt.s32.totalorder %s469, 16
        %s471 = scalar_select %p470, %s469, 16
        %s472 = smul.u32 8, %s471
        %s473 = smul.u32 %s472, 4
        %p474 = scmp.lt.s32.totalorder %s468, 21
        %s475 = scalar_select %p474, %s468, 21
        %s476 = smul.addr %s475, 4
        %s477 = smul.addr %s476, 8
        %s478 = scalar_lea.vmem %s0, %s477
        %p479 = pneg %p46
        %p480 = pneg %p43
        %s481 = smul.u32 16, %s25
        %s482 = ssub.s32 22, %s481
        %p483 = scmp.lt.s32.totalorder %s482, 16
        %s484 = scalar_select %p483, %s482, 16
        %s485 = smul.u32 8, %s484
        %p486 = scmp.lt.s32.totalorder %s481, 21
        %s487 = scalar_select %p486, %s481, 21
        %s488 = smul.addr %s487, 8
        %s489 = scalar_lea.vmem %s1, %s488
        %p490 = pneg %p72
        %p491 = pneg %p69
        %p492 = pneg %p93
        %p493 = pneg %p90
        %p494 = pneg %p114
        %p495 = pneg %p111
        %p496 = pneg %p135
        %p497 = pneg %p132
        %s498 = smul.u32 16, %s25
        %s499 = ssub.s32 22, %s498
        %p500 = scmp.lt.s32.totalorder %s499, 16
        %s501 = scalar_select %p500, %s499, 16
        %s502 = smul.u32 8, %s501
        %p503 = scmp.lt.s32.totalorder %s498, 21
        %s504 = scalar_select %p503, %s498, 21
        %s505 = smul.addr %s504, 8
        %s506 = scalar_lea.vmem %s5, %s505
        %p507 = pneg %p161
        %p508 = pneg %p158
        %p509 = pneg %p182
        %p510 = pneg %p179
        %p511 = pneg %p203
        %p512 = pneg %p200
        %p513 = pneg %p224
        %p514 = pneg %p221
        %p515 = pneg %p245
        %p516 = pneg %p242
        %p517 = pneg %p266
        %p518 = pneg %p263
        %p519 = pneg %p287
        %p520 = pneg %p284
        %p521 = pneg %p308
        %p522 = pneg %p305
        %p523 = pneg %p329
        %p524 = pneg %p326
        %p525 = pneg %p355
        %p526 = pneg %p352
        %s527 = sand.u32 %s342, 1
        %s528 = sand.u32 %s342, 1
        %s529 = smul.addr %s528, 128
        %s530 = scalar_lea.vmem [#allocation2], %s529
        %s531 = smul.u32 16, %s25
        %s532 = ssub.s32 22, %s531
        %p533 = scmp.lt.s32.totalorder %s532, 16
        %s534 = scalar_select %p533, %s532, 16
        %s535 = smul.u32 8, %s534
        %s536 = smul.u32 %s535, 4
        %p537 = scmp.lt.s32.totalorder %s531, 21
        %s538 = scalar_select %p537, %s531, 21
        %s539 = smul.addr %s538, 4
        %s540 = smul.addr %s539, 8
        %s541 = scalar_lea.vmem %s0, %s540
        %s542 = smul.u32 16, %s25
        %s543 = ssub.s32 22, %s542
        %p544 = scmp.lt.s32.totalorder %s543, 16
        %s545 = scalar_select %p544, %s543, 16
        %s546 = smul.u32 8, %s545
        %s547 = smul.u32 %s546, 4
        %s548 = smul.u32 16, %s25
        %s549 = ssub.s32 22, %s548
        %p550 = scmp.lt.s32.totalorder %s549, 16
        %s551 = scalar_select %p550, %s549, 16
        %s552 = smul.u32 8, %s551
        %p553 = scmp.lt.s32.totalorder %s548, 21
        %s554 = scalar_select %p553, %s548, 21
        %s555 = smul.addr %s554, 8
        %s556 = scalar_lea.vmem %s1, %s555
        %s557 = smul.u32 16, %s25
        %s558 = ssub.s32 22, %s557
        %p559 = scmp.lt.s32.totalorder %s558, 16
        %s560 = scalar_select %p559, %s558, 16
        %s561 = smul.u32 8, %s560
        %s562 = smul.u32 16, %s25
        %s563 = ssub.s32 22, %s562
        %p564 = scmp.lt.s32.totalorder %s563, 16
        %s565 = scalar_select %p564, %s563, 16
        %s566 = smul.u32 8, %s565
        %p567 = scmp.lt.s32.totalorder %s562, 21
        %s568 = scalar_select %p567, %s562, 21
        %s569 = smul.addr %s568, 8
        %s570 = scalar_lea.vmem %s5, %s569
        %s571 = smul.u32 16, %s25
        %s572 = ssub.s32 22, %s571
        %p573 = scmp.lt.s32.totalorder %s572, 16
        %s574 = scalar_select %p573, %s572, 16
        %s575 = smul.u32 8, %s574
        %s576 = smul.u32 16, %s25
        %s577 = ssub.s32 22, %s576
        %p578 = scmp.lt.s32.totalorder %s577, 16
        %s579 = scalar_select %p578, %s577, 16
        %s580 = smul.u32 8, %s579
        %v581 = vld [vmem:[%s556] sm:$0xff]
        %v582 = vld [vmem:[%s556 + $0x8] sm:$0xff]
        %v583 = vld [vmem:[%s556 + $0x10] sm:$0xff]
        %v584 = vld [vmem:[%s556 + $0x18] sm:$0xff]
        %v585 = vld [vmem:[%s556 + $0x20] sm:$0xff]
        %v586 = vld [vmem:[%s556 + $0x28] sm:$0xff]
        %v587 = vld [vmem:[%s556 + $0x30] sm:$0xff]
        %v588 = vld [vmem:[%s556 + $0x38] sm:$0xff]
        %v589 = vld [vmem:[%s556 + $0x40] sm:$0xff]
        %v590 = vld [vmem:[%s556 + $0x48] sm:$0xff]
        %v591 = vld [vmem:[%s556 + $0x50] sm:$0xff]
        %v592 = vld [vmem:[%s556 + $0x58] sm:$0xff]
        %v593 = vld [vmem:[%s556 + $0x60] sm:$0xff]
        %v594 = vld [vmem:[%s556 + $0x68] sm:$0xff]
        %v595 = vld [vmem:[%s556 + $0x70] sm:$0xff]
        %v596 = vld [vmem:[%s556 + $0x78] sm:$0xff]
        %v597 = vld [vmem:[%s2] sm:$0xff]
        %v598 = vld [vmem:[%s2 + $0x8] sm:$0xff]
        %v599 = vld [vmem:[%s2 + $0x10] sm:$0xff]
        %v600 = vld [vmem:[%s2 + $0x18] sm:$0xff]
        %v601 = vld [vmem:[%s2 + $0x20] sm:$0xff]
        %v602 = vld [vmem:[%s2 + $0x28] sm:$0xff]
        %v603 = vld [vmem:[%s2 + $0x30] sm:$0xff]
        %v604 = vld [vmem:[%s2 + $0x38] sm:$0xff]
        %v605 = vld [vmem:[%s2 + $0x40] sm:$0xff]
        %v606 = vld [vmem:[%s2 + $0x48] sm:$0xff]
        %v607 = vld [vmem:[%s2 + $0x50] sm:$0xff]
        %v608 = vld [vmem:[%s2 + $0x58] sm:$0xff]
        %v609 = vld [vmem:[%s2 + $0x60] sm:$0xff]
        %v610 = vld [vmem:[%s2 + $0x68] sm:$0xff]
        %v611 = vld [vmem:[%s2 + $0x70] sm:$0xff]
        %v612 = vld [vmem:[%s2 + $0x78] sm:$0xff]
        %v613 = vld [vmem:[%s2 + $0x80] sm:$0xff]
        %v614 = vld [vmem:[%s2 + $0x88] sm:$0xff]
        %v615 = vld [vmem:[%s2 + $0x90] sm:$0xff]
        %v616 = vld [vmem:[%s2 + $0x98] sm:$0xff]
        %v617 = vld [vmem:[%s2 + $0xa0] sm:$0xff]
        %v618 = vld [vmem:[%s2 + $0xa8] sm:$0xff]
        %v619 = vld [vmem:[%s2 + $0xb0] sm:$0xff]
        %v620 = vld [vmem:[%s2 + $0xb8] sm:$0xff]
        %v621 = vld [vmem:[%s2 + $0xc0] sm:$0xff]
        %v622 = vld [vmem:[%s2 + $0xc8] sm:$0xff]
        %v623 = vld [vmem:[%s2 + $0xd0] sm:$0xff]
        %v624 = vld [vmem:[%s2 + $0xd8] sm:$0xff]
        %v625 = vld [vmem:[%s2 + $0xe0] sm:$0xff]
        %v626 = vld [vmem:[%s2 + $0xe8] sm:$0xff]
        %v627 = vld [vmem:[%s2 + $0xf0] sm:$0xff]
        %v628 = vld [vmem:[%s2 + $0xf8] sm:$0xff]
        %vm629 = vcmask 523264
        %v631 = vsel %vm629, %v581, 0
        %v634 = vsel %vm629, %v582, 0
        %v637 = vsel %vm629, %v583, 0
        %v640 = vsel %vm629, %v584, 0
        %v643 = vsel %vm629, %v585, 0
        %v646 = vsel %vm629, %v586, 0
        %v649 = vsel %vm629, %v587, 0
        %v652 = vsel %vm629, %v588, 0
        %v655 = vsel %vm629, %v589, 0
        %v658 = vsel %vm629, %v590, 0
        %v661 = vsel %vm629, %v591, 0
        %v664 = vsel %vm629, %v592, 0
        %v667 = vsel %vm629, %v593, 0
        %v670 = vsel %vm629, %v594, 0
        %v673 = vsel %vm629, %v595, 0
        %v676 = vsel %vm629, %v596, 0
        %678 = vmatpush.msra.mxu0 0.0
        %679 = vmatpush.msra.mxu0 0.0
        %680 = vmatpush.msra.mxu0 0.0
        %681 = vmatpush.msra.mxu0 0.0
        %682 = vmatpush.msra.mxu0 0.0
        %683 = vmatpush.msra.mxu0 0.0
        %684 = vmatpush.msra.mxu0 0.0
        %685 = vmatpush.msra.mxu0 0.0
        %686 = vmatpush.msra.mxu0 %v625
        %687 = vmatpush.msra.mxu0 %v621
        %688 = vmatpush.msra.mxu0 %v617
        %689 = vmatpush.msra.mxu0 %v613
        %690 = vmatpush.msra.mxu0 %v609
        %691 = vmatpush.msra.mxu0 %v605
        %692 = vmatpush.msra.mxu0 %v601
        %693 = vmatpush.msra.mxu0 %v597
        %694 = vmatmul.f32.gmra.mxu0 %v631
        %v695 = vpop.f32.mrf.mxu0
        %v696 = vadd.f32 0.0, %v695
        %697 = vmatmul.f32.gmra.mxu0 %v634
        %v698 = vpop.f32.mrf.mxu0
        %v699 = vadd.f32 0.0, %v698
        %700 = vmatmul.f32.gmra.mxu0 %v637
        %v701 = vpop.f32.mrf.mxu0
        %v702 = vadd.f32 0.0, %v701
        %703 = vmatmul.f32.gmra.mxu0 %v640
        %v704 = vpop.f32.mrf.mxu0
        %v705 = vadd.f32 0.0, %v704
        %706 = vmatmul.f32.gmra.mxu0 %v643
        %v707 = vpop.f32.mrf.mxu0
        %v708 = vadd.f32 0.0, %v707
        %709 = vmatmul.f32.gmra.mxu0 %v646
        %v710 = vpop.f32.mrf.mxu0
        %v711 = vadd.f32 0.0, %v710
        %712 = vmatmul.f32.gmra.mxu0 %v649
        %v713 = vpop.f32.mrf.mxu0
        %v714 = vadd.f32 0.0, %v713
        %715 = vmatmul.f32.gmra.mxu0 %v652
        %v716 = vpop.f32.mrf.mxu0
        %v717 = vadd.f32 0.0, %v716
        %718 = vmatmul.f32.gmra.mxu0 %v655
        %v719 = vpop.f32.mrf.mxu0
        %v720 = vadd.f32 0.0, %v719
        %721 = vmatmul.f32.gmra.mxu0 %v658
        %v722 = vpop.f32.mrf.mxu0
        %v723 = vadd.f32 0.0, %v722
        %724 = vmatmul.f32.gmra.mxu0 %v661
        %v725 = vpop.f32.mrf.mxu0
        %v726 = vadd.f32 0.0, %v725
        %727 = vmatmul.f32.gmra.mxu0 %v664
        %v728 = vpop.f32.mrf.mxu0
        %v729 = vadd.f32 0.0, %v728
        %730 = vmatmul.f32.gmra.mxu0 %v667
        %v731 = vpop.f32.mrf.mxu0
        %v732 = vadd.f32 0.0, %v731
        %733 = vmatmul.f32.gmra.mxu0 %v670
        %v734 = vpop.f32.mrf.mxu0
        %v735 = vadd.f32 0.0, %v734
        %736 = vmatmul.f32.gmra.mxu0 %v673
        %v737 = vpop.f32.mrf.mxu0
        %v738 = vadd.f32 0.0, %v737
        %739 = vmatmul.f32.gmra.mxu0 %v676
        %v740 = vpop.f32.mrf.mxu0
        %v741 = vadd.f32 0.0, %v740
        %742 = vdwg.mxu0
        %743 = vmatpush.msra.mxu0 0.0
        %744 = vmatpush.msra.mxu0 0.0
        %745 = vmatpush.msra.mxu0 0.0
        %746 = vmatpush.msra.mxu0 0.0
        %747 = vmatpush.msra.mxu0 0.0
        %748 = vmatpush.msra.mxu0 0.0
        %749 = vmatpush.msra.mxu0 0.0
        %750 = vmatpush.msra.mxu0 0.0
        %751 = vmatpush.msra.mxu0 %v626
        %752 = vmatpush.msra.mxu0 %v622
        %753 = vmatpush.msra.mxu0 %v618
        %754 = vmatpush.msra.mxu0 %v614
        %755 = vmatpush.msra.mxu0 %v610
        %756 = vmatpush.msra.mxu0 %v606
        %757 = vmatpush.msra.mxu0 %v602
        %758 = vmatpush.msra.mxu0 %v598
        %759 = vmatmul.f32.gmra.mxu0 %v631
        %v760 = vpop.f32.mrf.mxu0
        %v761 = vadd.f32 0.0, %v760
        %762 = vmatmul.f32.gmra.mxu0 %v634
        %v763 = vpop.f32.mrf.mxu0
        %v764 = vadd.f32 0.0, %v763
        %765 = vmatmul.f32.gmra.mxu0 %v637
        %v766 = vpop.f32.mrf.mxu0
        %v767 = vadd.f32 0.0, %v766
        %768 = vmatmul.f32.gmra.mxu0 %v640
        %v769 = vpop.f32.mrf.mxu0
        %v770 = vadd.f32 0.0, %v769
        %771 = vmatmul.f32.gmra.mxu0 %v643
        %v772 = vpop.f32.mrf.mxu0
        %v773 = vadd.f32 0.0, %v772
        %774 = vmatmul.f32.gmra.mxu0 %v646
        %v775 = vpop.f32.mrf.mxu0
        %v776 = vadd.f32 0.0, %v775
        %777 = vmatmul.f32.gmra.mxu0 %v649
        %v778 = vpop.f32.mrf.mxu0
        %v779 = vadd.f32 0.0, %v778
        %780 = vmatmul.f32.gmra.mxu0 %v652
        %v781 = vpop.f32.mrf.mxu0
        %v782 = vadd.f32 0.0, %v781
        %783 = vmatmul.f32.gmra.mxu0 %v655
        %v784 = vpop.f32.mrf.mxu0
        %v785 = vadd.f32 0.0, %v784
        %786 = vmatmul.f32.gmra.mxu0 %v658
        %v787 = vpop.f32.mrf.mxu0
        %v788 = vadd.f32 0.0, %v787
        %789 = vmatmul.f32.gmra.mxu0 %v661
        %v790 = vpop.f32.mrf.mxu0
        %v791 = vadd.f32 0.0, %v790
        %792 = vmatmul.f32.gmra.mxu0 %v664
        %v793 = vpop.f32.mrf.mxu0
        %v794 = vadd.f32 0.0, %v793
        %795 = vmatmul.f32.gmra.mxu0 %v667
        %v796 = vpop.f32.mrf.mxu0
        %v797 = vadd.f32 0.0, %v796
        %798 = vmatmul.f32.gmra.mxu0 %v670
        %v799 = vpop.f32.mrf.mxu0
        %v800 = vadd.f32 0.0, %v799
        %801 = vmatmul.f32.gmra.mxu0 %v673
        %v802 = vpop.f32.mrf.mxu0
        %v803 = vadd.f32 0.0, %v802
        %804 = vmatmul.f32.gmra.mxu0 %v676
        %v805 = vpop.f32.mrf.mxu0
        %v806 = vadd.f32 0.0, %v805
        %807 = vdwg.mxu0
        %808 = vmatpush.msra.mxu0 0.0
        %809 = vmatpush.msra.mxu0 0.0
        %810 = vmatpush.msra.mxu0 0.0
        %811 = vmatpush.msra.mxu0 0.0
        %812 = vmatpush.msra.mxu0 0.0
        %813 = vmatpush.msra.mxu0 0.0
        %814 = vmatpush.msra.mxu0 0.0
        %815 = vmatpush.msra.mxu0 0.0
        %816 = vmatpush.msra.mxu0 %v627
        %817 = vmatpush.msra.mxu0 %v623
        %818 = vmatpush.msra.mxu0 %v619
        %819 = vmatpush.msra.mxu0 %v615
        %820 = vmatpush.msra.mxu0 %v611
        %821 = vmatpush.msra.mxu0 %v607
        %822 = vmatpush.msra.mxu0 %v603
        %823 = vmatpush.msra.mxu0 %v599
        %824 = vmatmul.f32.gmra.mxu0 %v631
        %v825 = vpop.f32.mrf.mxu0
        %v826 = vadd.f32 0.0, %v825
        %827 = vmatmul.f32.gmra.mxu0 %v634
        %v828 = vpop.f32.mrf.mxu0
        %v829 = vadd.f32 0.0, %v828
        %830 = vmatmul.f32.gmra.mxu0 %v637
        %v831 = vpop.f32.mrf.mxu0
        %v832 = vadd.f32 0.0, %v831
        %833 = vmatmul.f32.gmra.mxu0 %v640
        %v834 = vpop.f32.mrf.mxu0
        %v835 = vadd.f32 0.0, %v834
        %836 = vmatmul.f32.gmra.mxu0 %v643
        %v837 = vpop.f32.mrf.mxu0
        %v838 = vadd.f32 0.0, %v837
        %839 = vmatmul.f32.gmra.mxu0 %v646
        %v840 = vpop.f32.mrf.mxu0
        %v841 = vadd.f32 0.0, %v840
        %842 = vmatmul.f32.gmra.mxu0 %v649
        %v843 = vpop.f32.mrf.mxu0
        %v844 = vadd.f32 0.0, %v843
        %845 = vmatmul.f32.gmra.mxu0 %v652
        %v846 = vpop.f32.mrf.mxu0
        %v847 = vadd.f32 0.0, %v846
        %848 = vmatmul.f32.gmra.mxu0 %v655
        %v849 = vpop.f32.mrf.mxu0
        %v850 = vadd.f32 0.0, %v849
        %851 = vmatmul.f32.gmra.mxu0 %v658
        %v852 = vpop.f32.mrf.mxu0
        %v853 = vadd.f32 0.0, %v852
        %854 = vmatmul.f32.gmra.mxu0 %v661
        %v855 = vpop.f32.mrf.mxu0
        %v856 = vadd.f32 0.0, %v855
        %857 = vmatmul.f32.gmra.mxu0 %v664
        %v858 = vpop.f32.mrf.mxu0
        %v859 = vadd.f32 0.0, %v858
        %860 = vmatmul.f32.gmra.mxu0 %v667
        %v861 = vpop.f32.mrf.mxu0
        %v862 = vadd.f32 0.0, %v861
        %863 = vmatmul.f32.gmra.mxu0 %v670
        %v864 = vpop.f32.mrf.mxu0
        %v865 = vadd.f32 0.0, %v864
        %866 = vmatmul.f32.gmra.mxu0 %v673
        %v867 = vpop.f32.mrf.mxu0
        %v868 = vadd.f32 0.0, %v867
        %869 = vmatmul.f32.gmra.mxu0 %v676
        %v870 = vpop.f32.mrf.mxu0
        %v871 = vadd.f32 0.0, %v870
        %872 = vdwg.mxu0
        %873 = vmatpush.msra.mxu0 0.0
        %874 = vmatpush.msra.mxu0 0.0
        %875 = vmatpush.msra.mxu0 0.0
        %876 = vmatpush.msra.mxu0 0.0
        %877 = vmatpush.msra.mxu0 0.0
        %878 = vmatpush.msra.mxu0 0.0
        %879 = vmatpush.msra.mxu0 0.0
        %880 = vmatpush.msra.mxu0 0.0
        %881 = vmatpush.msra.mxu0 %v628
        %882 = vmatpush.msra.mxu0 %v624
        %883 = vmatpush.msra.mxu0 %v620
        %884 = vmatpush.msra.mxu0 %v616
        %885 = vmatpush.msra.mxu0 %v612
        %886 = vmatpush.msra.mxu0 %v608
        %887 = vmatpush.msra.mxu0 %v604
        %888 = vmatpush.msra.mxu0 %v600
        %889 = vmatmul.f32.gmra.mxu0 %v631
        %v890 = vpop.f32.mrf.mxu0
        %v891 = vadd.f32 0.0, %v890
        %892 = vmatmul.f32.gmra.mxu0 %v634
        %v893 = vpop.f32.mrf.mxu0
        %v894 = vadd.f32 0.0, %v893
        %895 = vmatmul.f32.gmra.mxu0 %v637
        %v896 = vpop.f32.mrf.mxu0
        %v897 = vadd.f32 0.0, %v896
        %898 = vmatmul.f32.gmra.mxu0 %v640
        %v899 = vpop.f32.mrf.mxu0
        %v900 = vadd.f32 0.0, %v899
        %901 = vmatmul.f32.gmra.mxu0 %v643
        %v902 = vpop.f32.mrf.mxu0
        %v903 = vadd.f32 0.0, %v902
        %904 = vmatmul.f32.gmra.mxu0 %v646
        %v905 = vpop.f32.mrf.mxu0
        %v906 = vadd.f32 0.0, %v905
        %907 = vmatmul.f32.gmra.mxu0 %v649
        %v908 = vpop.f32.mrf.mxu0
        %v909 = vadd.f32 0.0, %v908
        %910 = vmatmul.f32.gmra.mxu0 %v652
        %v911 = vpop.f32.mrf.mxu0
        %v912 = vadd.f32 0.0, %v911
        %913 = vmatmul.f32.gmra.mxu0 %v655
        %v914 = vpop.f32.mrf.mxu0
        %v915 = vadd.f32 0.0, %v914
        %916 = vmatmul.f32.gmra.mxu0 %v658
        %v917 = vpop.f32.mrf.mxu0
        %v918 = vadd.f32 0.0, %v917
        %919 = vmatmul.f32.gmra.mxu0 %v661
        %v920 = vpop.f32.mrf.mxu0
        %v921 = vadd.f32 0.0, %v920
        %922 = vmatmul.f32.gmra.mxu0 %v664
        %v923 = vpop.f32.mrf.mxu0
        %v924 = vadd.f32 0.0, %v923
        %925 = vmatmul.f32.gmra.mxu0 %v667
        %v926 = vpop.f32.mrf.mxu0
        %v927 = vadd.f32 0.0, %v926
        %928 = vmatmul.f32.gmra.mxu0 %v670
        %v929 = vpop.f32.mrf.mxu0
        %v930 = vadd.f32 0.0, %v929
        %931 = vmatmul.f32.gmra.mxu0 %v673
        %v932 = vpop.f32.mrf.mxu0
        %v933 = vadd.f32 0.0, %v932
        %934 = vmatmul.f32.gmra.mxu0 %v676
        %v935 = vpop.f32.mrf.mxu0
        %v936 = vadd.f32 0.0, %v935
        %937 = vdwg.mxu0
        %v938 = vld [vmem:[%s541] sm:$0xff]
        %v939 = vld [vmem:[%s541 + $0x8] sm:$0xff]
        %v940 = vld [vmem:[%s541 + $0x10] sm:$0xff]
        %v941 = vld [vmem:[%s541 + $0x18] sm:$0xff]
        %v942 = vld [vmem:[%s541 + $0x20] sm:$0xff]
        %v943 = vld [vmem:[%s541 + $0x28] sm:$0xff]
        %v944 = vld [vmem:[%s541 + $0x30] sm:$0xff]
        %v945 = vld [vmem:[%s541 + $0x38] sm:$0xff]
        %v946 = vld [vmem:[%s541 + $0x40] sm:$0xff]
        %v947 = vld [vmem:[%s541 + $0x48] sm:$0xff]
        %v948 = vld [vmem:[%s541 + $0x50] sm:$0xff]
        %v949 = vld [vmem:[%s541 + $0x58] sm:$0xff]
        %v950 = vld [vmem:[%s541 + $0x60] sm:$0xff]
        %v951 = vld [vmem:[%s541 + $0x68] sm:$0xff]
        %v952 = vld [vmem:[%s541 + $0x70] sm:$0xff]
        %v953 = vld [vmem:[%s541 + $0x78] sm:$0xff]
        %v954 = vld [vmem:[%s541 + $0x80] sm:$0xff]
        %v955 = vld [vmem:[%s541 + $0x88] sm:$0xff]
        %v956 = vld [vmem:[%s541 + $0x90] sm:$0xff]
        %v957 = vld [vmem:[%s541 + $0x98] sm:$0xff]
        %v958 = vld [vmem:[%s541 + $0xa0] sm:$0xff]
        %v959 = vld [vmem:[%s541 + $0xa8] sm:$0xff]
        %v960 = vld [vmem:[%s541 + $0xb0] sm:$0xff]
        %v961 = vld [vmem:[%s541 + $0xb8] sm:$0xff]
        %v962 = vld [vmem:[%s541 + $0xc0] sm:$0xff]
        %v963 = vld [vmem:[%s541 + $0xc8] sm:$0xff]
        %v964 = vld [vmem:[%s541 + $0xd0] sm:$0xff]
        %v965 = vld [vmem:[%s541 + $0xd8] sm:$0xff]
        %v966 = vld [vmem:[%s541 + $0xe0] sm:$0xff]
        %v967 = vld [vmem:[%s541 + $0xe8] sm:$0xff]
        %v968 = vld [vmem:[%s541 + $0xf0] sm:$0xff]
        %v969 = vld [vmem:[%s541 + $0xf8] sm:$0xff]
        %v970 = vld [vmem:[%s541 + $0x100] sm:$0xff]
        %v971 = vld [vmem:[%s541 + $0x108] sm:$0xff]
        %v972 = vld [vmem:[%s541 + $0x110] sm:$0xff]
        %v973 = vld [vmem:[%s541 + $0x118] sm:$0xff]
        %v974 = vld [vmem:[%s541 + $0x120] sm:$0xff]
        %v975 = vld [vmem:[%s541 + $0x128] sm:$0xff]
        %v976 = vld [vmem:[%s541 + $0x130] sm:$0xff]
        %v977 = vld [vmem:[%s541 + $0x138] sm:$0xff]
        %v978 = vld [vmem:[%s541 + $0x140] sm:$0xff]
        %v979 = vld [vmem:[%s541 + $0x148] sm:$0xff]
        %v980 = vld [vmem:[%s541 + $0x150] sm:$0xff]
        %v981 = vld [vmem:[%s541 + $0x158] sm:$0xff]
        %v982 = vld [vmem:[%s541 + $0x160] sm:$0xff]
        %v983 = vld [vmem:[%s541 + $0x168] sm:$0xff]
        %v984 = vld [vmem:[%s541 + $0x170] sm:$0xff]
        %v985 = vld [vmem:[%s541 + $0x178] sm:$0xff]
        %v986 = vld [vmem:[%s541 + $0x180] sm:$0xff]
        %v987 = vld [vmem:[%s541 + $0x188] sm:$0xff]
        %v988 = vld [vmem:[%s541 + $0x190] sm:$0xff]
        %v989 = vld [vmem:[%s541 + $0x198] sm:$0xff]
        %v990 = vld [vmem:[%s541 + $0x1a0] sm:$0xff]
        %v991 = vld [vmem:[%s541 + $0x1a8] sm:$0xff]
        %v992 = vld [vmem:[%s541 + $0x1b0] sm:$0xff]
        %v993 = vld [vmem:[%s541 + $0x1b8] sm:$0xff]
        %v994 = vld [vmem:[%s541 + $0x1c0] sm:$0xff]
        %v995 = vld [vmem:[%s541 + $0x1c8] sm:$0xff]
        %v996 = vld [vmem:[%s541 + $0x1d0] sm:$0xff]
        %v997 = vld [vmem:[%s541 + $0x1d8] sm:$0xff]
        %v998 = vld [vmem:[%s541 + $0x1e0] sm:$0xff]
        %v999 = vld [vmem:[%s541 + $0x1e8] sm:$0xff]
        %v1000 = vld [vmem:[%s541 + $0x1f0] sm:$0xff]
        %v1001 = vld [vmem:[%s541 + $0x1f8] sm:$0xff]
        %v1002 = vmul.f32 %v938, %v696
        %v1003 = vmul.f32 %v939, %v761
        %v1004 = vmul.f32 %v940, %v826
        %v1005 = vmul.f32 %v941, %v891
        %v1006 = vmul.f32 %v942, %v699
        %v1007 = vmul.f32 %v943, %v764
        %v1008 = vmul.f32 %v944, %v829
        %v1009 = vmul.f32 %v945, %v894
        %v1010 = vmul.f32 %v946, %v702
        %v1011 = vmul.f32 %v947, %v767
        %v1012 = vmul.f32 %v948, %v832
        %v1013 = vmul.f32 %v949, %v897
        %v1014 = vmul.f32 %v950, %v705
        %v1015 = vmul.f32 %v951, %v770
        %v1016 = vmul.f32 %v952, %v835
        %v1017 = vmul.f32 %v953, %v900
        %v1018 = vmul.f32 %v954, %v708
        %v1019 = vmul.f32 %v955, %v773
        %v1020 = vmul.f32 %v956, %v838
        %v1021 = vmul.f32 %v957, %v903
        %v1022 = vmul.f32 %v958, %v711
        %v1023 = vmul.f32 %v959, %v776
        %v1024 = vmul.f32 %v960, %v841
        %v1025 = vmul.f32 %v961, %v906
        %v1026 = vmul.f32 %v962, %v714
        %v1027 = vmul.f32 %v963, %v779
        %v1028 = vmul.f32 %v964, %v844
        %v1029 = vmul.f32 %v965, %v909
        %v1030 = vmul.f32 %v966, %v717
        %v1031 = vmul.f32 %v967, %v782
        %v1032 = vmul.f32 %v968, %v847
        %v1033 = vmul.f32 %v969, %v912
        %v1034 = vmul.f32 %v970, %v720
        %v1035 = vmul.f32 %v971, %v785
        %v1036 = vmul.f32 %v972, %v850
        %v1037 = vmul.f32 %v973, %v915
        %v1038 = vmul.f32 %v974, %v723
        %v1039 = vmul.f32 %v975, %v788
        %v1040 = vmul.f32 %v976, %v853
        %v1041 = vmul.f32 %v977, %v918
        %v1042 = vmul.f32 %v978, %v726
        %v1043 = vmul.f32 %v979, %v791
        %v1044 = vmul.f32 %v980, %v856
        %v1045 = vmul.f32 %v981, %v921
        %v1046 = vmul.f32 %v982, %v729
        %v1047 = vmul.f32 %v983, %v794
        %v1048 = vmul.f32 %v984, %v859
        %v1049 = vmul.f32 %v985, %v924
        %v1050 = vmul.f32 %v986, %v732
        %v1051 = vmul.f32 %v987, %v797
        %v1052 = vmul.f32 %v988, %v862
        %v1053 = vmul.f32 %v989, %v927
        %v1054 = vmul.f32 %v990, %v735
        %v1055 = vmul.f32 %v991, %v800
        %v1056 = vmul.f32 %v992, %v865
        %v1057 = vmul.f32 %v993, %v930
        %v1058 = vmul.f32 %v994, %v738
        %v1059 = vmul.f32 %v995, %v803
        %v1060 = vmul.f32 %v996, %v868
        %v1061 = vmul.f32 %v997, %v933
        %v1062 = vmul.f32 %v998, %v741
        %v1063 = vmul.f32 %v999, %v806
        %v1064 = vmul.f32 %v1000, %v871
        %v1065 = vmul.f32 %v1001, %v936
        %v1066 = vld [vmem:[%s3] sm:$0xff]
        %v1067 = vld [vmem:[%s3 + $0x8] sm:$0xff]
        %v1068 = vld [vmem:[%s3 + $0x10] sm:$0xff]
        %v1069 = vld [vmem:[%s3 + $0x18] sm:$0xff]
        %v1070 = vld [vmem:[%s3 + $0x20] sm:$0xff]
        %v1071 = vld [vmem:[%s3 + $0x28] sm:$0xff]
        %v1072 = vld [vmem:[%s3 + $0x30] sm:$0xff]
        %v1073 = vld [vmem:[%s3 + $0x38] sm:$0xff]
        %v1074 = vld [vmem:[%s3 + $0x40] sm:$0xff]
        %v1075 = vld [vmem:[%s3 + $0x48] sm:$0xff]
        %v1076 = vld [vmem:[%s3 + $0x50] sm:$0xff]
        %v1077 = vld [vmem:[%s3 + $0x58] sm:$0xff]
        %v1078 = vld [vmem:[%s3 + $0x60] sm:$0xff]
        %v1079 = vld [vmem:[%s3 + $0x68] sm:$0xff]
        %v1080 = vld [vmem:[%s3 + $0x70] sm:$0xff]
        %v1081 = vld [vmem:[%s3 + $0x78] sm:$0xff]
        %v1082 = vld [vmem:[%s3 + $0x80] sm:$0xff]
        %v1083 = vld [vmem:[%s3 + $0x88] sm:$0xff]
        %v1084 = vld [vmem:[%s3 + $0x90] sm:$0xff]
        %v1085 = vld [vmem:[%s3 + $0x98] sm:$0xff]
        %v1086 = vld [vmem:[%s3 + $0xa0] sm:$0xff]
        %v1087 = vld [vmem:[%s3 + $0xa8] sm:$0xff]
        %v1088 = vld [vmem:[%s3 + $0xb0] sm:$0xff]
        %v1089 = vld [vmem:[%s3 + $0xb8] sm:$0xff]
        %v1090 = vld [vmem:[%s3 + $0xc0] sm:$0xff]
        %v1091 = vld [vmem:[%s3 + $0xc8] sm:$0xff]
        %v1092 = vld [vmem:[%s3 + $0xd0] sm:$0xff]
        %v1093 = vld [vmem:[%s3 + $0xd8] sm:$0xff]
        %v1094 = vld [vmem:[%s3 + $0xe0] sm:$0xff]
        %v1095 = vld [vmem:[%s3 + $0xe8] sm:$0xff]
        %v1096 = vld [vmem:[%s3 + $0xf0] sm:$0xff]
        %v1097 = vld [vmem:[%s3 + $0xf8] sm:$0xff]
        %v1098 = vld [vmem:[%s3 + $0x100] sm:$0xff]
        %v1099 = vld [vmem:[%s3 + $0x108] sm:$0xff]
        %v1100 = vld [vmem:[%s3 + $0x110] sm:$0xff]
        %v1101 = vld [vmem:[%s3 + $0x118] sm:$0xff]
        %v1102 = vld [vmem:[%s3 + $0x120] sm:$0xff]
        %v1103 = vld [vmem:[%s3 + $0x128] sm:$0xff]
        %v1104 = vld [vmem:[%s3 + $0x130] sm:$0xff]
        %v1105 = vld [vmem:[%s3 + $0x138] sm:$0xff]
        %v1106 = vld [vmem:[%s3 + $0x140] sm:$0xff]
        %v1107 = vld [vmem:[%s3 + $0x148] sm:$0xff]
        %v1108 = vld [vmem:[%s3 + $0x150] sm:$0xff]
        %v1109 = vld [vmem:[%s3 + $0x158] sm:$0xff]
        %v1110 = vld [vmem:[%s3 + $0x160] sm:$0xff]
        %v1111 = vld [vmem:[%s3 + $0x168] sm:$0xff]
        %v1112 = vld [vmem:[%s3 + $0x170] sm:$0xff]
        %v1113 = vld [vmem:[%s3 + $0x178] sm:$0xff]
        %v1114 = vld [vmem:[%s3 + $0x180] sm:$0xff]
        %v1115 = vld [vmem:[%s3 + $0x188] sm:$0xff]
        %v1116 = vld [vmem:[%s3 + $0x190] sm:$0xff]
        %v1117 = vld [vmem:[%s3 + $0x198] sm:$0xff]
        %v1118 = vld [vmem:[%s3 + $0x1a0] sm:$0xff]
        %v1119 = vld [vmem:[%s3 + $0x1a8] sm:$0xff]
        %v1120 = vld [vmem:[%s3 + $0x1b0] sm:$0xff]
        %v1121 = vld [vmem:[%s3 + $0x1b8] sm:$0xff]
        %v1122 = vld [vmem:[%s3 + $0x1c0] sm:$0xff]
        %v1123 = vld [vmem:[%s3 + $0x1c8] sm:$0xff]
        %v1124 = vld [vmem:[%s3 + $0x1d0] sm:$0xff]
        %v1125 = vld [vmem:[%s3 + $0x1d8] sm:$0xff]
        %v1126 = vld [vmem:[%s3 + $0x1e0] sm:$0xff]
        %v1127 = vld [vmem:[%s3 + $0x1e8] sm:$0xff]
        %v1128 = vld [vmem:[%s3 + $0x1f0] sm:$0xff]
        %v1129 = vld [vmem:[%s3 + $0x1f8] sm:$0xff]
        %v1130 = vld [vmem:[%s4] sm:$0x1]
        %v1132 = vperm.slane %v1130, 0
        %1134 = vmatpush.msra.mxu0 %v1081
        %1135 = vmatpush.msra.mxu0 %v1080
        %1136 = vmatpush.msra.mxu0 %v1079
        %1137 = vmatpush.msra.mxu0 %v1078
        %1138 = vmatpush.msra.mxu0 %v1077
        %1139 = vmatpush.msra.mxu0 %v1076
        %1140 = vmatpush.msra.mxu0 %v1075
        %1141 = vmatpush.msra.mxu0 %v1074
        %1142 = vmatpush.msra.mxu0 %v1073
        %1143 = vmatpush.msra.mxu0 %v1072
        %1144 = vmatpush.msra.mxu0 %v1071
        %1145 = vmatpush.msra.mxu0 %v1070
        %1146 = vmatpush.msra.mxu0 %v1069
        %1147 = vmatpush.msra.mxu0 %v1068
        %1148 = vmatpush.msra.mxu0 %v1067
        %1149 = vmatpush.msra.mxu0 %v1066
        %1150 = vmatmul.f32.gmra.mxu0 %v1002
        %v1151 = vpop.f32.mrf.mxu0
        %v1152 = vadd.f32 %v1132, %v1151
        %1153 = vmatmul.f32.gmra.mxu0 %v1006
        %v1154 = vpop.f32.mrf.mxu0
        %v1155 = vadd.f32 %v1132, %v1154
        %1156 = vmatmul.f32.gmra.mxu0 %v1010
        %v1157 = vpop.f32.mrf.mxu0
        %v1158 = vadd.f32 %v1132, %v1157
        %1159 = vmatmul.f32.gmra.mxu0 %v1014
        %v1160 = vpop.f32.mrf.mxu0
        %v1161 = vadd.f32 %v1132, %v1160
        %1162 = vmatmul.f32.gmra.mxu0 %v1018
        %v1163 = vpop.f32.mrf.mxu0
        %v1164 = vadd.f32 %v1132, %v1163
        %1165 = vmatmul.f32.gmra.mxu0 %v1022
        %v1166 = vpop.f32.mrf.mxu0
        %v1167 = vadd.f32 %v1132, %v1166
        %1168 = vmatmul.f32.gmra.mxu0 %v1026
        %v1169 = vpop.f32.mrf.mxu0
        %v1170 = vadd.f32 %v1132, %v1169
        %1171 = vmatmul.f32.gmra.mxu0 %v1030
        %v1172 = vpop.f32.mrf.mxu0
        %v1173 = vadd.f32 %v1132, %v1172
        %1174 = vmatmul.f32.gmra.mxu0 %v1034
        %v1175 = vpop.f32.mrf.mxu0
        %v1176 = vadd.f32 %v1132, %v1175
        %1177 = vmatmul.f32.gmra.mxu0 %v1038
        %v1178 = vpop.f32.mrf.mxu0
        %v1179 = vadd.f32 %v1132, %v1178
        %1180 = vmatmul.f32.gmra.mxu0 %v1042
        %v1181 = vpop.f32.mrf.mxu0
        %v1182 = vadd.f32 %v1132, %v1181
        %1183 = vmatmul.f32.gmra.mxu0 %v1046
        %v1184 = vpop.f32.mrf.mxu0
        %v1185 = vadd.f32 %v1132, %v1184
        %1186 = vmatmul.f32.gmra.mxu0 %v1050
        %v1187 = vpop.f32.mrf.mxu0
        %v1188 = vadd.f32 %v1132, %v1187
        %1189 = vmatmul.f32.gmra.mxu0 %v1054
        %v1190 = vpop.f32.mrf.mxu0
        %v1191 = vadd.f32 %v1132, %v1190
        %1192 = vmatmul.f32.gmra.mxu0 %v1058
        %v1193 = vpop.f32.mrf.mxu0
        %v1194 = vadd.f32 %v1132, %v1193
        %1195 = vmatmul.f32.gmra.mxu0 %v1062
        %v1196 = vpop.f32.mrf.mxu0
        %v1197 = vadd.f32 %v1132, %v1196
        %1198 = vdwg.mxu0
        %1199 = vmatpush.msra.mxu0 %v1097
        %1200 = vmatpush.msra.mxu0 %v1096
        %1201 = vmatpush.msra.mxu0 %v1095
        %1202 = vmatpush.msra.mxu0 %v1094
        %1203 = vmatpush.msra.mxu0 %v1093
        %1204 = vmatpush.msra.mxu0 %v1092
        %1205 = vmatpush.msra.mxu0 %v1091
        %1206 = vmatpush.msra.mxu0 %v1090
        %1207 = vmatpush.msra.mxu0 %v1089
        %1208 = vmatpush.msra.mxu0 %v1088
        %1209 = vmatpush.msra.mxu0 %v1087
        %1210 = vmatpush.msra.mxu0 %v1086
        %1211 = vmatpush.msra.mxu0 %v1085
        %1212 = vmatpush.msra.mxu0 %v1084
        %1213 = vmatpush.msra.mxu0 %v1083
        %1214 = vmatpush.msra.mxu0 %v1082
        %1215 = vmatmul.f32.gmra.mxu0 %v1003
        %v1216 = vpop.f32.mrf.mxu0
        %v1217 = vadd.f32 %v1152, %v1216
        %1218 = vmatmul.f32.gmra.mxu0 %v1007
        %v1219 = vpop.f32.mrf.mxu0
        %v1220 = vadd.f32 %v1155, %v1219
        %1221 = vmatmul.f32.gmra.mxu0 %v1011
        %v1222 = vpop.f32.mrf.mxu0
        %v1223 = vadd.f32 %v1158, %v1222
        %1224 = vmatmul.f32.gmra.mxu0 %v1015
        %v1225 = vpop.f32.mrf.mxu0
        %v1226 = vadd.f32 %v1161, %v1225
        %1227 = vmatmul.f32.gmra.mxu0 %v1019
        %v1228 = vpop.f32.mrf.mxu0
        %v1229 = vadd.f32 %v1164, %v1228
        %1230 = vmatmul.f32.gmra.mxu0 %v1023
        %v1231 = vpop.f32.mrf.mxu0
        %v1232 = vadd.f32 %v1167, %v1231
        %1233 = vmatmul.f32.gmra.mxu0 %v1027
        %v1234 = vpop.f32.mrf.mxu0
        %v1235 = vadd.f32 %v1170, %v1234
        %1236 = vmatmul.f32.gmra.mxu0 %v1031
        %v1237 = vpop.f32.mrf.mxu0
        %v1238 = vadd.f32 %v1173, %v1237
        %1239 = vmatmul.f32.gmra.mxu0 %v1035
        %v1240 = vpop.f32.mrf.mxu0
        %v1241 = vadd.f32 %v1176, %v1240
        %1242 = vmatmul.f32.gmra.mxu0 %v1039
        %v1243 = vpop.f32.mrf.mxu0
        %v1244 = vadd.f32 %v1179, %v1243
        %1245 = vmatmul.f32.gmra.mxu0 %v1043
        %v1246 = vpop.f32.mrf.mxu0
        %v1247 = vadd.f32 %v1182, %v1246
        %1248 = vmatmul.f32.gmra.mxu0 %v1047
        %v1249 = vpop.f32.mrf.mxu0
        %v1250 = vadd.f32 %v1185, %v1249
        %1251 = vmatmul.f32.gmra.mxu0 %v1051
        %v1252 = vpop.f32.mrf.mxu0
        %v1253 = vadd.f32 %v1188, %v1252
        %1254 = vmatmul.f32.gmra.mxu0 %v1055
        %v1255 = vpop.f32.mrf.mxu0
        %v1256 = vadd.f32 %v1191, %v1255
        %1257 = vmatmul.f32.gmra.mxu0 %v1059
        %v1258 = vpop.f32.mrf.mxu0
        %v1259 = vadd.f32 %v1194, %v1258
        %1260 = vmatmul.f32.gmra.mxu0 %v1063
        %v1261 = vpop.f32.mrf.mxu0
        %v1262 = vadd.f32 %v1197, %v1261
        %1263 = vdwg.mxu0
        %1264 = vmatpush.msra.mxu0 %v1113
        %1265 = vmatpush.msra.mxu0 %v1112
        %1266 = vmatpush.msra.mxu0 %v1111
        %1267 = vmatpush.msra.mxu0 %v1110
        %1268 = vmatpush.msra.mxu0 %v1109
        %1269 = vmatpush.msra.mxu0 %v1108
        %1270 = vmatpush.msra.mxu0 %v1107
        %1271 = vmatpush.msra.mxu0 %v1106
        %1272 = vmatpush.msra.mxu0 %v1105
        %1273 = vmatpush.msra.mxu0 %v1104
        %1274 = vmatpush.msra.mxu0 %v1103
        %1275 = vmatpush.msra.mxu0 %v1102
        %1276 = vmatpush.msra.mxu0 %v1101
        %1277 = vmatpush.msra.mxu0 %v1100
        %1278 = vmatpush.msra.mxu0 %v1099
        %1279 = vmatpush.msra.mxu0 %v1098
        %1280 = vmatmul.f32.gmra.mxu0 %v1004
        %v1281 = vpop.f32.mrf.mxu0
        %v1282 = vadd.f32 %v1217, %v1281
        %1283 = vmatmul.f32.gmra.mxu0 %v1008
        %v1284 = vpop.f32.mrf.mxu0
        %v1285 = vadd.f32 %v1220, %v1284
        %1286 = vmatmul.f32.gmra.mxu0 %v1012
        %v1287 = vpop.f32.mrf.mxu0
        %v1288 = vadd.f32 %v1223, %v1287
        %1289 = vmatmul.f32.gmra.mxu0 %v1016
        %v1290 = vpop.f32.mrf.mxu0
        %v1291 = vadd.f32 %v1226, %v1290
        %1292 = vmatmul.f32.gmra.mxu0 %v1020
        %v1293 = vpop.f32.mrf.mxu0
        %v1294 = vadd.f32 %v1229, %v1293
        %1295 = vmatmul.f32.gmra.mxu0 %v1024
        %v1296 = vpop.f32.mrf.mxu0
        %v1297 = vadd.f32 %v1232, %v1296
        %1298 = vmatmul.f32.gmra.mxu0 %v1028
        %v1299 = vpop.f32.mrf.mxu0
        %v1300 = vadd.f32 %v1235, %v1299
        %1301 = vmatmul.f32.gmra.mxu0 %v1032
        %v1302 = vpop.f32.mrf.mxu0
        %v1303 = vadd.f32 %v1238, %v1302
        %1304 = vmatmul.f32.gmra.mxu0 %v1036
        %v1305 = vpop.f32.mrf.mxu0
        %v1306 = vadd.f32 %v1241, %v1305
        %1307 = vmatmul.f32.gmra.mxu0 %v1040
        %v1308 = vpop.f32.mrf.mxu0
        %v1309 = vadd.f32 %v1244, %v1308
        %1310 = vmatmul.f32.gmra.mxu0 %v1044
        %v1311 = vpop.f32.mrf.mxu0
        %v1312 = vadd.f32 %v1247, %v1311
        %1313 = vmatmul.f32.gmra.mxu0 %v1048
        %v1314 = vpop.f32.mrf.mxu0
        %v1315 = vadd.f32 %v1250, %v1314
        %1316 = vmatmul.f32.gmra.mxu0 %v1052
        %v1317 = vpop.f32.mrf.mxu0
        %v1318 = vadd.f32 %v1253, %v1317
        %1319 = vmatmul.f32.gmra.mxu0 %v1056
        %v1320 = vpop.f32.mrf.mxu0
        %v1321 = vadd.f32 %v1256, %v1320
        %1322 = vmatmul.f32.gmra.mxu0 %v1060
        %v1323 = vpop.f32.mrf.mxu0
        %v1324 = vadd.f32 %v1259, %v1323
        %1325 = vmatmul.f32.gmra.mxu0 %v1064
        %v1326 = vpop.f32.mrf.mxu0
        %v1327 = vadd.f32 %v1262, %v1326
        %1328 = vdwg.mxu0
        %1329 = vmatpush.msra.mxu0 %v1129
        %1330 = vmatpush.msra.mxu0 %v1128
        %1331 = vmatpush.msra.mxu0 %v1127
        %1332 = vmatpush.msra.mxu0 %v1126
        %1333 = vmatpush.msra.mxu0 %v1125
        %1334 = vmatpush.msra.mxu0 %v1124
        %1335 = vmatpush.msra.mxu0 %v1123
        %1336 = vmatpush.msra.mxu0 %v1122
        %1337 = vmatpush.msra.mxu0 %v1121
        %1338 = vmatpush.msra.mxu0 %v1120
        %1339 = vmatpush.msra.mxu0 %v1119
        %1340 = vmatpush.msra.mxu0 %v1118
        %1341 = vmatpush.msra.mxu0 %v1117
        %1342 = vmatpush.msra.mxu0 %v1116
        %1343 = vmatpush.msra.mxu0 %v1115
        %1344 = vmatpush.msra.mxu0 %v1114
        %1345 = vmatmul.f32.gmra.mxu0 %v1005
        %v1346 = vpop.f32.mrf.mxu0
        %v1347 = vadd.f32 %v1282, %v1346
        %1348 = vmatmul.f32.gmra.mxu0 %v1009
        %v1349 = vpop.f32.mrf.mxu0
        %v1350 = vadd.f32 %v1285, %v1349
        %1351 = vmatmul.f32.gmra.mxu0 %v1013
        %v1352 = vpop.f32.mrf.mxu0
        %v1353 = vadd.f32 %v1288, %v1352
        %1354 = vmatmul.f32.gmra.mxu0 %v1017
        %v1355 = vpop.f32.mrf.mxu0
        %v1356 = vadd.f32 %v1291, %v1355
        %1357 = vmatmul.f32.gmra.mxu0 %v1021
        %v1358 = vpop.f32.mrf.mxu0
        %v1359 = vadd.f32 %v1294, %v1358
        %1360 = vmatmul.f32.gmra.mxu0 %v1025
        %v1361 = vpop.f32.mrf.mxu0
        %v1362 = vadd.f32 %v1297, %v1361
        %1363 = vmatmul.f32.gmra.mxu0 %v1029
        %v1364 = vpop.f32.mrf.mxu0
        %v1365 = vadd.f32 %v1300, %v1364
        %1366 = vmatmul.f32.gmra.mxu0 %v1033
        %v1367 = vpop.f32.mrf.mxu0
        %v1368 = vadd.f32 %v1303, %v1367
        %1369 = vmatmul.f32.gmra.mxu0 %v1037
        %v1370 = vpop.f32.mrf.mxu0
        %v1371 = vadd.f32 %v1306, %v1370
        %1372 = vmatmul.f32.gmra.mxu0 %v1041
        %v1373 = vpop.f32.mrf.mxu0
        %v1374 = vadd.f32 %v1309, %v1373
        %1375 = vmatmul.f32.gmra.mxu0 %v1045
        %v1376 = vpop.f32.mrf.mxu0
        %v1377 = vadd.f32 %v1312, %v1376
        %1378 = vmatmul.f32.gmra.mxu0 %v1049
        %v1379 = vpop.f32.mrf.mxu0
        %v1380 = vadd.f32 %v1315, %v1379
        %1381 = vmatmul.f32.gmra.mxu0 %v1053
        %v1382 = vpop.f32.mrf.mxu0
        %v1383 = vadd.f32 %v1318, %v1382
        %1384 = vmatmul.f32.gmra.mxu0 %v1057
        %v1385 = vpop.f32.mrf.mxu0
        %v1386 = vadd.f32 %v1321, %v1385
        %1387 = vmatmul.f32.gmra.mxu0 %v1061
        %v1388 = vpop.f32.mrf.mxu0
        %v1389 = vadd.f32 %v1324, %v1388
        %1390 = vmatmul.f32.gmra.mxu0 %v1065
        %v1391 = vpop.f32.mrf.mxu0
        %v1392 = vadd.f32 %v1327, %v1391
        %1393 = vdwg.mxu0
        %v1394 = vld [vmem:[%s570] sm:$0xff]
        %v1395 = vld [vmem:[%s570 + $0x8] sm:$0xff]
        %v1396 = vld [vmem:[%s570 + $0x10] sm:$0xff]
        %v1397 = vld [vmem:[%s570 + $0x18] sm:$0xff]
        %v1398 = vld [vmem:[%s570 + $0x20] sm:$0xff]
        %v1399 = vld [vmem:[%s570 + $0x28] sm:$0xff]
        %v1400 = vld [vmem:[%s570 + $0x30] sm:$0xff]
        %v1401 = vld [vmem:[%s570 + $0x38] sm:$0xff]
        %v1402 = vld [vmem:[%s570 + $0x40] sm:$0xff]
        %v1403 = vld [vmem:[%s570 + $0x48] sm:$0xff]
        %v1404 = vld [vmem:[%s570 + $0x50] sm:$0xff]
        %v1405 = vld [vmem:[%s570 + $0x58] sm:$0xff]
        %v1406 = vld [vmem:[%s570 + $0x60] sm:$0xff]
        %v1407 = vld [vmem:[%s570 + $0x68] sm:$0xff]
        %v1408 = vld [vmem:[%s570 + $0x70] sm:$0xff]
        %v1409 = vld [vmem:[%s570 + $0x78] sm:$0xff]
        %v1410 = vadd.f32 %v1347, %v1394
        %v1411 = vadd.f32 %v1350, %v1395
        %v1412 = vadd.f32 %v1353, %v1396
        %v1413 = vadd.f32 %v1356, %v1397
        %v1414 = vadd.f32 %v1359, %v1398
        %v1415 = vadd.f32 %v1362, %v1399
        %v1416 = vadd.f32 %v1365, %v1400
        %v1417 = vadd.f32 %v1368, %v1401
        %v1418 = vadd.f32 %v1371, %v1402
        %v1419 = vadd.f32 %v1374, %v1403
        %v1420 = vadd.f32 %v1377, %v1404
        %v1421 = vadd.f32 %v1380, %v1405
        %v1422 = vadd.f32 %v1383, %v1406
        %v1423 = vadd.f32 %v1386, %v1407
        %v1424 = vadd.f32 %v1389, %v1408
        %v1425 = vadd.f32 %v1392, %v1409
        %vm1426 = vcmask 261120
        %v1427 = vsel %vm1426, %v1410, 0.0
        %1428 = vadd.xlane.f32.xlu0 %v1427
        %v1429 = vpop.xlane.xlu0 %1428
        %v1430 = vsel %vm1426, %v1411, 0.0
        %1431 = vadd.xlane.f32.xlu0 %v1430
        %v1432 = vpop.xlane.xlu0 %1431
        %v1433 = vsel %vm1426, %v1412, 0.0
        %1434 = vadd.xlane.f32.xlu0 %v1433
        %v1435 = vpop.xlane.xlu0 %1434
        %v1436 = vsel %vm1426, %v1413, 0.0
        %1437 = vadd.xlane.f32.xlu0 %v1436
        %v1438 = vpop.xlane.xlu0 %1437
        %v1439 = vsel %vm1426, %v1414, 0.0
        %1440 = vadd.xlane.f32.xlu0 %v1439
        %v1441 = vpop.xlane.xlu0 %1440
        %v1442 = vsel %vm1426, %v1415, 0.0
        %1443 = vadd.xlane.f32.xlu0 %v1442
        %v1444 = vpop.xlane.xlu0 %1443
        %v1445 = vsel %vm1426, %v1416, 0.0
        %1446 = vadd.xlane.f32.xlu0 %v1445
        %v1447 = vpop.xlane.xlu0 %1446
        %v1448 = vsel %vm1426, %v1417, 0.0
        %1449 = vadd.xlane.f32.xlu0 %v1448
        %v1450 = vpop.xlane.xlu0 %1449
        %v1451 = vsel %vm1426, %v1418, 0.0
        %1452 = vadd.xlane.f32.xlu0 %v1451
        %v1453 = vpop.xlane.xlu0 %1452
        %v1454 = vsel %vm1426, %v1419, 0.0
        %1455 = vadd.xlane.f32.xlu0 %v1454
        %v1456 = vpop.xlane.xlu0 %1455
        %v1457 = vsel %vm1426, %v1420, 0.0
        %1458 = vadd.xlane.f32.xlu0 %v1457
        %v1459 = vpop.xlane.xlu0 %1458
        %v1460 = vsel %vm1426, %v1421, 0.0
        %1461 = vadd.xlane.f32.xlu0 %v1460
        %v1462 = vpop.xlane.xlu0 %1461
        %v1463 = vsel %vm1426, %v1422, 0.0
        %1464 = vadd.xlane.f32.xlu0 %v1463
        %v1465 = vpop.xlane.xlu0 %1464
        %v1466 = vsel %vm1426, %v1423, 0.0
        %1467 = vadd.xlane.f32.xlu0 %v1466
        %v1468 = vpop.xlane.xlu0 %1467
        %v1469 = vsel %vm1426, %v1424, 0.0
        %1470 = vadd.xlane.f32.xlu0 %v1469
        %v1471 = vpop.xlane.xlu0 %1470
        %v1472 = vsel %vm1426, %v1425, 0.0
        %1473 = vadd.xlane.f32.xlu0 %v1472
        %v1474 = vpop.xlane.xlu0 %1473
        %v1475 = vrcp.pop 32.0
        %v1476 = vmul.f32 32.0, %v1475
        %v1477 = vsub.f32 1.0, %v1476
        %v1478 = vmul.f32 %v1475, %v1477
        %v1479 = vadd.f32 %v1475, %v1478
        %vm1480 = vweird.f32 %v1475
        %v1481 = vsel %vm1480, %v1475, %v1479
        %v1482 = vmul.f32 %v1429, %v1481
        %v1483 = vmul.f32 %v1432, %v1481
        %v1484 = vmul.f32 %v1435, %v1481
        %v1485 = vmul.f32 %v1438, %v1481
        %v1486 = vmul.f32 %v1441, %v1481
        %v1487 = vmul.f32 %v1444, %v1481
        %v1488 = vmul.f32 %v1447, %v1481
        %v1489 = vmul.f32 %v1450, %v1481
        %v1490 = vmul.f32 %v1453, %v1481
        %v1491 = vmul.f32 %v1456, %v1481
        %v1492 = vmul.f32 %v1459, %v1481
        %v1493 = vmul.f32 %v1462, %v1481
        %v1494 = vmul.f32 %v1465, %v1481
        %v1495 = vmul.f32 %v1468, %v1481
        %v1496 = vmul.f32 %v1471, %v1481
        %v1497 = vmul.f32 %v1474, %v1481
        %v1498 = vsub.f32 %v1410, %v1482
        %v1499 = vsub.f32 %v1411, %v1483
        %v1500 = vsub.f32 %v1412, %v1484
        %v1501 = vsub.f32 %v1413, %v1485
        %v1502 = vsub.f32 %v1414, %v1486
        %v1503 = vsub.f32 %v1415, %v1487
        %v1504 = vsub.f32 %v1416, %v1488
        %v1505 = vsub.f32 %v1417, %v1489
        %v1506 = vsub.f32 %v1418, %v1490
        %v1507 = vsub.f32 %v1419, %v1491
        %v1508 = vsub.f32 %v1420, %v1492
        %v1509 = vsub.f32 %v1421, %v1493
        %v1510 = vsub.f32 %v1422, %v1494
        %v1511 = vsub.f32 %v1423, %v1495
        %v1512 = vsub.f32 %v1424, %v1496
        %v1513 = vsub.f32 %v1425, %v1497
        %v1514 = vmul.f32 %v1498, %v1498
        %v1515 = vmul.f32 %v1499, %v1499
        %v1516 = vmul.f32 %v1500, %v1500
        %v1517 = vmul.f32 %v1501, %v1501
        %v1518 = vmul.f32 %v1502, %v1502
        %v1519 = vmul.f32 %v1503, %v1503
        %v1520 = vmul.f32 %v1504, %v1504
        %v1521 = vmul.f32 %v1505, %v1505
        %v1522 = vmul.f32 %v1506, %v1506
        %v1523 = vmul.f32 %v1507, %v1507
        %v1524 = vmul.f32 %v1508, %v1508
        %v1525 = vmul.f32 %v1509, %v1509
        %v1526 = vmul.f32 %v1510, %v1510
        %v1527 = vmul.f32 %v1511, %v1511
        %v1528 = vmul.f32 %v1512, %v1512
        %v1529 = vmul.f32 %v1513, %v1513
        %v1530 = vsel %vm1426, %v1514, 0.0
        %1531 = vadd.xlane.f32.xlu0 %v1530
        %v1532 = vpop.xlane.xlu0 %1531
        %v1533 = vsel %vm1426, %v1515, 0.0
        %1534 = vadd.xlane.f32.xlu0 %v1533
        %v1535 = vpop.xlane.xlu0 %1534
        %v1536 = vsel %vm1426, %v1516, 0.0
        %1537 = vadd.xlane.f32.xlu0 %v1536
        %v1538 = vpop.xlane.xlu0 %1537
        %v1539 = vsel %vm1426, %v1517, 0.0
        %1540 = vadd.xlane.f32.xlu0 %v1539
        %v1541 = vpop.xlane.xlu0 %1540
        %v1542 = vsel %vm1426, %v1518, 0.0
        %1543 = vadd.xlane.f32.xlu0 %v1542
        %v1544 = vpop.xlane.xlu0 %1543
        %v1545 = vsel %vm1426, %v1519, 0.0
        %1546 = vadd.xlane.f32.xlu0 %v1545
        %v1547 = vpop.xlane.xlu0 %1546
        %v1548 = vsel %vm1426, %v1520, 0.0
        %1549 = vadd.xlane.f32.xlu0 %v1548
        %v1550 = vpop.xlane.xlu0 %1549
        %v1551 = vsel %vm1426, %v1521, 0.0
        %1552 = vadd.xlane.f32.xlu0 %v1551
        %v1553 = vpop.xlane.xlu0 %1552
        %v1554 = vsel %vm1426, %v1522, 0.0
        %1555 = vadd.xlane.f32.xlu0 %v1554
        %v1556 = vpop.xlane.xlu0 %1555
        %v1557 = vsel %vm1426, %v1523, 0.0
        %1558 = vadd.xlane.f32.xlu0 %v1557
        %v1559 = vpop.xlane.xlu0 %1558
        %v1560 = vsel %vm1426, %v1524, 0.0
        %1561 = vadd.xlane.f32.xlu0 %v1560
        %v1562 = vpop.xlane.xlu0 %1561
        %v1563 = vsel %vm1426, %v1525, 0.0
        %1564 = vadd.xlane.f32.xlu0 %v1563
        %v1565 = vpop.xlane.xlu0 %1564
        %v1566 = vsel %vm1426, %v1526, 0.0
        %1567 = vadd.xlane.f32.xlu0 %v1566
        %v1568 = vpop.xlane.xlu0 %1567
        %v1569 = vsel %vm1426, %v1527, 0.0
        %1570 = vadd.xlane.f32.xlu0 %v1569
        %v1571 = vpop.xlane.xlu0 %1570
        %v1572 = vsel %vm1426, %v1528, 0.0
        %1573 = vadd.xlane.f32.xlu0 %v1572
        %v1574 = vpop.xlane.xlu0 %1573
        %v1575 = vsel %vm1426, %v1529, 0.0
        %1576 = vadd.xlane.f32.xlu0 %v1575
        %v1577 = vpop.xlane.xlu0 %1576
        %v1578 = vmul.f32 %v1532, %v1481
        %v1579 = vmul.f32 %v1535, %v1481
        %v1580 = vmul.f32 %v1538, %v1481
        %v1581 = vmul.f32 %v1541, %v1481
        %v1582 = vmul.f32 %v1544, %v1481
        %v1583 = vmul.f32 %v1547, %v1481
        %v1584 = vmul.f32 %v1550, %v1481
        %v1585 = vmul.f32 %v1553, %v1481
        %v1586 = vmul.f32 %v1556, %v1481
        %v1587 = vmul.f32 %v1559, %v1481
        %v1588 = vmul.f32 %v1562, %v1481
        %v1589 = vmul.f32 %v1565, %v1481
        %v1590 = vmul.f32 %v1568, %v1481
        %v1591 = vmul.f32 %v1571, %v1481
        %v1592 = vmul.f32 %v1574, %v1481
        %v1593 = vmul.f32 %v1577, %v1481
        %v1594 = vadd.f32 %v1578, 1e-05
        %v1595 = vadd.f32 %v1579, 1e-05
        %v1596 = vadd.f32 %v1580, 1e-05
        %v1597 = vadd.f32 %v1581, 1e-05
        %v1598 = vadd.f32 %v1582, 1e-05
        %v1599 = vadd.f32 %v1583, 1e-05
        %v1600 = vadd.f32 %v1584, 1e-05
        %v1601 = vadd.f32 %v1585, 1e-05
        %v1602 = vadd.f32 %v1586, 1e-05
        %v1603 = vadd.f32 %v1587, 1e-05
        %v1604 = vadd.f32 %v1588, 1e-05
        %v1605 = vadd.f32 %v1589, 1e-05
        %v1606 = vadd.f32 %v1590, 1e-05
        %v1607 = vadd.f32 %v1591, 1e-05
        %v1608 = vadd.f32 %v1592, 1e-05
        %v1609 = vadd.f32 %v1593, 1e-05
        %v1610 = vrsqrt.pop %v1594
        %v1611 = vmul.f32 %v1610, %v1594
        %v1612 = vmul.f32 %v1611, %v1610
        %v1613 = vmul.f32 0.5, %v1612
        %v1614 = vsub.f32 1.5, %v1613
        %v1615 = vmul.f32 %v1610, %v1614
        %vm1616 = vweird.f32 %v1594
        %vm1617 = vweird.f32 %v1610
        %vm1618 = vmor %vm1616, %vm1617
        %v1619 = vsel %vm1618, %v1610, %v1615
        %v1620 = vrsqrt.pop %v1595
        %v1621 = vmul.f32 %v1620, %v1595
        %v1622 = vmul.f32 %v1621, %v1620
        %v1623 = vmul.f32 0.5, %v1622
        %v1624 = vsub.f32 1.5, %v1623
        %v1625 = vmul.f32 %v1620, %v1624
        %vm1626 = vweird.f32 %v1595
        %vm1627 = vweird.f32 %v1620
        %vm1628 = vmor %vm1626, %vm1627
        %v1629 = vsel %vm1628, %v1620, %v1625
        %v1630 = vrsqrt.pop %v1596
        %v1631 = vmul.f32 %v1630, %v1596
        %v1632 = vmul.f32 %v1631, %v1630
        %v1633 = vmul.f32 0.5, %v1632
        %v1634 = vsub.f32 1.5, %v1633
        %v1635 = vmul.f32 %v1630, %v1634
        %vm1636 = vweird.f32 %v1596
        %vm1637 = vweird.f32 %v1630
        %vm1638 = vmor %vm1636, %vm1637
        %v1639 = vsel %vm1638, %v1630, %v1635
        %v1640 = vrsqrt.pop %v1597
        %v1641 = vmul.f32 %v1640, %v1597
        %v1642 = vmul.f32 %v1641, %v1640
        %v1643 = vmul.f32 0.5, %v1642
        %v1644 = vsub.f32 1.5, %v1643
        %v1645 = vmul.f32 %v1640, %v1644
        %vm1646 = vweird.f32 %v1597
        %vm1647 = vweird.f32 %v1640
        %vm1648 = vmor %vm1646, %vm1647
        %v1649 = vsel %vm1648, %v1640, %v1645
        %v1650 = vrsqrt.pop %v1598
        %v1651 = vmul.f32 %v1650, %v1598
        %v1652 = vmul.f32 %v1651, %v1650
        %v1653 = vmul.f32 0.5, %v1652
        %v1654 = vsub.f32 1.5, %v1653
        %v1655 = vmul.f32 %v1650, %v1654
        %vm1656 = vweird.f32 %v1598
        %vm1657 = vweird.f32 %v1650
        %vm1658 = vmor %vm1656, %vm1657
        %v1659 = vsel %vm1658, %v1650, %v1655
        %v1660 = vrsqrt.pop %v1599
        %v1661 = vmul.f32 %v1660, %v1599
        %v1662 = vmul.f32 %v1661, %v1660
        %v1663 = vmul.f32 0.5, %v1662
        %v1664 = vsub.f32 1.5, %v1663
        %v1665 = vmul.f32 %v1660, %v1664
        %vm1666 = vweird.f32 %v1599
        %vm1667 = vweird.f32 %v1660
        %vm1668 = vmor %vm1666, %vm1667
        %v1669 = vsel %vm1668, %v1660, %v1665
        %v1670 = vrsqrt.pop %v1600
        %v1671 = vmul.f32 %v1670, %v1600
        %v1672 = vmul.f32 %v1671, %v1670
        %v1673 = vmul.f32 0.5, %v1672
        %v1674 = vsub.f32 1.5, %v1673
        %v1675 = vmul.f32 %v1670, %v1674
        %vm1676 = vweird.f32 %v1600
        %vm1677 = vweird.f32 %v1670
        %vm1678 = vmor %vm1676, %vm1677
        %v1679 = vsel %vm1678, %v1670, %v1675
        %v1680 = vrsqrt.pop %v1601
        %v1681 = vmul.f32 %v1680, %v1601
        %v1682 = vmul.f32 %v1681, %v1680
        %v1683 = vmul.f32 0.5, %v1682
        %v1684 = vsub.f32 1.5, %v1683
        %v1685 = vmul.f32 %v1680, %v1684
        %vm1686 = vweird.f32 %v1601
        %vm1687 = vweird.f32 %v1680
        %vm1688 = vmor %vm1686, %vm1687
        %v1689 = vsel %vm1688, %v1680, %v1685
        %v1690 = vrsqrt.pop %v1602
        %v1691 = vmul.f32 %v1690, %v1602
        %v1692 = vmul.f32 %v1691, %v1690
        %v1693 = vmul.f32 0.5, %v1692
        %v1694 = vsub.f32 1.5, %v1693
        %v1695 = vmul.f32 %v1690, %v1694
        %vm1696 = vweird.f32 %v1602
        %vm1697 = vweird.f32 %v1690
        %vm1698 = vmor %vm1696, %vm1697
        %v1699 = vsel %vm1698, %v1690, %v1695
        %v1700 = vrsqrt.pop %v1603
        %v1701 = vmul.f32 %v1700, %v1603
        %v1702 = vmul.f32 %v1701, %v1700
        %v1703 = vmul.f32 0.5, %v1702
        %v1704 = vsub.f32 1.5, %v1703
        %v1705 = vmul.f32 %v1700, %v1704
        %vm1706 = vweird.f32 %v1603
        %vm1707 = vweird.f32 %v1700
        %vm1708 = vmor %vm1706, %vm1707
        %v1709 = vsel %vm1708, %v1700, %v1705
        %v1710 = vrsqrt.pop %v1604
        %v1711 = vmul.f32 %v1710, %v1604
        %v1712 = vmul.f32 %v1711, %v1710
        %v1713 = vmul.f32 0.5, %v1712
        %v1714 = vsub.f32 1.5, %v1713
        %v1715 = vmul.f32 %v1710, %v1714
        %vm1716 = vweird.f32 %v1604
        %vm1717 = vweird.f32 %v1710
        %vm1718 = vmor %vm1716, %vm1717
        %v1719 = vsel %vm1718, %v1710, %v1715
        %v1720 = vrsqrt.pop %v1605
        %v1721 = vmul.f32 %v1720, %v1605
        %v1722 = vmul.f32 %v1721, %v1720
        %v1723 = vmul.f32 0.5, %v1722
        %v1724 = vsub.f32 1.5, %v1723
        %v1725 = vmul.f32 %v1720, %v1724
        %vm1726 = vweird.f32 %v1605
        %vm1727 = vweird.f32 %v1720
        %vm1728 = vmor %vm1726, %vm1727
        %v1729 = vsel %vm1728, %v1720, %v1725
        %v1730 = vrsqrt.pop %v1606
        %v1731 = vmul.f32 %v1730, %v1606
        %v1732 = vmul.f32 %v1731, %v1730
        %v1733 = vmul.f32 0.5, %v1732
        %v1734 = vsub.f32 1.5, %v1733
        %v1735 = vmul.f32 %v1730, %v1734
        %vm1736 = vweird.f32 %v1606
        %vm1737 = vweird.f32 %v1730
        %vm1738 = vmor %vm1736, %vm1737
        %v1739 = vsel %vm1738, %v1730, %v1735
        %v1740 = vrsqrt.pop %v1607
        %v1741 = vmul.f32 %v1740, %v1607
        %v1742 = vmul.f32 %v1741, %v1740
        %v1743 = vmul.f32 0.5, %v1742
        %v1744 = vsub.f32 1.5, %v1743
        %v1745 = vmul.f32 %v1740, %v1744
        %vm1746 = vweird.f32 %v1607
        %vm1747 = vweird.f32 %v1740
        %vm1748 = vmor %vm1746, %vm1747
        %v1749 = vsel %vm1748, %v1740, %v1745
        %v1750 = vrsqrt.pop %v1608
        %v1751 = vmul.f32 %v1750, %v1608
        %v1752 = vmul.f32 %v1751, %v1750
        %v1753 = vmul.f32 0.5, %v1752
        %v1754 = vsub.f32 1.5, %v1753
        %v1755 = vmul.f32 %v1750, %v1754
        %vm1756 = vweird.f32 %v1608
        %vm1757 = vweird.f32 %v1750
        %vm1758 = vmor %vm1756, %vm1757
        %v1759 = vsel %vm1758, %v1750, %v1755
        %v1760 = vrsqrt.pop %v1609
        %v1761 = vmul.f32 %v1760, %v1609
        %v1762 = vmul.f32 %v1761, %v1760
        %v1763 = vmul.f32 0.5, %v1762
        %v1764 = vsub.f32 1.5, %v1763
        %v1765 = vmul.f32 %v1760, %v1764
        %vm1766 = vweird.f32 %v1609
        %vm1767 = vweird.f32 %v1760
        %vm1768 = vmor %vm1766, %vm1767
        %v1769 = vsel %vm1768, %v1760, %v1765
        %v1770 = vmul.f32 %v1498, %v1619
        %v1771 = vmul.f32 %v1499, %v1629
        %v1772 = vmul.f32 %v1500, %v1639
        %v1773 = vmul.f32 %v1501, %v1649
        %v1774 = vmul.f32 %v1502, %v1659
        %v1775 = vmul.f32 %v1503, %v1669
        %v1776 = vmul.f32 %v1504, %v1679
        %v1777 = vmul.f32 %v1505, %v1689
        %v1778 = vmul.f32 %v1506, %v1699
        %v1779 = vmul.f32 %v1507, %v1709
        %v1780 = vmul.f32 %v1508, %v1719
        %v1781 = vmul.f32 %v1509, %v1729
        %v1782 = vmul.f32 %v1510, %v1739
        %v1783 = vmul.f32 %v1511, %v1749
        %v1784 = vmul.f32 %v1512, %v1759
        %v1785 = vmul.f32 %v1513, %v1769
        %v1786 = vld [vmem:[%s6] sm:$0x1]
        %v1788 = vperm.slane %v1786, 0
        %v1790 = vmul.f32 %v1770, %v1788
        %v1791 = vmul.f32 %v1771, %v1788
        %v1792 = vmul.f32 %v1772, %v1788
        %v1793 = vmul.f32 %v1773, %v1788
        %v1794 = vmul.f32 %v1774, %v1788
        %v1795 = vmul.f32 %v1775, %v1788
        %v1796 = vmul.f32 %v1776, %v1788
        %v1797 = vmul.f32 %v1777, %v1788
        %v1798 = vmul.f32 %v1778, %v1788
        %v1799 = vmul.f32 %v1779, %v1788
        %v1800 = vmul.f32 %v1780, %v1788
        %v1801 = vmul.f32 %v1781, %v1788
        %v1802 = vmul.f32 %v1782, %v1788
        %v1803 = vmul.f32 %v1783, %v1788
        %v1804 = vmul.f32 %v1784, %v1788
        %v1805 = vmul.f32 %v1785, %v1788
        %v1806 = vld [vmem:[%s7] sm:$0x1]
        %v1808 = vperm.slane %v1806, 0
        %v1810 = vadd.f32 %v1790, %v1808
        %v1811 = vadd.f32 %v1791, %v1808
        %v1812 = vadd.f32 %v1792, %v1808
        %v1813 = vadd.f32 %v1793, %v1808
        %v1814 = vadd.f32 %v1794, %v1808
        %v1815 = vadd.f32 %v1795, %v1808
        %v1816 = vadd.f32 %v1796, %v1808
        %v1817 = vadd.f32 %v1797, %v1808
        %v1818 = vadd.f32 %v1798, %v1808
        %v1819 = vadd.f32 %v1799, %v1808
        %v1820 = vadd.f32 %v1800, %v1808
        %v1821 = vadd.f32 %v1801, %v1808
        %v1822 = vadd.f32 %v1802, %v1808
        %v1823 = vadd.f32 %v1803, %v1808
        %v1824 = vadd.f32 %v1804, %v1808
        %v1825 = vadd.f32 %v1805, %v1808
        %v1826 = vld [vmem:[%s8] sm:$0xff]
        %v1827 = vld [vmem:[%s8 + $0x8] sm:$0xff]
        %v1828 = vld [vmem:[%s8 + $0x10] sm:$0xff]
        %v1829 = vld [vmem:[%s8 + $0x18] sm:$0xff]
        %v1830 = vld [vmem:[%s9] sm:$0x1]
        %v1832 = vperm.slane %v1830, 0
        %v1835 = vsel %vm1426, %v1810, 0
        %v1838 = vsel %vm1426, %v1811, 0
        %v1841 = vsel %vm1426, %v1812, 0
        %v1844 = vsel %vm1426, %v1813, 0
        %v1847 = vsel %vm1426, %v1814, 0
        %v1850 = vsel %vm1426, %v1815, 0
        %v1853 = vsel %vm1426, %v1816, 0
        %v1856 = vsel %vm1426, %v1817, 0
        %v1859 = vsel %vm1426, %v1818, 0
        %v1862 = vsel %vm1426, %v1819, 0
        %v1865 = vsel %vm1426, %v1820, 0
        %v1868 = vsel %vm1426, %v1821, 0
        %v1871 = vsel %vm1426, %v1822, 0
        %v1874 = vsel %vm1426, %v1823, 0
        %v1877 = vsel %vm1426, %v1824, 0
        %v1880 = vsel %vm1426, %v1825, 0
        %1882 = vmatpush.msra.mxu0 0.0
        %1883 = vmatpush.msra.mxu0 0.0
        %1884 = vmatpush.msra.mxu0 0.0
        %1885 = vmatpush.msra.mxu0 0.0
        %1886 = vmatpush.msra.mxu0 0.0
        %1887 = vmatpush.msra.mxu0 0.0
        %1888 = vmatpush.msra.mxu0 0.0
        %1889 = vmatpush.msra.mxu0 0.0
        %1890 = vmatpush.msra.mxu0 0.0
        %1891 = vmatpush.msra.mxu0 0.0
        %1892 = vmatpush.msra.mxu0 0.0
        %1893 = vmatpush.msra.mxu0 0.0
        %1894 = vmatpush.msra.mxu0 %v1829
        %1895 = vmatpush.msra.mxu0 %v1828
        %1896 = vmatpush.msra.mxu0 %v1827
        %1897 = vmatpush.msra.mxu0 %v1826
        %1898 = vmatmul.f32.gmra.mxu0 %v1835
        %v1899 = vpop.f32.mrf.mxu0
        %v1900 = vadd.f32 %v1832, %v1899
        %1901 = vmatmul.f32.gmra.mxu0 %v1838
        %v1902 = vpop.f32.mrf.mxu0
        %v1903 = vadd.f32 %v1832, %v1902
        %1904 = vmatmul.f32.gmra.mxu0 %v1841
        %v1905 = vpop.f32.mrf.mxu0
        %v1906 = vadd.f32 %v1832, %v1905
        %1907 = vmatmul.f32.gmra.mxu0 %v1844
        %v1908 = vpop.f32.mrf.mxu0
        %v1909 = vadd.f32 %v1832, %v1908
        %1910 = vmatmul.f32.gmra.mxu0 %v1847
        %v1911 = vpop.f32.mrf.mxu0
        %v1912 = vadd.f32 %v1832, %v1911
        %1913 = vmatmul.f32.gmra.mxu0 %v1850
        %v1914 = vpop.f32.mrf.mxu0
        %v1915 = vadd.f32 %v1832, %v1914
        %1916 = vmatmul.f32.gmra.mxu0 %v1853
        %v1917 = vpop.f32.mrf.mxu0
        %v1918 = vadd.f32 %v1832, %v1917
        %1919 = vmatmul.f32.gmra.mxu0 %v1856
        %v1920 = vpop.f32.mrf.mxu0
        %v1921 = vadd.f32 %v1832, %v1920
        %1922 = vmatmul.f32.gmra.mxu0 %v1859
        %v1923 = vpop.f32.mrf.mxu0
        %v1924 = vadd.f32 %v1832, %v1923
        %1925 = vmatmul.f32.gmra.mxu0 %v1862
        %v1926 = vpop.f32.mrf.mxu0
        %v1927 = vadd.f32 %v1832, %v1926
        %1928 = vmatmul.f32.gmra.mxu0 %v1865
        %v1929 = vpop.f32.mrf.mxu0
        %v1930 = vadd.f32 %v1832, %v1929
        %1931 = vmatmul.f32.gmra.mxu0 %v1868
        %v1932 = vpop.f32.mrf.mxu0
        %v1933 = vadd.f32 %v1832, %v1932
        %1934 = vmatmul.f32.gmra.mxu0 %v1871
        %v1935 = vpop.f32.mrf.mxu0
        %v1936 = vadd.f32 %v1832, %v1935
        %1937 = vmatmul.f32.gmra.mxu0 %v1874
        %v1938 = vpop.f32.mrf.mxu0
        %v1939 = vadd.f32 %v1832, %v1938
        %1940 = vmatmul.f32.gmra.mxu0 %v1877
        %v1941 = vpop.f32.mrf.mxu0
        %v1942 = vadd.f32 %v1832, %v1941
        %1943 = vmatmul.f32.gmra.mxu0 %v1880
        %v1944 = vpop.f32.mrf.mxu0
        %v1945 = vadd.f32 %v1832, %v1944
        %1946 = vdwg.mxu0
        %v1947 = vmax.f32 %v1900, 0.0
        %v1948 = vmax.f32 %v1903, 0.0
        %v1949 = vmax.f32 %v1906, 0.0
        %v1950 = vmax.f32 %v1909, 0.0
        %v1951 = vmax.f32 %v1912, 0.0
        %v1952 = vmax.f32 %v1915, 0.0
        %v1953 = vmax.f32 %v1918, 0.0
        %v1954 = vmax.f32 %v1921, 0.0
        %v1955 = vmax.f32 %v1924, 0.0
        %v1956 = vmax.f32 %v1927, 0.0
        %v1957 = vmax.f32 %v1930, 0.0
        %v1958 = vmax.f32 %v1933, 0.0
        %v1959 = vmax.f32 %v1936, 0.0
        %v1960 = vmax.f32 %v1939, 0.0
        %v1961 = vmax.f32 %v1942, 0.0
        %v1962 = vmax.f32 %v1945, 0.0
        %v1963 = vld [vmem:[%s10] sm:$0xff]
        %v1964 = vld [vmem:[%s10 + $0x8] sm:$0xff]
        %v1965 = vld [vmem:[%s10 + $0x10] sm:$0xff]
        %v1966 = vld [vmem:[%s10 + $0x18] sm:$0xff]
        %v1967 = vld [vmem:[%s10 + $0x20] sm:$0xff]
        %v1968 = vld [vmem:[%s10 + $0x28] sm:$0xff]
        %v1969 = vld [vmem:[%s10 + $0x30] sm:$0xff]
        %v1970 = vld [vmem:[%s10 + $0x38] sm:$0xff]
        %v1971 = vld [vmem:[%s11] sm:$0x1]
        %v1973 = vperm.slane %v1971, 0
        %v1976 = vsel %vm629, %v1947, 0
        %v1979 = vsel %vm629, %v1948, 0
        %v1982 = vsel %vm629, %v1949, 0
        %v1985 = vsel %vm629, %v1950, 0
        %v1988 = vsel %vm629, %v1951, 0
        %v1991 = vsel %vm629, %v1952, 0
        %v1994 = vsel %vm629, %v1953, 0
        %v1997 = vsel %vm629, %v1954, 0
        %v2000 = vsel %vm629, %v1955, 0
        %v2003 = vsel %vm629, %v1956, 0
        %v2006 = vsel %vm629, %v1957, 0
        %v2009 = vsel %vm629, %v1958, 0
        %v2012 = vsel %vm629, %v1959, 0
        %v2015 = vsel %vm629, %v1960, 0
        %v2018 = vsel %vm629, %v1961, 0
        %v2021 = vsel %vm629, %v1962, 0
        %2023 = vmatpush.msra.mxu0 0.0
        %2024 = vmatpush.msra.mxu0 0.0
        %2025 = vmatpush.msra.mxu0 0.0
        %2026 = vmatpush.msra.mxu0 0.0
        %2027 = vmatpush.msra.mxu0 0.0
        %2028 = vmatpush.msra.mxu0 0.0
        %2029 = vmatpush.msra.mxu0 0.0
        %2030 = vmatpush.msra.mxu0 0.0
        %2031 = vmatpush.msra.mxu0 %v1970
        %2032 = vmatpush.msra.mxu0 %v1969
        %2033 = vmatpush.msra.mxu0 %v1968
        %2034 = vmatpush.msra.mxu0 %v1967
        %2035 = vmatpush.msra.mxu0 %v1966
        %2036 = vmatpush.msra.mxu0 %v1965
        %2037 = vmatpush.msra.mxu0 %v1964
        %2038 = vmatpush.msra.mxu0 %v1963
        %2039 = vmatmul.f32.gmra.mxu0 %v1976
        %v2040 = vpop.f32.mrf.mxu0
        %v2041 = vadd.f32 %v1973, %v2040
        %2042 = vmatmul.f32.gmra.mxu0 %v1979
        %v2043 = vpop.f32.mrf.mxu0
        %v2044 = vadd.f32 %v1973, %v2043
        %2045 = vmatmul.f32.gmra.mxu0 %v1982
        %v2046 = vpop.f32.mrf.mxu0
        %v2047 = vadd.f32 %v1973, %v2046
        %2048 = vmatmul.f32.gmra.mxu0 %v1985
        %v2049 = vpop.f32.mrf.mxu0
        %v2050 = vadd.f32 %v1973, %v2049
        %2051 = vmatmul.f32.gmra.mxu0 %v1988
        %v2052 = vpop.f32.mrf.mxu0
        %v2053 = vadd.f32 %v1973, %v2052
        %2054 = vmatmul.f32.gmra.mxu0 %v1991
        %v2055 = vpop.f32.mrf.mxu0
        %v2056 = vadd.f32 %v1973, %v2055
        %2057 = vmatmul.f32.gmra.mxu0 %v1994
        %v2058 = vpop.f32.mrf.mxu0
        %v2059 = vadd.f32 %v1973, %v2058
        %2060 = vmatmul.f32.gmra.mxu0 %v1997
        %v2061 = vpop.f32.mrf.mxu0
        %v2062 = vadd.f32 %v1973, %v2061
        %2063 = vmatmul.f32.gmra.mxu0 %v2000
        %v2064 = vpop.f32.mrf.mxu0
        %v2065 = vadd.f32 %v1973, %v2064
        %2066 = vmatmul.f32.gmra.mxu0 %v2003
        %v2067 = vpop.f32.mrf.mxu0
        %v2068 = vadd.f32 %v1973, %v2067
        %2069 = vmatmul.f32.gmra.mxu0 %v2006
        %v2070 = vpop.f32.mrf.mxu0
        %v2071 = vadd.f32 %v1973, %v2070
        %2072 = vmatmul.f32.gmra.mxu0 %v2009
        %v2073 = vpop.f32.mrf.mxu0
        %v2074 = vadd.f32 %v1973, %v2073
        %2075 = vmatmul.f32.gmra.mxu0 %v2012
        %v2076 = vpop.f32.mrf.mxu0
        %v2077 = vadd.f32 %v1973, %v2076
        %2078 = vmatmul.f32.gmra.mxu0 %v2015
        %v2079 = vpop.f32.mrf.mxu0
        %v2080 = vadd.f32 %v1973, %v2079
        %2081 = vmatmul.f32.gmra.mxu0 %v2018
        %v2082 = vpop.f32.mrf.mxu0
        %v2083 = vadd.f32 %v1973, %v2082
        %2084 = vmatmul.f32.gmra.mxu0 %v2021
        %v2085 = vpop.f32.mrf.mxu0
        %v2086 = vadd.f32 %v1973, %v2085
        %2087 = vdwg.mxu0
        %v2088 = vadd.f32 %v1810, %v2041
        %v2089 = vadd.f32 %v1811, %v2044
        %v2090 = vadd.f32 %v1812, %v2047
        %v2091 = vadd.f32 %v1813, %v2050
        %v2092 = vadd.f32 %v1814, %v2053
        %v2093 = vadd.f32 %v1815, %v2056
        %v2094 = vadd.f32 %v1816, %v2059
        %v2095 = vadd.f32 %v1817, %v2062
        %v2096 = vadd.f32 %v1818, %v2065
        %v2097 = vadd.f32 %v1819, %v2068
        %v2098 = vadd.f32 %v1820, %v2071
        %v2099 = vadd.f32 %v1821, %v2074
        %v2100 = vadd.f32 %v1822, %v2077
        %v2101 = vadd.f32 %v1823, %v2080
        %v2102 = vadd.f32 %v1824, %v2083
        %v2103 = vadd.f32 %v1825, %v2086
        %v2104 = vsel %vm1426, %v2088, 0.0
        %2105 = vadd.xlane.f32.xlu0 %v2104
        %v2106 = vpop.xlane.xlu0 %2105
        %v2107 = vsel %vm1426, %v2089, 0.0
        %2108 = vadd.xlane.f32.xlu0 %v2107
        %v2109 = vpop.xlane.xlu0 %2108
        %v2110 = vsel %vm1426, %v2090, 0.0
        %2111 = vadd.xlane.f32.xlu0 %v2110
        %v2112 = vpop.xlane.xlu0 %2111
        %v2113 = vsel %vm1426, %v2091, 0.0
        %2114 = vadd.xlane.f32.xlu0 %v2113
        %v2115 = vpop.xlane.xlu0 %2114
        %v2116 = vsel %vm1426, %v2092, 0.0
        %2117 = vadd.xlane.f32.xlu0 %v2116
        %v2118 = vpop.xlane.xlu0 %2117
        %v2119 = vsel %vm1426, %v2093, 0.0
        %2120 = vadd.xlane.f32.xlu0 %v2119
        %v2121 = vpop.xlane.xlu0 %2120
        %v2122 = vsel %vm1426, %v2094, 0.0
        %2123 = vadd.xlane.f32.xlu0 %v2122
        %v2124 = vpop.xlane.xlu0 %2123
        %v2125 = vsel %vm1426, %v2095, 0.0
        %2126 = vadd.xlane.f32.xlu0 %v2125
        %v2127 = vpop.xlane.xlu0 %2126
        %v2128 = vsel %vm1426, %v2096, 0.0
        %2129 = vadd.xlane.f32.xlu0 %v2128
        %v2130 = vpop.xlane.xlu0 %2129
        %v2131 = vsel %vm1426, %v2097, 0.0
        %2132 = vadd.xlane.f32.xlu0 %v2131
        %v2133 = vpop.xlane.xlu0 %2132
        %v2134 = vsel %vm1426, %v2098, 0.0
        %2135 = vadd.xlane.f32.xlu0 %v2134
        %v2136 = vpop.xlane.xlu0 %2135
        %v2137 = vsel %vm1426, %v2099, 0.0
        %2138 = vadd.xlane.f32.xlu0 %v2137
        %v2139 = vpop.xlane.xlu0 %2138
        %v2140 = vsel %vm1426, %v2100, 0.0
        %2141 = vadd.xlane.f32.xlu0 %v2140
        %v2142 = vpop.xlane.xlu0 %2141
        %v2143 = vsel %vm1426, %v2101, 0.0
        %2144 = vadd.xlane.f32.xlu0 %v2143
        %v2145 = vpop.xlane.xlu0 %2144
        %v2146 = vsel %vm1426, %v2102, 0.0
        %2147 = vadd.xlane.f32.xlu0 %v2146
        %v2148 = vpop.xlane.xlu0 %2147
        %v2149 = vsel %vm1426, %v2103, 0.0
        %2150 = vadd.xlane.f32.xlu0 %v2149
        %v2151 = vpop.xlane.xlu0 %2150
        %v2152 = vmul.f32 %v2106, %v1481
        %v2153 = vmul.f32 %v2109, %v1481
        %v2154 = vmul.f32 %v2112, %v1481
        %v2155 = vmul.f32 %v2115, %v1481
        %v2156 = vmul.f32 %v2118, %v1481
        %v2157 = vmul.f32 %v2121, %v1481
        %v2158 = vmul.f32 %v2124, %v1481
        %v2159 = vmul.f32 %v2127, %v1481
        %v2160 = vmul.f32 %v2130, %v1481
        %v2161 = vmul.f32 %v2133, %v1481
        %v2162 = vmul.f32 %v2136, %v1481
        %v2163 = vmul.f32 %v2139, %v1481
        %v2164 = vmul.f32 %v2142, %v1481
        %v2165 = vmul.f32 %v2145, %v1481
        %v2166 = vmul.f32 %v2148, %v1481
        %v2167 = vmul.f32 %v2151, %v1481
        %v2168 = vsub.f32 %v2088, %v2152
        %v2169 = vsub.f32 %v2089, %v2153
        %v2170 = vsub.f32 %v2090, %v2154
        %v2171 = vsub.f32 %v2091, %v2155
        %v2172 = vsub.f32 %v2092, %v2156
        %v2173 = vsub.f32 %v2093, %v2157
        %v2174 = vsub.f32 %v2094, %v2158
        %v2175 = vsub.f32 %v2095, %v2159
        %v2176 = vsub.f32 %v2096, %v2160
        %v2177 = vsub.f32 %v2097, %v2161
        %v2178 = vsub.f32 %v2098, %v2162
        %v2179 = vsub.f32 %v2099, %v2163
        %v2180 = vsub.f32 %v2100, %v2164
        %v2181 = vsub.f32 %v2101, %v2165
        %v2182 = vsub.f32 %v2102, %v2166
        %v2183 = vsub.f32 %v2103, %v2167
        %v2184 = vmul.f32 %v2168, %v2168
        %v2185 = vmul.f32 %v2169, %v2169
        %v2186 = vmul.f32 %v2170, %v2170
        %v2187 = vmul.f32 %v2171, %v2171
        %v2188 = vmul.f32 %v2172, %v2172
        %v2189 = vmul.f32 %v2173, %v2173
        %v2190 = vmul.f32 %v2174, %v2174
        %v2191 = vmul.f32 %v2175, %v2175
        %v2192 = vmul.f32 %v2176, %v2176
        %v2193 = vmul.f32 %v2177, %v2177
        %v2194 = vmul.f32 %v2178, %v2178
        %v2195 = vmul.f32 %v2179, %v2179
        %v2196 = vmul.f32 %v2180, %v2180
        %v2197 = vmul.f32 %v2181, %v2181
        %v2198 = vmul.f32 %v2182, %v2182
        %v2199 = vmul.f32 %v2183, %v2183
        %v2200 = vsel %vm1426, %v2184, 0.0
        %2201 = vadd.xlane.f32.xlu0 %v2200
        %v2202 = vpop.xlane.xlu0 %2201
        %v2203 = vsel %vm1426, %v2185, 0.0
        %2204 = vadd.xlane.f32.xlu0 %v2203
        %v2205 = vpop.xlane.xlu0 %2204
        %v2206 = vsel %vm1426, %v2186, 0.0
        %2207 = vadd.xlane.f32.xlu0 %v2206
        %v2208 = vpop.xlane.xlu0 %2207
        %v2209 = vsel %vm1426, %v2187, 0.0
        %2210 = vadd.xlane.f32.xlu0 %v2209
        %v2211 = vpop.xlane.xlu0 %2210
        %v2212 = vsel %vm1426, %v2188, 0.0
        %2213 = vadd.xlane.f32.xlu0 %v2212
        %v2214 = vpop.xlane.xlu0 %2213
        %v2215 = vsel %vm1426, %v2189, 0.0
        %2216 = vadd.xlane.f32.xlu0 %v2215
        %v2217 = vpop.xlane.xlu0 %2216
        %v2218 = vsel %vm1426, %v2190, 0.0
        %2219 = vadd.xlane.f32.xlu0 %v2218
        %v2220 = vpop.xlane.xlu0 %2219
        %v2221 = vsel %vm1426, %v2191, 0.0
        %2222 = vadd.xlane.f32.xlu0 %v2221
        %v2223 = vpop.xlane.xlu0 %2222
        %v2224 = vsel %vm1426, %v2192, 0.0
        %2225 = vadd.xlane.f32.xlu0 %v2224
        %v2226 = vpop.xlane.xlu0 %2225
        %v2227 = vsel %vm1426, %v2193, 0.0
        %2228 = vadd.xlane.f32.xlu0 %v2227
        %v2229 = vpop.xlane.xlu0 %2228
        %v2230 = vsel %vm1426, %v2194, 0.0
        %2231 = vadd.xlane.f32.xlu0 %v2230
        %v2232 = vpop.xlane.xlu0 %2231
        %v2233 = vsel %vm1426, %v2195, 0.0
        %2234 = vadd.xlane.f32.xlu0 %v2233
        %v2235 = vpop.xlane.xlu0 %2234
        %v2236 = vsel %vm1426, %v2196, 0.0
        %2237 = vadd.xlane.f32.xlu0 %v2236
        %v2238 = vpop.xlane.xlu0 %2237
        %v2239 = vsel %vm1426, %v2197, 0.0
        %2240 = vadd.xlane.f32.xlu0 %v2239
        %v2241 = vpop.xlane.xlu0 %2240
        %v2242 = vsel %vm1426, %v2198, 0.0
        %2243 = vadd.xlane.f32.xlu0 %v2242
        %v2244 = vpop.xlane.xlu0 %2243
        %v2245 = vsel %vm1426, %v2199, 0.0
        %2246 = vadd.xlane.f32.xlu0 %v2245
        %v2247 = vpop.xlane.xlu0 %2246
        %v2248 = vmul.f32 %v2202, %v1481
        %v2249 = vmul.f32 %v2205, %v1481
        %v2250 = vmul.f32 %v2208, %v1481
        %v2251 = vmul.f32 %v2211, %v1481
        %v2252 = vmul.f32 %v2214, %v1481
        %v2253 = vmul.f32 %v2217, %v1481
        %v2254 = vmul.f32 %v2220, %v1481
        %v2255 = vmul.f32 %v2223, %v1481
        %v2256 = vmul.f32 %v2226, %v1481
        %v2257 = vmul.f32 %v2229, %v1481
        %v2258 = vmul.f32 %v2232, %v1481
        %v2259 = vmul.f32 %v2235, %v1481
        %v2260 = vmul.f32 %v2238, %v1481
        %v2261 = vmul.f32 %v2241, %v1481
        %v2262 = vmul.f32 %v2244, %v1481
        %v2263 = vmul.f32 %v2247, %v1481
        %v2264 = vadd.f32 %v2248, 1e-05
        %v2265 = vadd.f32 %v2249, 1e-05
        %v2266 = vadd.f32 %v2250, 1e-05
        %v2267 = vadd.f32 %v2251, 1e-05
        %v2268 = vadd.f32 %v2252, 1e-05
        %v2269 = vadd.f32 %v2253, 1e-05
        %v2270 = vadd.f32 %v2254, 1e-05
        %v2271 = vadd.f32 %v2255, 1e-05
        %v2272 = vadd.f32 %v2256, 1e-05
        %v2273 = vadd.f32 %v2257, 1e-05
        %v2274 = vadd.f32 %v2258, 1e-05
        %v2275 = vadd.f32 %v2259, 1e-05
        %v2276 = vadd.f32 %v2260, 1e-05
        %v2277 = vadd.f32 %v2261, 1e-05
        %v2278 = vadd.f32 %v2262, 1e-05
        %v2279 = vadd.f32 %v2263, 1e-05
        %v2280 = vrsqrt.pop %v2264
        %v2281 = vmul.f32 %v2280, %v2264
        %v2282 = vmul.f32 %v2281, %v2280
        %v2283 = vmul.f32 0.5, %v2282
        %v2284 = vsub.f32 1.5, %v2283
        %v2285 = vmul.f32 %v2280, %v2284
        %vm2286 = vweird.f32 %v2264
        %vm2287 = vweird.f32 %v2280
        %vm2288 = vmor %vm2286, %vm2287
        %v2289 = vsel %vm2288, %v2280, %v2285
        %v2290 = vrsqrt.pop %v2265
        %v2291 = vmul.f32 %v2290, %v2265
        %v2292 = vmul.f32 %v2291, %v2290
        %v2293 = vmul.f32 0.5, %v2292
        %v2294 = vsub.f32 1.5, %v2293
        %v2295 = vmul.f32 %v2290, %v2294
        %vm2296 = vweird.f32 %v2265
        %vm2297 = vweird.f32 %v2290
        %vm2298 = vmor %vm2296, %vm2297
        %v2299 = vsel %vm2298, %v2290, %v2295
        %v2300 = vrsqrt.pop %v2266
        %v2301 = vmul.f32 %v2300, %v2266
        %v2302 = vmul.f32 %v2301, %v2300
        %v2303 = vmul.f32 0.5, %v2302
        %v2304 = vsub.f32 1.5, %v2303
        %v2305 = vmul.f32 %v2300, %v2304
        %vm2306 = vweird.f32 %v2266
        %vm2307 = vweird.f32 %v2300
        %vm2308 = vmor %vm2306, %vm2307
        %v2309 = vsel %vm2308, %v2300, %v2305
        %v2310 = vrsqrt.pop %v2267
        %v2311 = vmul.f32 %v2310, %v2267
        %v2312 = vmul.f32 %v2311, %v2310
        %v2313 = vmul.f32 0.5, %v2312
        %v2314 = vsub.f32 1.5, %v2313
        %v2315 = vmul.f32 %v2310, %v2314
        %vm2316 = vweird.f32 %v2267
        %vm2317 = vweird.f32 %v2310
        %vm2318 = vmor %vm2316, %vm2317
        %v2319 = vsel %vm2318, %v2310, %v2315
        %v2320 = vrsqrt.pop %v2268
        %v2321 = vmul.f32 %v2320, %v2268
        %v2322 = vmul.f32 %v2321, %v2320
        %v2323 = vmul.f32 0.5, %v2322
        %v2324 = vsub.f32 1.5, %v2323
        %v2325 = vmul.f32 %v2320, %v2324
        %vm2326 = vweird.f32 %v2268
        %vm2327 = vweird.f32 %v2320
        %vm2328 = vmor %vm2326, %vm2327
        %v2329 = vsel %vm2328, %v2320, %v2325
        %v2330 = vrsqrt.pop %v2269
        %v2331 = vmul.f32 %v2330, %v2269
        %v2332 = vmul.f32 %v2331, %v2330
        %v2333 = vmul.f32 0.5, %v2332
        %v2334 = vsub.f32 1.5, %v2333
        %v2335 = vmul.f32 %v2330, %v2334
        %vm2336 = vweird.f32 %v2269
        %vm2337 = vweird.f32 %v2330
        %vm2338 = vmor %vm2336, %vm2337
        %v2339 = vsel %vm2338, %v2330, %v2335
        %v2340 = vrsqrt.pop %v2270
        %v2341 = vmul.f32 %v2340, %v2270
        %v2342 = vmul.f32 %v2341, %v2340
        %v2343 = vmul.f32 0.5, %v2342
        %v2344 = vsub.f32 1.5, %v2343
        %v2345 = vmul.f32 %v2340, %v2344
        %vm2346 = vweird.f32 %v2270
        %vm2347 = vweird.f32 %v2340
        %vm2348 = vmor %vm2346, %vm2347
        %v2349 = vsel %vm2348, %v2340, %v2345
        %v2350 = vrsqrt.pop %v2271
        %v2351 = vmul.f32 %v2350, %v2271
        %v2352 = vmul.f32 %v2351, %v2350
        %v2353 = vmul.f32 0.5, %v2352
        %v2354 = vsub.f32 1.5, %v2353
        %v2355 = vmul.f32 %v2350, %v2354
        %vm2356 = vweird.f32 %v2271
        %vm2357 = vweird.f32 %v2350
        %vm2358 = vmor %vm2356, %vm2357
        %v2359 = vsel %vm2358, %v2350, %v2355
        %v2360 = vrsqrt.pop %v2272
        %v2361 = vmul.f32 %v2360, %v2272
        %v2362 = vmul.f32 %v2361, %v2360
        %v2363 = vmul.f32 0.5, %v2362
        %v2364 = vsub.f32 1.5, %v2363
        %v2365 = vmul.f32 %v2360, %v2364
        %vm2366 = vweird.f32 %v2272
        %vm2367 = vweird.f32 %v2360
        %vm2368 = vmor %vm2366, %vm2367
        %v2369 = vsel %vm2368, %v2360, %v2365
        %v2370 = vrsqrt.pop %v2273
        %v2371 = vmul.f32 %v2370, %v2273
        %v2372 = vmul.f32 %v2371, %v2370
        %v2373 = vmul.f32 0.5, %v2372
        %v2374 = vsub.f32 1.5, %v2373
        %v2375 = vmul.f32 %v2370, %v2374
        %vm2376 = vweird.f32 %v2273
        %vm2377 = vweird.f32 %v2370
        %vm2378 = vmor %vm2376, %vm2377
        %v2379 = vsel %vm2378, %v2370, %v2375
        %v2380 = vrsqrt.pop %v2274
        %v2381 = vmul.f32 %v2380, %v2274
        %v2382 = vmul.f32 %v2381, %v2380
        %v2383 = vmul.f32 0.5, %v2382
        %v2384 = vsub.f32 1.5, %v2383
        %v2385 = vmul.f32 %v2380, %v2384
        %vm2386 = vweird.f32 %v2274
        %vm2387 = vweird.f32 %v2380
        %vm2388 = vmor %vm2386, %vm2387
        %v2389 = vsel %vm2388, %v2380, %v2385
        %v2390 = vrsqrt.pop %v2275
        %v2391 = vmul.f32 %v2390, %v2275
        %v2392 = vmul.f32 %v2391, %v2390
        %v2393 = vmul.f32 0.5, %v2392
        %v2394 = vsub.f32 1.5, %v2393
        %v2395 = vmul.f32 %v2390, %v2394
        %vm2396 = vweird.f32 %v2275
        %vm2397 = vweird.f32 %v2390
        %vm2398 = vmor %vm2396, %vm2397
        %v2399 = vsel %vm2398, %v2390, %v2395
        %v2400 = vrsqrt.pop %v2276
        %v2401 = vmul.f32 %v2400, %v2276
        %v2402 = vmul.f32 %v2401, %v2400
        %v2403 = vmul.f32 0.5, %v2402
        %v2404 = vsub.f32 1.5, %v2403
        %v2405 = vmul.f32 %v2400, %v2404
        %vm2406 = vweird.f32 %v2276
        %vm2407 = vweird.f32 %v2400
        %vm2408 = vmor %vm2406, %vm2407
        %v2409 = vsel %vm2408, %v2400, %v2405
        %v2410 = vrsqrt.pop %v2277
        %v2411 = vmul.f32 %v2410, %v2277
        %v2412 = vmul.f32 %v2411, %v2410
        %v2413 = vmul.f32 0.5, %v2412
        %v2414 = vsub.f32 1.5, %v2413
        %v2415 = vmul.f32 %v2410, %v2414
        %vm2416 = vweird.f32 %v2277
        %vm2417 = vweird.f32 %v2410
        %vm2418 = vmor %vm2416, %vm2417
        %v2419 = vsel %vm2418, %v2410, %v2415
        %v2420 = vrsqrt.pop %v2278
        %v2421 = vmul.f32 %v2420, %v2278
        %v2422 = vmul.f32 %v2421, %v2420
        %v2423 = vmul.f32 0.5, %v2422
        %v2424 = vsub.f32 1.5, %v2423
        %v2425 = vmul.f32 %v2420, %v2424
        %vm2426 = vweird.f32 %v2278
        %vm2427 = vweird.f32 %v2420
        %vm2428 = vmor %vm2426, %vm2427
        %v2429 = vsel %vm2428, %v2420, %v2425
        %v2430 = vrsqrt.pop %v2279
        %v2431 = vmul.f32 %v2430, %v2279
        %v2432 = vmul.f32 %v2431, %v2430
        %v2433 = vmul.f32 0.5, %v2432
        %v2434 = vsub.f32 1.5, %v2433
        %v2435 = vmul.f32 %v2430, %v2434
        %vm2436 = vweird.f32 %v2279
        %vm2437 = vweird.f32 %v2430
        %vm2438 = vmor %vm2436, %vm2437
        %v2439 = vsel %vm2438, %v2430, %v2435
        %v2440 = vmul.f32 %v2168, %v2289
        %v2441 = vmul.f32 %v2169, %v2299
        %v2442 = vmul.f32 %v2170, %v2309
        %v2443 = vmul.f32 %v2171, %v2319
        %v2444 = vmul.f32 %v2172, %v2329
        %v2445 = vmul.f32 %v2173, %v2339
        %v2446 = vmul.f32 %v2174, %v2349
        %v2447 = vmul.f32 %v2175, %v2359
        %v2448 = vmul.f32 %v2176, %v2369
        %v2449 = vmul.f32 %v2177, %v2379
        %v2450 = vmul.f32 %v2178, %v2389
        %v2451 = vmul.f32 %v2179, %v2399
        %v2452 = vmul.f32 %v2180, %v2409
        %v2453 = vmul.f32 %v2181, %v2419
        %v2454 = vmul.f32 %v2182, %v2429
        %v2455 = vmul.f32 %v2183, %v2439
        %v2456 = vld [vmem:[%s12] sm:$0x1]
        %v2458 = vperm.slane %v2456, 0
        %v2460 = vmul.f32 %v2440, %v2458
        %v2461 = vmul.f32 %v2441, %v2458
        %v2462 = vmul.f32 %v2442, %v2458
        %v2463 = vmul.f32 %v2443, %v2458
        %v2464 = vmul.f32 %v2444, %v2458
        %v2465 = vmul.f32 %v2445, %v2458
        %v2466 = vmul.f32 %v2446, %v2458
        %v2467 = vmul.f32 %v2447, %v2458
        %v2468 = vmul.f32 %v2448, %v2458
        %v2469 = vmul.f32 %v2449, %v2458
        %v2470 = vmul.f32 %v2450, %v2458
        %v2471 = vmul.f32 %v2451, %v2458
        %v2472 = vmul.f32 %v2452, %v2458
        %v2473 = vmul.f32 %v2453, %v2458
        %v2474 = vmul.f32 %v2454, %v2458
        %v2475 = vmul.f32 %v2455, %v2458
        %v2476 = vld [vmem:[%s13] sm:$0x1]
        %v2478 = vperm.slane %v2476, 0
        %v2480 = vadd.f32 %v2460, %v2478
        %v2481 = vadd.f32 %v2461, %v2478
        %v2482 = vadd.f32 %v2462, %v2478
        %v2483 = vadd.f32 %v2463, %v2478
        %v2484 = vadd.f32 %v2464, %v2478
        %v2485 = vadd.f32 %v2465, %v2478
        %v2486 = vadd.f32 %v2466, %v2478
        %v2487 = vadd.f32 %v2467, %v2478
        %v2488 = vadd.f32 %v2468, %v2478
        %v2489 = vadd.f32 %v2469, %v2478
        %v2490 = vadd.f32 %v2470, %v2478
        %v2491 = vadd.f32 %v2471, %v2478
        %v2492 = vadd.f32 %v2472, %v2478
        %v2493 = vadd.f32 %v2473, %v2478
        %v2494 = vadd.f32 %v2474, %v2478
        %v2495 = vadd.f32 %v2475, %v2478
        %2496 = vst.msk [vmem:[%s530] sm:$0xff] %vm1426, %v2480
        %2497 = vst.msk [vmem:[%s530 + $0x8] sm:$0xff] %vm1426, %v2481
        %2498 = vst.msk [vmem:[%s530 + $0x10] sm:$0xff] %vm1426, %v2482
        %2499 = vst.msk [vmem:[%s530 + $0x18] sm:$0xff] %vm1426, %v2483
        %2500 = vst.msk [vmem:[%s530 + $0x20] sm:$0xff] %vm1426, %v2484
        %2501 = vst.msk [vmem:[%s530 + $0x28] sm:$0xff] %vm1426, %v2485
        %2502 = vst.msk [vmem:[%s530 + $0x30] sm:$0xff] %vm1426, %v2486
        %2503 = vst.msk [vmem:[%s530 + $0x38] sm:$0xff] %vm1426, %v2487
        %2504 = vst.msk [vmem:[%s530 + $0x40] sm:$0xff] %vm1426, %v2488
        %2505 = vst.msk [vmem:[%s530 + $0x48] sm:$0xff] %vm1426, %v2489
        %2506 = vst.msk [vmem:[%s530 + $0x50] sm:$0xff] %vm1426, %v2490
        %2507 = vst.msk [vmem:[%s530 + $0x58] sm:$0xff] %vm1426, %v2491
        %2508 = vst.msk [vmem:[%s530 + $0x60] sm:$0xff] %vm1426, %v2492
        %2509 = vst.msk [vmem:[%s530 + $0x68] sm:$0xff] %vm1426, %v2493
        %2510 = vst.msk [vmem:[%s530 + $0x70] sm:$0xff] %vm1426, %v2494
        %2511 = vst.msk [vmem:[%s530 + $0x78] sm:$0xff] %vm1426, %v2495
        %s2512 = sand.u32 %s342, 1
        %s2513 = sand.u32 %s342, 1
        %s2514 = smul.addr %s2513, 128
        %s2515 = scalar_lea.vmem [#allocation2], %s2514
        // Predicated region
        $region77: #{encoder_layer_forward.3} parent=75 // pred_check
          %p2516 = pneg %p352
        $region78: #{encoder_layer_forward.3} parent=75 // pred_check_branch
          %2518 = sbr.rel (%p2516) target = $region80
        $region79: #{encoder_layer_forward.3} parent=75 // pred_region
          %s2519 = smul.u32 16, %s25
          %s2520 = ssub.s32 22, %s2519
          %p2521 = scmp.lt.s32.totalorder %s2520, 16
          %s2522 = scalar_select %p2521, %s2520, 16
          %s2523 = smul.u32 8, %s2522
          %p2524 = scmp.ne.s32.totalorder 0, %s2523
          %s2525 = smul.addr %s2519, 8
          %s2526 = scalar_lea.vmem %s14, %s2525
          // Predicated region
          $region81: #{encoder_layer_forward.3} parent=79 // pred_check
            %p2527 = pneg %p2524
          $region82: #{encoder_layer_forward.3} parent=79 // pred_check_branch
            %2529 = sbr.rel (%p2527) target = $region84
          $region83: #{encoder_layer_forward.3} parent=79 // pred_region
            // Predicated region
            $region85: #{encoder_layer_forward.3} parent=83 // pred_check
              _
            $region86: #{encoder_layer_forward.3} parent=83 // pred_check_branch
              %2531 = sbr.rel (0) target = $region88
            $region87: #{encoder_layer_forward.3} parent=83 // pred_region
              // Predicated region
              $region107: #{encoder_layer_forward.3} parent=87 // pred_check
                _
              $region108: #{encoder_layer_forward.3} parent=87 // pred_check_branch
                %2611 = sbr.rel (0) target = $region110
              $region109: #{encoder_layer_forward.3} parent=87 // pred_region
                %s2612 = sshrl.u32 %s2522, 4
                // While loop
                $region111: #{encoder_layer_forward.3} parent=109 // loop_pre_header
                  _
                $region112: #{encoder_layer_forward.3} parent=109 // loop_header
                  %s2614 = sphi 0, %s2616
                  %p2615 = scmp.ge.s32.totalorder %s2614, %s2612
                  %s2619 = sphi 0, %s2656
                  %s2620 = sphi %s2515, %s2659
                  %s2621 = sphi %s2526, %s2660
                $region113: #{encoder_layer_forward.3} parent=109 // loop_header_branch
                  %2618 = sbr.rel (%p2615) target = $region117
                $region114: #{encoder_layer_forward.3} parent=109 // loop_body
                  %v2622 = vld [vmem:[%s2620] sm:$0xff]
                  %2623 = vst [vmem:[%s2621] sm:$0xff] %v2622
                  %v2624 = vld [vmem:[%s2620 + $0x8] sm:$0xff]
                  %2625 = vst [vmem:[%s2621 + $0x8] sm:$0xff] %v2624
                  %v2626 = vld [vmem:[%s2620 + $0x10] sm:$0xff]
                  %2627 = vst [vmem:[%s2621 + $0x10] sm:$0xff] %v2626
                  %v2628 = vld [vmem:[%s2620 + $0x18] sm:$0xff]
                  %2629 = vst [vmem:[%s2621 + $0x18] sm:$0xff] %v2628
                  %v2630 = vld [vmem:[%s2620 + $0x20] sm:$0xff]
                  %2631 = vst [vmem:[%s2621 + $0x20] sm:$0xff] %v2630
                  %v2632 = vld [vmem:[%s2620 + $0x28] sm:$0xff]
                  %2633 = vst [vmem:[%s2621 + $0x28] sm:$0xff] %v2632
                  %v2634 = vld [vmem:[%s2620 + $0x30] sm:$0xff]
                  %2635 = vst [vmem:[%s2621 + $0x30] sm:$0xff] %v2634
                  %v2636 = vld [vmem:[%s2620 + $0x38] sm:$0xff]
                  %2637 = vst [vmem:[%s2621 + $0x38] sm:$0xff] %v2636
                  %v2638 = vld [vmem:[%s2620 + $0x40] sm:$0xff]
                  %2639 = vst [vmem:[%s2621 + $0x40] sm:$0xff] %v2638
                  %v2640 = vld [vmem:[%s2620 + $0x48] sm:$0xff]
                  %2641 = vst [vmem:[%s2621 + $0x48] sm:$0xff] %v2640
                  %v2642 = vld [vmem:[%s2620 + $0x50] sm:$0xff]
                  %2643 = vst [vmem:[%s2621 + $0x50] sm:$0xff] %v2642
                  %v2644 = vld [vmem:[%s2620 + $0x58] sm:$0xff]
                  %2645 = vst [vmem:[%s2621 + $0x58] sm:$0xff] %v2644
                  %v2646 = vld [vmem:[%s2620 + $0x60] sm:$0xff]
                  %2647 = vst [vmem:[%s2621 + $0x60] sm:$0xff] %v2646
                  %v2648 = vld [vmem:[%s2620 + $0x68] sm:$0xff]
                  %2649 = vst [vmem:[%s2621 + $0x68] sm:$0xff] %v2648
                  %v2650 = vld [vmem:[%s2620 + $0x70] sm:$0xff]
                  %2651 = vst [vmem:[%s2621 + $0x70] sm:$0xff] %v2650
                  %v2652 = vld [vmem:[%s2620 + $0x78] sm:$0xff]
                  %2653 = vst [vmem:[%s2621 + $0x78] sm:$0xff] %v2652
                  %s2654 = sadd.s32 1, %s2619
                  %p2655 = scmp.ge.s32.totalorder %s2654, %s2612
                  %s2656 = scalar_select %p2655, 0, %s2654
                  %s2657 = smul.u32 %s2656, 128
                  %s2658 = smul.u32 %s2656, 128
                  %s2659 = scalar_lea.vmem %s2515, %s2657 [#allocation2]
                  %s2660 = scalar_lea.vmem %s2526, %s2658
                $region115: #{encoder_layer_forward.3} parent=109 // loop_footer
                  %s2616 = sadd.s32 %s2614, 1
                $region116: #{encoder_layer_forward.3} parent=109 // loop_footer_branch
                  %2613 = sbr.rel target = $region112
                $region117: #{encoder_layer_forward.3} parent=109 // loop_exit
                  _
                %s2661 = sshrl.u32 %s2522, 4
                %s2662 = sand.u32 %s2522, 15
                %s2663 = smul.u32 %s2661, 16
                %s2664 = smul.u32 8, %s2663
                %s2665 = scalar_lea.vmem %s2515, %s2664 [#allocation2]
                %s2666 = smul.u32 8, %s2663
                %s2667 = scalar_lea.vmem %s2526, %s2666
                // While loop
                $region118: #{encoder_layer_forward.3} parent=109 // loop_pre_header
                  _
                $region119: #{encoder_layer_forward.3} parent=109 // loop_header
                  %s2669 = sphi 0, %s2671
                  %p2670 = scmp.ge.s32.totalorder %s2669, %s2662
                  %s2674 = sphi 0, %s2681
                  %s2675 = sphi %s2665, %s2684
                  %s2676 = sphi %s2667, %s2685
                $region120: #{encoder_layer_forward.3} parent=109 // loop_header_branch
                  %2673 = sbr.rel (%p2670) target = $region124
                $region121: #{encoder_layer_forward.3} parent=109 // loop_body
                  %v2677 = vld [vmem:[%s2675] sm:$0xff]
                  %2678 = vst [vmem:[%s2676] sm:$0xff] %v2677
                  %s2679 = sadd.s32 1, %s2674
                  %p2680 = scmp.ge.s32.totalorder %s2679, %s2662
                  %s2681 = scalar_select %p2680, 0, %s2679
                  %s2682 = smul.u32 %s2681, 8
                  %s2683 = smul.u32 %s2681, 8
                  %s2684 = scalar_lea.vmem %s2665, %s2682 [#allocation2]
                  %s2685 = scalar_lea.vmem %s2667, %s2683
                $region122: #{encoder_layer_forward.3} parent=109 // loop_footer
                  %s2671 = sadd.s32 %s2669, 1
                $region123: #{encoder_layer_forward.3} parent=109 // loop_footer_branch
                  %2668 = sbr.rel target = $region119
                $region124: #{encoder_layer_forward.3} parent=109 // loop_exit
                  _
              $region110: #{encoder_layer_forward.3} parent=87 // pred_fallthru
                _
              // Predicated region
              $region125: #{encoder_layer_forward.3} parent=87 // pred_check
                _
              $region126: #{encoder_layer_forward.3} parent=87 // pred_check_branch
                %2687 = sbr.rel target = $region128
              $region127: #{encoder_layer_forward.3} parent=87 // pred_region
                _
              $region128: #{encoder_layer_forward.3} parent=87 // pred_fallthru
                _
            $region88: #{encoder_layer_forward.3} parent=83 // pred_fallthru
              _
            // Predicated region
            $region89: #{encoder_layer_forward.3} parent=83 // pred_check
              _
            $region90: #{encoder_layer_forward.3} parent=83 // pred_check_branch
              %2533 = sbr.rel target = $region92
            $region91: #{encoder_layer_forward.3} parent=83 // pred_region
              %s2535 = ssub.s32 256, 1
              %s2536 = sshrl.u32 %s2522, 4
              // While loop
              $region93: #{encoder_layer_forward.3} parent=91 // loop_pre_header
                _
              $region94: #{encoder_layer_forward.3} parent=91 // loop_header
                %s2538 = sphi 0, %s2540
                %p2539 = scmp.ge.s32.totalorder %s2538, %s2536
                %s2543 = sphi 0, %s2580
                %s2544 = sphi %s2515, %s2583
                %s2545 = sphi %s2526, %s2584
              $region95: #{encoder_layer_forward.3} parent=91 // loop_header_branch
                %2542 = sbr.rel (%p2539) target = $region99
              $region96: #{encoder_layer_forward.3} parent=91 // loop_body
                %v2546 = vld [vmem:[%s2544] sm:%s2535]
                %2547 = vst [vmem:[%s2545] sm:%s2535] %v2546
                %v2548 = vld [vmem:[%s2544 + $0x8] sm:%s2535]
                %2549 = vst [vmem:[%s2545 + $0x8] sm:%s2535] %v2548
                %v2550 = vld [vmem:[%s2544 + $0x10] sm:%s2535]
                %2551 = vst [vmem:[%s2545 + $0x10] sm:%s2535] %v2550
                %v2552 = vld [vmem:[%s2544 + $0x18] sm:%s2535]
                %2553 = vst [vmem:[%s2545 + $0x18] sm:%s2535] %v2552
                %v2554 = vld [vmem:[%s2544 + $0x20] sm:%s2535]
                %2555 = vst [vmem:[%s2545 + $0x20] sm:%s2535] %v2554
                %v2556 = vld [vmem:[%s2544 + $0x28] sm:%s2535]
                %2557 = vst [vmem:[%s2545 + $0x28] sm:%s2535] %v2556
                %v2558 = vld [vmem:[%s2544 + $0x30] sm:%s2535]
                %2559 = vst [vmem:[%s2545 + $0x30] sm:%s2535] %v2558
                %v2560 = vld [vmem:[%s2544 + $0x38] sm:%s2535]
                %2561 = vst [vmem:[%s2545 + $0x38] sm:%s2535] %v2560
                %v2562 = vld [vmem:[%s2544 + $0x40] sm:%s2535]
                %2563 = vst [vmem:[%s2545 + $0x40] sm:%s2535] %v2562
                %v2564 = vld [vmem:[%s2544 + $0x48] sm:%s2535]
                %2565 = vst [vmem:[%s2545 + $0x48] sm:%s2535] %v2564
                %v2566 = vld [vmem:[%s2544 + $0x50] sm:%s2535]
                %2567 = vst [vmem:[%s2545 + $0x50] sm:%s2535] %v2566
                %v2568 = vld [vmem:[%s2544 + $0x58] sm:%s2535]
                %2569 = vst [vmem:[%s2545 + $0x58] sm:%s2535] %v2568
                %v2570 = vld [vmem:[%s2544 + $0x60] sm:%s2535]
                %2571 = vst [vmem:[%s2545 + $0x60] sm:%s2535] %v2570
                %v2572 = vld [vmem:[%s2544 + $0x68] sm:%s2535]
                %2573 = vst [vmem:[%s2545 + $0x68] sm:%s2535] %v2572
                %v2574 = vld [vmem:[%s2544 + $0x70] sm:%s2535]
                %2575 = vst [vmem:[%s2545 + $0x70] sm:%s2535] %v2574
                %v2576 = vld [vmem:[%s2544 + $0x78] sm:%s2535]
                %2577 = vst [vmem:[%s2545 + $0x78] sm:%s2535] %v2576
                %s2578 = sadd.s32 1, %s2543
                %p2579 = scmp.ge.s32.totalorder %s2578, %s2536
                %s2580 = scalar_select %p2579, 0, %s2578
                %s2581 = smul.u32 %s2580, 128
                %s2582 = smul.u32 %s2580, 128
                %s2583 = scalar_lea.vmem %s2515, %s2581 [#allocation2]
                %s2584 = scalar_lea.vmem %s2526, %s2582
              $region97: #{encoder_layer_forward.3} parent=91 // loop_footer
                %s2540 = sadd.s32 %s2538, 1
              $region98: #{encoder_layer_forward.3} parent=91 // loop_footer_branch
                %2537 = sbr.rel target = $region94
              $region99: #{encoder_layer_forward.3} parent=91 // loop_exit
                _
              %s2585 = sshrl.u32 %s2522, 4
              %s2586 = sand.u32 %s2522, 15
              %s2587 = smul.u32 %s2585, 16
              %s2588 = smul.u32 8, %s2587
              %s2589 = scalar_lea.vmem %s2515, %s2588 [#allocation2]
              %s2590 = smul.u32 8, %s2587
              %s2591 = scalar_lea.vmem %s2526, %s2590
              // While loop
              $region100: #{encoder_layer_forward.3} parent=91 // loop_pre_header
                _
              $region101: #{encoder_layer_forward.3} parent=91 // loop_header
                %s2593 = sphi 0, %s2595
                %p2594 = scmp.ge.s32.totalorder %s2593, %s2586
                %s2598 = sphi 0, %s2605
                %s2599 = sphi %s2589, %s2608
                %s2600 = sphi %s2591, %s2609
              $region102: #{encoder_layer_forward.3} parent=91 // loop_header_branch
                %2597 = sbr.rel (%p2594) target = $region106
              $region103: #{encoder_layer_forward.3} parent=91 // loop_body
                %v2601 = vld [vmem:[%s2599] sm:%s2535]
                %2602 = vst [vmem:[%s2600] sm:%s2535] %v2601
                %s2603 = sadd.s32 1, %s2598
                %p2604 = scmp.ge.s32.totalorder %s2603, %s2586
                %s2605 = scalar_select %p2604, 0, %s2603
                %s2606 = smul.u32 %s2605, 8
                %s2607 = smul.u32 %s2605, 8
                %s2608 = scalar_lea.vmem %s2589, %s2606 [#allocation2]
                %s2609 = scalar_lea.vmem %s2591, %s2607
              $region104: #{encoder_layer_forward.3} parent=91 // loop_footer
                %s2595 = sadd.s32 %s2593, 1
              $region105: #{encoder_layer_forward.3} parent=91 // loop_footer_branch
                %2592 = sbr.rel target = $region101
              $region106: #{encoder_layer_forward.3} parent=91 // loop_exit
                _
            $region92: #{encoder_layer_forward.3} parent=83 // pred_fallthru
              _
          $region84: #{encoder_layer_forward.3} parent=79 // pred_fallthru
            _
          %2688 = vnop
        $region80: #{encoder_layer_forward.3} parent=75 // pred_fallthru
          _
      $region76: #{encoder_layer_forward.3} parent=5 // pred_fallthru
        _
      %p2689 = scmp.le.s32.totalorder 2, %s20
      // Predicated region
      $region129: #{encoder_layer_forward.3} parent=5 // pred_check
        %p2690 = pneg %p2689
      $region130: #{encoder_layer_forward.3} parent=5 // pred_check_branch
        %2692 = sbr.rel (%p2690) target = $region132
      $region131: #{encoder_layer_forward.3} parent=5 // pred_region
        %s2693 = ssub.s32 %s20, 2
        // Predicated region
        $region133: #{encoder_layer_forward.3} parent=131 // pred_check
          %p2694 = pneg %p358
        $region134: #{encoder_layer_forward.3} parent=131 // pred_check_branch
          %2696 = sbr.rel (%p2694) target = $region136
        $region135: #{encoder_layer_forward.3} parent=131 // pred_region
          %s2697 = sand.u32 %s343, 1
          %s2698 = sand.u32 %s343, 1
          %s2699 = smul.addr %s2698, 128
          %s2700 = scalar_lea.vmem [#allocation2], %s2699
        $region136: #{encoder_layer_forward.3} parent=131 // pred_fallthru
          _
      $region132: #{encoder_layer_forward.3} parent=5 // pred_fallthru
        _
    $region6: #{encoder_layer_forward.3} parent=1 // loop_footer
      %s24 = sadd.s32 1, %s20
    $region7: #{encoder_layer_forward.3} parent=1 // loop_footer_branch
      %19 = sbr.rel target = $region3
    $region8: #{encoder_layer_forward.3} parent=1 // loop_exit
      _

</llo_original>
